<compile_context>
chip_gen: v7x
topology: tpu7x:2x2x1
jax: 0.10.0
libtpu: 0.0.40
codegen_flags: <defaults>
</compile_context>

<pallas_src>
import functools

import jax
import jax.numpy as jnp
from jax.experimental import pallas as pl
from jax.experimental.pallas import tpu as pltpu


# --------------------- generic tiled matmul + bias kernel ---------------------
# Used for the FC head.  f32 accumulation; operands may be bf16.

def _matmul_bias_kernel(x_ref, w_ref, b_ref, o_ref):
    x = x_ref[...]
    if x.dtype != w_ref.dtype:
        x = x.astype(w_ref.dtype)
    o_ref[...] = (jnp.dot(x, w_ref[...], preferred_element_type=jnp.float32)
                  + b_ref[...]).astype(o_ref.dtype)


def matmul_bias(x, w, b, *, tm=512, tn=1024, weight_stationary=None,
                vmem_budget=20 * 1024 * 1024):
    """x: [M, K], w: [K, N], b: [1, N] f32.  Returns f32 [M, N] = x @ w + b."""
    M, K = x.shape
    K2, N = w.shape
    assert K == K2
    tm = min(tm, M)
    tn = min(tn, N)
    assert M % tm == 0 and N % tn == 0, (M, N, tm, tn)

    # Keep double-buffered tiles within a conservative VMEM budget (v7x: 64 MiB
    # physical, 32 MiB default scoped).  Halving preserves divisibility.
    def _need(a, c):
        return 2 * 4 * (a * K + K * c + c + a * c)
    while _need(tm, tn) > vmem_budget and (tm > 128 or tn > 128):
        if tn >= tm and tn > 128:
            tn //= 2
        else:
            tm //= 2

    if weight_stationary is None:
        # Reuse whichever operand is larger (for the FC head the [H, V] weight
        # dominates -> keep its block index constant across the inner axis).
        weight_stationary = (w.size * w.dtype.itemsize) >= (x.size * x.dtype.itemsize)

    if weight_stationary:
        grid = (N // tn, M // tm)            # inner axis = M -> weight reused
        in_specs = [
            pl.BlockSpec((tm, K), lambda j, i: (i, 0)),
            pl.BlockSpec((K, tn), lambda j, i: (0, j)),
            pl.BlockSpec((1, tn), lambda j, i: (0, j)),
        ]
        out_spec = pl.BlockSpec((tm, tn), lambda j, i: (i, j))
    else:
        grid = (M // tm, N // tn)            # inner axis = N -> x tile reused
        in_specs = [
            pl.BlockSpec((tm, K), lambda i, j: (i, 0)),
            pl.BlockSpec((K, tn), lambda i, j: (0, j)),
            pl.BlockSpec((1, tn), lambda i, j: (0, j)),
        ]
        out_spec = pl.BlockSpec((tm, tn), lambda i, j: (i, j))

    return pl.pallas_call(
        _matmul_bias_kernel,
        out_shape=jax.ShapeDtypeStruct((M, N), jnp.float32),
        grid_spec=pltpu.PrefetchScalarGridSpec(
            num_scalar_prefetch=0,
            grid=grid,
            in_specs=in_specs,
            out_specs=out_spec,
        ),
        compiler_params=pltpu.CompilerParams(
            dimension_semantics=("parallel", "parallel"),
            vmem_limit_bytes=32 * 1024 * 1024),
    )(x, w, b)


# ------------------------- LSTM recurrence kernel -----------------------------
# Grid = (B // tb, T // chunk), ("parallel", "arbitrary").  (h, c) live in VMEM
# scratch across the time axis.  For layers > 0 the input projection
# x @ W_ih^T + b is fused: computed per chunk into VMEM scratch.  Gate order
# follows PyTorch: (i, f, g, o).

def _make_lstm_kernel(chunk, hidden, batch_major_out, fused):
    H = hidden

    def _recur_and_store(gx_ref, w_hh, h_scr, c_scr, out_scr,
                         out_ref, hT_ref, cT_ref):
        t = pl.program_id(1)
        h = h_scr[...]                      # (tb, H) f32
        c = c_scr[...]
        # Static unrolled loop: only h @ W_hh + gate math on the serial path.
        # Keep `chunk` modest (<=8) to bound vreg live ranges.
        for i in range(chunk):
            gates = gx_ref[i] + jnp.dot(h.astype(w_hh.dtype), w_hh,
                                        preferred_element_type=jnp.float32)
            i_g = jax.nn.sigmoid(gates[:, 0 * H:1 * H])
            f_g = jax.nn.sigmoid(gates[:, 1 * H:2 * H])
            g_g = jnp.tanh(gates[:, 2 * H:3 * H])
            o_g = jax.nn.sigmoid(gates[:, 3 * H:4 * H])
            c = f_g * c + i_g * g_g
            h = o_g * jnp.tanh(c)
            out_scr[i] = h                  # dense (tb, H) store into scratch
        h_scr[...] = h
        c_scr[...] = c
        if batch_major_out:
            # One dense transposed block store (XLU sublane shuffle), instead
            # of per-timestep masked single-sublane stores.
            out_ref[...] = jnp.swapaxes(out_scr[...], 0, 1).astype(out_ref.dtype)
        else:
            out_ref[...] = out_scr[...].astype(out_ref.dtype)

        @pl.when(t == pl.num_programs(1) - 1)
        def _():
            hT_ref[...] = h
            cT_ref[...] = c

    if fused:
        def kernel(x_ref, wih_ref, b_ref, whh_ref, h0_ref, c0_ref,
                   out_ref, hT_ref, cT_ref, h_scr, c_scr, out_scr, gx_scr):
            t = pl.program_id(1)

            @pl.when(t == 0)
            def _():
                h_scr[...] = h0_ref[...]
                c_scr[...] = c0_ref[...]

            ck, tb, din = x_ref.shape
            w_ih = wih_ref[...]
            xin = x_ref[...].reshape(ck * tb, din)   # layout-preserving reshape
            if xin.dtype != w_ih.dtype:
                xin = xin.astype(w_ih.dtype)
            # Hoisted (per-chunk) input projection, one MXU matmul, f32 acc.
            gx = jnp.dot(xin, w_ih, preferred_element_type=jnp.float32) + b_ref[...]
            gx_scr[...] = gx.reshape(ck, tb, 4 * H)
            _recur_and_store(gx_scr, whh_ref[...], h_scr, c_scr, out_scr,
                             out_ref, hT_ref, cT_ref)
    else:
        def kernel(gx_ref, whh_ref, h0_ref, c0_ref,
                   out_ref, hT_ref, cT_ref, h_scr, c_scr, out_scr):
            t = pl.program_id(1)

            @pl.when(t == 0)
            def _():
                h_scr[...] = h0_ref[...]
                c_scr[...] = c0_ref[...]

            _recur_and_store(gx_ref, whh_ref[...], h_scr, c_scr, out_scr,
                             out_ref, hT_ref, cT_ref)

    return kernel


def lstm_layer(x, w_hh_t, h0, c0, *, w_ih_t=None, bias=None, chunk=8,
               batch_tile=None, batch_major_out=False, out_dtype=jnp.float32):
    """One LSTM layer.

    x: time-major [T, B, Din].  If w_ih_t is None, x IS gates_x (Din == 4H,
    already x @ W_ih^T + b).  Otherwise the input projection is fused
    in-kernel with w_ih_t [Din, 4H] and bias [1, 4H].
    w_hh_t: [H, 4H].  h0, c0: f32 [B, H].
    Returns (out, hT, cT); out is [B, T, H] if batch_major_out else [T, B, H].
    """
    T, B, Din = x.shape
    H = h0.shape[-1]
    chunk = min(chunk, T)
    assert T % chunk == 0
    tb = B if batch_tile is None else min(batch_tile, B)
    assert B % tb == 0
    assert tb == B or tb % 8 == 0
    if batch_major_out:
        assert chunk == T or chunk % 8 == 0   # chunk is a sublane dim of out
    fused = w_ih_t is not None

    nb, nt = B // tb, T // chunk
    kernel = _make_lstm_kernel(chunk, H, batch_major_out, fused)

    if batch_major_out:
        out_shape0 = jax.ShapeDtypeStruct((B, T, H), out_dtype)
        out_spec0 = pl.BlockSpec((tb, chunk, H), lambda b, t: (b, t, 0))
    else:
        out_shape0 = jax.ShapeDtypeStruct((T, B, H), out_dtype)
        out_spec0 = pl.BlockSpec((chunk, tb, H), lambda b, t: (t, b, 0))

    in_specs = [pl.BlockSpec((chunk, tb, Din), lambda b, t: (t, b, 0))]
    inputs = [x]
    if fused:
        in_specs += [pl.BlockSpec((Din, 4 * H), lambda b, t: (0, 0)),
                     pl.BlockSpec((1, 4 * H), lambda b, t: (0, 0))]
        inputs += [w_ih_t, bias]
    in_specs += [pl.BlockSpec((H, 4 * H), lambda b, t: (0, 0)),
                 pl.BlockSpec((tb, H), lambda b, t: (b, 0)),
                 pl.BlockSpec((tb, H), lambda b, t: (b, 0))]
    inputs += [w_hh_t, h0, c0]

    scratch = [pltpu.VMEM((tb, H), jnp.float32),          # h
               pltpu.VMEM((tb, H), jnp.float32),          # c
               pltpu.VMEM((chunk, tb, H), jnp.float32)]   # out chunk
    if fused:
        scratch.append(pltpu.VMEM((chunk, tb, 4 * H), jnp.float32))  # gates_x

    out, hT, cT = pl.pallas_call(
        kernel,
        out_shape=(
            out_shape0,
            jax.ShapeDtypeStruct((B, H), jnp.float32),
            jax.ShapeDtypeStruct((B, H), jnp.float32),
        ),
        grid_spec=pltpu.PrefetchScalarGridSpec(
            num_scalar_prefetch=0,
            grid=(nb, nt),
            in_specs=in_specs,
            out_specs=[out_spec0,
                       pl.BlockSpec((tb, H), lambda b, t: (b, 0)),
                       pl.BlockSpec((tb, H), lambda b, t: (b, 0))],
            scratch_shapes=scratch,
        ),
        compiler_params=pltpu.CompilerParams(
            dimension_semantics=("parallel", "arbitrary")),
    )(*inputs)
    return out, hT, cT


# -------------------------- params & model forward ---------------------------

def init_params(key, vocab_size, hidden_dim, num_layers):
    k = 1.0 / jnp.sqrt(jnp.float32(hidden_dim))
    layers = []
    for l in range(num_layers):
        din = vocab_size if l == 0 else hidden_dim
        key, k1, k2, k3, k4 = jax.random.split(key, 5)
        layers.append(dict(
            w_ih=jax.random.uniform(k1, (4 * hidden_dim, din), jnp.float32, -k, k),
            w_hh=jax.random.uniform(k2, (4 * hidden_dim, hidden_dim), jnp.float32, -k, k),
            b_ih=jax.random.uniform(k3, (4 * hidden_dim,), jnp.float32, -k, k),
            b_hh=jax.random.uniform(k4, (4 * hidden_dim,), jnp.float32, -k, k),
        ))
    key, kf1, kf2 = jax.random.split(key, 3)
    fc_w = jax.random.uniform(kf1, (vocab_size, hidden_dim), jnp.float32, -k, k)
    fc_b = jax.random.uniform(kf2, (vocab_size,), jnp.float32, -k, k)
    return dict(layers=layers, fc_w=fc_w, fc_b=fc_b)


def prepare_params(params, mxu_dtype=jnp.float32, lane=128):
    """One-time weight prep: pre-transpose, pre-cast, combine biases, fold the
    layer-0 bias into the gather table, lane-pad the FC head."""
    layers = []
    for l, lp in enumerate(params["layers"]):
        b = (lp["b_ih"] + lp["b_hh"]).astype(jnp.float32)
        if l == 0:
            # one_hot(x) @ W_ih^T + b is an exact row gather of this table.
            # Kept f32 (precision-asymmetric vs the bf16 deeper layers).
            layers.append(dict(table=lp["w_ih"].T.astype(jnp.float32) + b[None, :],
                               w_hh_t=lp["w_hh"].T.astype(mxu_dtype)))
        else:
            layers.append(dict(w_ih_t=lp["w_ih"].T.astype(mxu_dtype),
                               b=b[None, :],
                               w_hh_t=lp["w_hh"].T.astype(mxu_dtype)))
    V = params["fc_w"].shape[0]
    Vp = ((V + lane - 1) // lane) * lane
    fc_w_t = params["fc_w"].T.astype(mxu_dtype)            # [H, V]
    fc_b = params["fc_b"].astype(jnp.float32)
    if Vp != V:   # lane-pad so FC output stores are unmasked
        fc_w_t = jnp.pad(fc_w_t, ((0, 0), (0, Vp - V)))
        fc_b = jnp.pad(fc_b, (0, Vp - V))
    return dict(layers=layers, fc_w_t=fc_w_t, fc_b=fc_b[None, :])


def language_model_onehot(prep, x, hidden, *, vocab_size,
                          time_chunk=8, batch_tile=None):
    """x: int32 [B, T]; hidden = (h0, c0), each [L, B, H].
    Returns (logits [B*T, V] (batch-major), (h_n, c_n))."""
    h0, c0 = hidden
    B, T = x.shape
    layers = prep["layers"]
    L = len(layers)
    act_dtype = prep["fc_w_t"].dtype        # bf16 inter-layer acts when MXU bf16

    cur = None
    h_fin, c_fin = [], []
    for l, lp in enumerate(layers):
        last = (l == L - 1)
        if "table" in lp:
            # Layer 0: exact row gather of (W_ih^T + b); no one-hot buffer.
            gates = jnp.take(lp["table"], x.T, axis=0)      # [T, B, 4H] f32
            cur, hT, cT = lstm_layer(
                gates, lp["w_hh_t"], h0[l], c0[l],
                chunk=time_chunk, batch_tile=batch_tile,
                batch_major_out=last, out_dtype=act_dtype)
        else:
            # Layers > 0: input projection fused in-kernel (no [T,B,4H] HBM).
            cur, hT, cT = lstm_layer(
                cur, lp["w_hh_t"], h0[l], c0[l],
                w_ih_t=lp["w_ih_t"], bias=lp["b"],
                chunk=time_chunk, batch_tile=batch_tile,
                batch_major_out=last, out_dtype=act_dtype)
        h_fin.append(hT)
        c_fin.append(cT)

    # Last layer output is already batch-major [B, T, H] -> reshape is free.
    H = cur.shape[-1]
    logits = matmul_bias(cur.reshape(B * T, H), prep["fc_w_t"], prep["fc_b"])
    if logits.shape[1] != vocab_size:
        logits = logits[:, :vocab_size]
    return logits, (jnp.stack(h_fin), jnp.stack(c_fin))


# ------------------------------ pure-JAX reference ----------------------------

def reference_forward(params, x, hidden, vocab_size):
    h0, c0 = hidden
    cur = jax.nn.one_hot(x, vocab_size, dtype=jnp.float32)      # [B, T, D]
    h_finals, c_finals = [], []
    for l, lp in enumerate(params["layers"]):
        H = lp["w_hh"].shape[-1]

        def step(carry, x_t, lp=lp, H=H):
            h, c = carry
            gates = x_t @ lp["w_ih"].T + h @ lp["w_hh"].T + lp["b_ih"] + lp["b_hh"]
            i = jax.nn.sigmoid(gates[:, :H])
            f = jax.nn.sigmoid(gates[:, H:2 * H])
            g = jnp.tanh(gates[:, 2 * H:3 * H])
            o = jax.nn.sigmoid(gates[:, 3 * H:])
            c = f * c + i * g
            h = o * jnp.tanh(c)
            return (h, c), h

        (hT, cT), outs = jax.lax.scan(step, (h0[l], c0[l]),
                                      jnp.transpose(cur, (1, 0, 2)))
        cur = jnp.transpose(outs, (1, 0, 2))
        h_finals.append(hT)
        c_finals.append(cT)
    out2d = cur.reshape(-1, cur.shape[-1])
    logits = out2d @ params["fc_w"].T + params["fc_b"]
    return logits, (jnp.stack(h_finals), jnp.stack(c_finals))


# ----------------------------------- main -------------------------------------

if __name__ == "__main__":
    # HIDDEN is a multiple of 128 so gate slices / stores are lane-aligned.
    VOCAB, HIDDEN, LAYERS = 32, 128, 2
    B, T = 8, 16

    key = jax.random.PRNGKey(0)
    key, kp, kx = jax.random.split(key, 3)
    params = init_params(kp, VOCAB, HIDDEN, LAYERS)
    x = jax.random.randint(kx, (B, T), 0, VOCAB, dtype=jnp.int32)
    h0 = jnp.zeros((LAYERS, B, HIDDEN), jnp.float32)
    c0 = jnp.zeros((LAYERS, B, HIDDEN), jnp.float32)

    # ---- f32 path, checked tightly against the pure-JAX reference ----
    prep_f32 = prepare_params(params, mxu_dtype=jnp.float32)
    fwd = jax.jit(functools.partial(language_model_onehot, vocab_size=VOCAB))
    logits, (h_n, c_n) = fwd(prep_f32, x, (h0, c0))
    jax.block_until_ready((logits, h_n, c_n))

    ref_logits, (ref_h, ref_c) = reference_forward(params, x, (h0, c0), VOCAB)
    assert logits.shape == (B * T, VOCAB)
    assert h_n.shape == (LAYERS, B, HIDDEN) and c_n.shape == (LAYERS, B, HIDDEN)
    # 2e-3 tolerance: both sides run f32 matmuls on TPU with default precision.
    assert jnp.allclose(logits, ref_logits, atol=2e-3), \
        float(jnp.abs(logits - ref_logits).max())
    assert jnp.allclose(h_n, ref_h, atol=2e-3), float(jnp.abs(h_n - ref_h).max())
    assert jnp.allclose(c_n, ref_c, atol=2e-3), float(jnp.abs(c_n - ref_c).max())

    # ---- bf16 MXU-operand path (valid on v5e/v6e/v7x: MXU is bf16-native;
    # gate math / accumulation stay f32).  Layer 0's gather table stays f32,
    # deeper layers use bf16 operands + bf16 inter-layer activations, hence
    # the loose 0.5 tolerance against the f32 reference. ----
    prep_bf16 = prepare_params(params, mxu_dtype=jnp.bfloat16)
    logits_bf16, (h_bf16, c_bf16) = language_model_onehot(
        prep_bf16, x, (h0, c0), vocab_size=VOCAB)
    jax.block_until_ready((logits_bf16, h_bf16, c_bf16))
    assert float(jnp.max(jnp.abs(logits_bf16 - ref_logits))) < 0.5

    print("KERNEL_OK")
</pallas_src>

<mosaic_0001>
module attributes {stable_mosaic.version = 11 : i64} {
  func.func @kernel(%arg0: i32, %arg1: i32, %arg2: memref<8x8x512xf32, #tpu.memory_space<vmem>>, %arg3: memref<128x512xf32, #tpu.memory_space<vmem>>, %arg4: memref<8x128xf32, #tpu.memory_space<vmem>>, %arg5: memref<8x128xf32, #tpu.memory_space<vmem>>, %arg6: memref<8x8x128xf32, #tpu.memory_space<vmem>>, %arg7: memref<8x128xf32, #tpu.memory_space<vmem>>, %arg8: memref<8x128xf32, #tpu.memory_space<vmem>>, %arg9: memref<8x128xf32, #tpu.memory_space<vmem>>, %arg10: memref<8x128xf32, #tpu.memory_space<vmem>>, %arg11: memref<8x8x128xf32, #tpu.memory_space<vmem>>) attributes {dimension_semantics = [#tpu.dimension_semantics<parallel>, #tpu.dimension_semantics<arbitrary>], iteration_bounds = array<i64: 1, 2>, scalar_prefetch = 0 : i64, scratch_operands = 3 : i64, tpu.core_type = #tpu.core_type<tc>, window_params = [{transform_indices = @transform_0, window_bounds = array<i64: 8, 8, 512>}, {pipeline_mode = #tpu.pipeline_mode<synchronous>, transform_indices = @transform_1, window_bounds = array<i64: 128, 512>}, {transform_indices = @transform_2, window_bounds = array<i64: 8, 128>}, {transform_indices = @transform_3, window_bounds = array<i64: 8, 128>}, {transform_indices = @transform_4, window_bounds = array<i64: 8, 8, 128>}, {transform_indices = @transform_5, window_bounds = array<i64: 8, 128>}, {transform_indices = @transform_6, window_bounds = array<i64: 8, 128>}]} {
    %c0_i32 = arith.constant 0 : i32
    %0 = arith.cmpi eq, %arg1, %c0_i32 : i32
    %1 = arith.extui %0 : i1 to i32
    %c0_i32_0 = arith.constant 0 : i32
    %2 = arith.cmpi ne, %1, %c0_i32_0 : i32
    scf.if %2 {
      %c0_89 = arith.constant 0 : index
      %c0_90 = arith.constant 0 : index
      %269 = vector.load %arg4[%c0_89, %c0_90] : memref<8x128xf32, #tpu.memory_space<vmem>>, vector<8x128xf32>
      %c0_91 = arith.constant 0 : index
      %c0_92 = arith.constant 0 : index
      %270 = vector.load %arg9[%c0_91, %c0_92] : memref<8x128xf32, #tpu.memory_space<vmem>>, vector<8x128xf32>
      tpu.vector_store %arg9[%c0_91, %c0_92], %269 {strides = array<i32>} : memref<8x128xf32, #tpu.memory_space<vmem>>, vector<8x128xf32>,
      %c0_93 = arith.constant 0 : index
      %c0_94 = arith.constant 0 : index
      %271 = vector.load %arg5[%c0_93, %c0_94] : memref<8x128xf32, #tpu.memory_space<vmem>>, vector<8x128xf32>
      %c0_95 = arith.constant 0 : index
      %c0_96 = arith.constant 0 : index
      %272 = vector.load %arg10[%c0_95, %c0_96] : memref<8x128xf32, #tpu.memory_space<vmem>>, vector<8x128xf32>
      tpu.vector_store %arg10[%c0_95, %c0_96], %271 {strides = array<i32>} : memref<8x128xf32, #tpu.memory_space<vmem>>, vector<8x128xf32>,
    } else {
    }
    %c0 = arith.constant 0 : index
    %c0_1 = arith.constant 0 : index
    %3 = vector.load %arg3[%c0, %c0_1] : memref<128x512xf32, #tpu.memory_space<vmem>>, vector<128x512xf32>
    %c0_2 = arith.constant 0 : index
    %c0_3 = arith.constant 0 : index
    %4 = vector.load %arg9[%c0_2, %c0_3] : memref<8x128xf32, #tpu.memory_space<vmem>>, vector<8x128xf32>
    %c0_4 = arith.constant 0 : index
    %c0_5 = arith.constant 0 : index
    %5 = vector.load %arg10[%c0_4, %c0_5] : memref<8x128xf32, #tpu.memory_space<vmem>>, vector<8x128xf32>
    %c0_6 = arith.constant 0 : index
    %c0_7 = arith.constant 0 : index
    %c0_8 = arith.constant 0 : index
    %6 = vector.load %arg2[%c0_6, %c0_7, %c0_8] : memref<8x8x512xf32, #tpu.memory_space<vmem>>, vector<1x8x512xf32>
    %7 = vector.shape_cast %6 : vector<1x8x512xf32> to vector<8x512xf32>
    %cst = arith.constant dense<0.000000e+00> : vector<8x512xf32>
    %8 = tpu.matmul %4, %3, %cst {dimension_numbers = #tpu.dot_dimension_numbers<[1], [0], [0], [1], [0, 0, 1, 1], [], []>} : vector<8x128xf32>, vector<128x512xf32>, vector<8x512xf32> -> vector<8x512xf32>
    %9 = arith.addf %7, %8 : vector<8x512xf32>
    %10 = vector.extract_strided_slice %9 {offsets = [0, 0], sizes = [8, 128], strides = [1, 1]} : vector<8x512xf32> to vector<8x128xf32>
    %11 = arith.negf %10 : vector<8x128xf32>
    %12 = math.exp %11 : vector<8x128xf32>
    %cst_9 = arith.constant 1.000000e+00 : f32
    %13 = vector.broadcast %cst_9 : f32 to vector<8x128xf32>
    %14 = arith.addf %13, %12 : vector<8x128xf32>
    %15 = arith.divf %13, %14 : vector<8x128xf32>
    %16 = vector.extract_strided_slice %9 {offsets = [0, 128], sizes = [8, 128], strides = [1, 1]} : vector<8x512xf32> to vector<8x128xf32>
    %17 = arith.negf %16 : vector<8x128xf32>
    %18 = math.exp %17 : vector<8x128xf32>
    %cst_10 = arith.constant 1.000000e+00 : f32
    %19 = vector.broadcast %cst_10 : f32 to vector<8x128xf32>
    %20 = arith.addf %19, %18 : vector<8x128xf32>
    %21 = arith.divf %19, %20 : vector<8x128xf32>
    %22 = vector.extract_strided_slice %9 {offsets = [0, 256], sizes = [8, 128], strides = [1, 1]} : vector<8x512xf32> to vector<8x128xf32>
    %23 = math.tanh %22 : vector<8x128xf32>
    %24 = vector.extract_strided_slice %9 {offsets = [0, 384], sizes = [8, 128], strides = [1, 1]} : vector<8x512xf32> to vector<8x128xf32>
    %25 = arith.negf %24 : vector<8x128xf32>
    %26 = math.exp %25 : vector<8x128xf32>
    %cst_11 = arith.constant 1.000000e+00 : f32
    %27 = vector.broadcast %cst_11 : f32 to vector<8x128xf32>
    %28 = arith.addf %27, %26 : vector<8x128xf32>
    %29 = arith.divf %27, %28 : vector<8x128xf32>
    %30 = arith.mulf %21, %5 : vector<8x128xf32>
    %31 = arith.mulf %15, %23 : vector<8x128xf32>
    %32 = arith.addf %30, %31 : vector<8x128xf32>
    %33 = math.tanh %32 : vector<8x128xf32>
    %34 = arith.mulf %29, %33 : vector<8x128xf32>
    %c0_12 = arith.constant 0 : index
    %c0_13 = arith.constant 0 : index
    %c0_14 = arith.constant 0 : index
    %35 = vector.load %arg11[%c0_12, %c0_13, %c0_14] : memref<8x8x128xf32, #tpu.memory_space<vmem>>, vector<1x8x128xf32>
    %36 = vector.shape_cast %35 : vector<1x8x128xf32> to vector<8x128xf32>
    %37 = vector.shape_cast %34 : vector<8x128xf32> to vector<1x8x128xf32>
    tpu.vector_store %arg11[%c0_12, %c0_13, %c0_14], %37 {strides = array<i32>} : memref<8x8x128xf32, #tpu.memory_space<vmem>>, vector<1x8x128xf32>,
    %c1 = arith.constant 1 : index
    %c0_15 = arith.constant 0 : index
    %c0_16 = arith.constant 0 : index
    %38 = vector.load %arg2[%c1, %c0_15, %c0_16] : memref<8x8x512xf32, #tpu.memory_space<vmem>>, vector<1x8x512xf32>
    %39 = vector.shape_cast %38 : vector<1x8x512xf32> to vector<8x512xf32>
    %cst_17 = arith.constant dense<0.000000e+00> : vector<8x512xf32>
    %40 = tpu.matmul %34, %3, %cst_17 {dimension_numbers = #tpu.dot_dimension_numbers<[1], [0], [0], [1], [0, 0, 1, 1], [], []>} : vector<8x128xf32>, vector<128x512xf32>, vector<8x512xf32> -> vector<8x512xf32>
    %41 = arith.addf %39, %40 : vector<8x512xf32>
    %42 = vector.extract_strided_slice %41 {offsets = [0, 0], sizes = [8, 128], strides = [1, 1]} : vector<8x512xf32> to vector<8x128xf32>
    %43 = arith.negf %42 : vector<8x128xf32>
    %44 = math.exp %43 : vector<8x128xf32>
    %cst_18 = arith.constant 1.000000e+00 : f32
    %45 = vector.broadcast %cst_18 : f32 to vector<8x128xf32>
    %46 = arith.addf %45, %44 : vector<8x128xf32>
    %47 = arith.divf %45, %46 : vector<8x128xf32>
    %48 = vector.extract_strided_slice %41 {offsets = [0, 128], sizes = [8, 128], strides = [1, 1]} : vector<8x512xf32> to vector<8x128xf32>
    %49 = arith.negf %48 : vector<8x128xf32>
    %50 = math.exp %49 : vector<8x128xf32>
    %cst_19 = arith.constant 1.000000e+00 : f32
    %51 = vector.broadcast %cst_19 : f32 to vector<8x128xf32>
    %52 = arith.addf %51, %50 : vector<8x128xf32>
    %53 = arith.divf %51, %52 : vector<8x128xf32>
    %54 = vector.extract_strided_slice %41 {offsets = [0, 256], sizes = [8, 128], strides = [1, 1]} : vector<8x512xf32> to vector<8x128xf32>
    %55 = math.tanh %54 : vector<8x128xf32>
    %56 = vector.extract_strided_slice %41 {offsets = [0, 384], sizes = [8, 128], strides = [1, 1]} : vector<8x512xf32> to vector<8x128xf32>
    %57 = arith.negf %56 : vector<8x128xf32>
    %58 = math.exp %57 : vector<8x128xf32>
    %cst_20 = arith.constant 1.000000e+00 : f32
    %59 = vector.broadcast %cst_20 : f32 to vector<8x128xf32>
    %60 = arith.addf %59, %58 : vector<8x128xf32>
    %61 = arith.divf %59, %60 : vector<8x128xf32>
    %62 = arith.mulf %53, %32 : vector<8x128xf32>
    %63 = arith.mulf %47, %55 : vector<8x128xf32>
    %64 = arith.addf %62, %63 : vector<8x128xf32>
    %65 = math.tanh %64 : vector<8x128xf32>
    %66 = arith.mulf %61, %65 : vector<8x128xf32>
    %c1_21 = arith.constant 1 : index
    %c0_22 = arith.constant 0 : index
    %c0_23 = arith.constant 0 : index
    %67 = vector.load %arg11[%c1_21, %c0_22, %c0_23] : memref<8x8x128xf32, #tpu.memory_space<vmem>>, vector<1x8x128xf32>
    %68 = vector.shape_cast %67 : vector<1x8x128xf32> to vector<8x128xf32>
    %69 = vector.shape_cast %66 : vector<8x128xf32> to vector<1x8x128xf32>
    tpu.vector_store %arg11[%c1_21, %c0_22, %c0_23], %69 {strides = array<i32>} : memref<8x8x128xf32, #tpu.memory_space<vmem>>, vector<1x8x128xf32>,
    %c2 = arith.constant 2 : index
    %c0_24 = arith.constant 0 : index
    %c0_25 = arith.constant 0 : index
    %70 = vector.load %arg2[%c2, %c0_24, %c0_25] : memref<8x8x512xf32, #tpu.memory_space<vmem>>, vector<1x8x512xf32>
    %71 = vector.shape_cast %70 : vector<1x8x512xf32> to vector<8x512xf32>
    %cst_26 = arith.constant dense<0.000000e+00> : vector<8x512xf32>
    %72 = tpu.matmul %66, %3, %cst_26 {dimension_numbers = #tpu.dot_dimension_numbers<[1], [0], [0], [1], [0, 0, 1, 1], [], []>} : vector<8x128xf32>, vector<128x512xf32>, vector<8x512xf32> -> vector<8x512xf32>
    %73 = arith.addf %71, %72 : vector<8x512xf32>
    %74 = vector.extract_strided_slice %73 {offsets = [0, 0], sizes = [8, 128], strides = [1, 1]} : vector<8x512xf32> to vector<8x128xf32>
    %75 = arith.negf %74 : vector<8x128xf32>
    %76 = math.exp %75 : vector<8x128xf32>
    %cst_27 = arith.constant 1.000000e+00 : f32
    %77 = vector.broadcast %cst_27 : f32 to vector<8x128xf32>
    %78 = arith.addf %77, %76 : vector<8x128xf32>
    %79 = arith.divf %77, %78 : vector<8x128xf32>
    %80 = vector.extract_strided_slice %73 {offsets = [0, 128], sizes = [8, 128], strides = [1, 1]} : vector<8x512xf32> to vector<8x128xf32>
    %81 = arith.negf %80 : vector<8x128xf32>
    %82 = math.exp %81 : vector<8x128xf32>
    %cst_28 = arith.constant 1.000000e+00 : f32
    %83 = vector.broadcast %cst_28 : f32 to vector<8x128xf32>
    %84 = arith.addf %83, %82 : vector<8x128xf32>
    %85 = arith.divf %83, %84 : vector<8x128xf32>
    %86 = vector.extract_strided_slice %73 {offsets = [0, 256], sizes = [8, 128], strides = [1, 1]} : vector<8x512xf32> to vector<8x128xf32>
    %87 = math.tanh %86 : vector<8x128xf32>
    %88 = vector.extract_strided_slice %73 {offsets = [0, 384], sizes = [8, 128], strides = [1, 1]} : vector<8x512xf32> to vector<8x128xf32>
    %89 = arith.negf %88 : vector<8x128xf32>
    %90 = math.exp %89 : vector<8x128xf32>
    %cst_29 = arith.constant 1.000000e+00 : f32
    %91 = vector.broadcast %cst_29 : f32 to vector<8x128xf32>
    %92 = arith.addf %91, %90 : vector<8x128xf32>
    %93 = arith.divf %91, %92 : vector<8x128xf32>
    %94 = arith.mulf %85, %64 : vector<8x128xf32>
    %95 = arith.mulf %79, %87 : vector<8x128xf32>
    %96 = arith.addf %94, %95 : vector<8x128xf32>
    %97 = math.tanh %96 : vector<8x128xf32>
    %98 = arith.mulf %93, %97 : vector<8x128xf32>
    %c2_30 = arith.constant 2 : index
    %c0_31 = arith.constant 0 : index
    %c0_32 = arith.constant 0 : index
    %99 = vector.load %arg11[%c2_30, %c0_31, %c0_32] : memref<8x8x128xf32, #tpu.memory_space<vmem>>, vector<1x8x128xf32>
    %100 = vector.shape_cast %99 : vector<1x8x128xf32> to vector<8x128xf32>
    %101 = vector.shape_cast %98 : vector<8x128xf32> to vector<1x8x128xf32>
    tpu.vector_store %arg11[%c2_30, %c0_31, %c0_32], %101 {strides = array<i32>} : memref<8x8x128xf32, #tpu.memory_space<vmem>>, vector<1x8x128xf32>,
    %c3 = arith.constant 3 : index
    %c0_33 = arith.constant 0 : index
    %c0_34 = arith.constant 0 : index
    %102 = vector.load %arg2[%c3, %c0_33, %c0_34] : memref<8x8x512xf32, #tpu.memory_space<vmem>>, vector<1x8x512xf32>
    %103 = vector.shape_cast %102 : vector<1x8x512xf32> to vector<8x512xf32>
    %cst_35 = arith.constant dense<0.000000e+00> : vector<8x512xf32>
    %104 = tpu.matmul %98, %3, %cst_35 {dimension_numbers = #tpu.dot_dimension_numbers<[1], [0], [0], [1], [0, 0, 1, 1], [], []>} : vector<8x128xf32>, vector<128x512xf32>, vector<8x512xf32> -> vector<8x512xf32>
    %105 = arith.addf %103, %104 : vector<8x512xf32>
    %106 = vector.extract_strided_slice %105 {offsets = [0, 0], sizes = [8, 128], strides = [1, 1]} : vector<8x512xf32> to vector<8x128xf32>
    %107 = arith.negf %106 : vector<8x128xf32>
    %108 = math.exp %107 : vector<8x128xf32>
    %cst_36 = arith.constant 1.000000e+00 : f32
    %109 = vector.broadcast %cst_36 : f32 to vector<8x128xf32>
    %110 = arith.addf %109, %108 : vector<8x128xf32>
    %111 = arith.divf %109, %110 : vector<8x128xf32>
    %112 = vector.extract_strided_slice %105 {offsets = [0, 128], sizes = [8, 128], strides = [1, 1]} : vector<8x512xf32> to vector<8x128xf32>
    %113 = arith.negf %112 : vector<8x128xf32>
    %114 = math.exp %113 : vector<8x128xf32>
    %cst_37 = arith.constant 1.000000e+00 : f32
    %115 = vector.broadcast %cst_37 : f32 to vector<8x128xf32>
    %116 = arith.addf %115, %114 : vector<8x128xf32>
    %117 = arith.divf %115, %116 : vector<8x128xf32>
    %118 = vector.extract_strided_slice %105 {offsets = [0, 256], sizes = [8, 128], strides = [1, 1]} : vector<8x512xf32> to vector<8x128xf32>
    %119 = math.tanh %118 : vector<8x128xf32>
    %120 = vector.extract_strided_slice %105 {offsets = [0, 384], sizes = [8, 128], strides = [1, 1]} : vector<8x512xf32> to vector<8x128xf32>
    %121 = arith.negf %120 : vector<8x128xf32>
    %122 = math.exp %121 : vector<8x128xf32>
    %cst_38 = arith.constant 1.000000e+00 : f32
    %123 = vector.broadcast %cst_38 : f32 to vector<8x128xf32>
    %124 = arith.addf %123, %122 : vector<8x128xf32>
    %125 = arith.divf %123, %124 : vector<8x128xf32>
    %126 = arith.mulf %117, %96 : vector<8x128xf32>
    %127 = arith.mulf %111, %119 : vector<8x128xf32>
    %128 = arith.addf %126, %127 : vector<8x128xf32>
    %129 = math.tanh %128 : vector<8x128xf32>
    %130 = arith.mulf %125, %129 : vector<8x128xf32>
    %c3_39 = arith.constant 3 : index
    %c0_40 = arith.constant 0 : index
    %c0_41 = arith.constant 0 : index
    %131 = vector.load %arg11[%c3_39, %c0_40, %c0_41] : memref<8x8x128xf32, #tpu.memory_space<vmem>>, vector<1x8x128xf32>
    %132 = vector.shape_cast %131 : vector<1x8x128xf32> to vector<8x128xf32>
    %133 = vector.shape_cast %130 : vector<8x128xf32> to vector<1x8x128xf32>
    tpu.vector_store %arg11[%c3_39, %c0_40, %c0_41], %133 {strides = array<i32>} : memref<8x8x128xf32, #tpu.memory_space<vmem>>, vector<1x8x128xf32>,
    %c4 = arith.constant 4 : index
    %c0_42 = arith.constant 0 : index
    %c0_43 = arith.constant 0 : index
    %134 = vector.load %arg2[%c4, %c0_42, %c0_43] : memref<8x8x512xf32, #tpu.memory_space<vmem>>, vector<1x8x512xf32>
    %135 = vector.shape_cast %134 : vector<1x8x512xf32> to vector<8x512xf32>
    %cst_44 = arith.constant dense<0.000000e+00> : vector<8x512xf32>
    %136 = tpu.matmul %130, %3, %cst_44 {dimension_numbers = #tpu.dot_dimension_numbers<[1], [0], [0], [1], [0, 0, 1, 1], [], []>} : vector<8x128xf32>, vector<128x512xf32>, vector<8x512xf32> -> vector<8x512xf32>
    %137 = arith.addf %135, %136 : vector<8x512xf32>
    %138 = vector.extract_strided_slice %137 {offsets = [0, 0], sizes = [8, 128], strides = [1, 1]} : vector<8x512xf32> to vector<8x128xf32>
    %139 = arith.negf %138 : vector<8x128xf32>
    %140 = math.exp %139 : vector<8x128xf32>
    %cst_45 = arith.constant 1.000000e+00 : f32
    %141 = vector.broadcast %cst_45 : f32 to vector<8x128xf32>
    %142 = arith.addf %141, %140 : vector<8x128xf32>
    %143 = arith.divf %141, %142 : vector<8x128xf32>
    %144 = vector.extract_strided_slice %137 {offsets = [0, 128], sizes = [8, 128], strides = [1, 1]} : vector<8x512xf32> to vector<8x128xf32>
    %145 = arith.negf %144 : vector<8x128xf32>
    %146 = math.exp %145 : vector<8x128xf32>
    %cst_46 = arith.constant 1.000000e+00 : f32
    %147 = vector.broadcast %cst_46 : f32 to vector<8x128xf32>
    %148 = arith.addf %147, %146 : vector<8x128xf32>
    %149 = arith.divf %147, %148 : vector<8x128xf32>
    %150 = vector.extract_strided_slice %137 {offsets = [0, 256], sizes = [8, 128], strides = [1, 1]} : vector<8x512xf32> to vector<8x128xf32>
    %151 = math.tanh %150 : vector<8x128xf32>
    %152 = vector.extract_strided_slice %137 {offsets = [0, 384], sizes = [8, 128], strides = [1, 1]} : vector<8x512xf32> to vector<8x128xf32>
    %153 = arith.negf %152 : vector<8x128xf32>
    %154 = math.exp %153 : vector<8x128xf32>
    %cst_47 = arith.constant 1.000000e+00 : f32
    %155 = vector.broadcast %cst_47 : f32 to vector<8x128xf32>
    %156 = arith.addf %155, %154 : vector<8x128xf32>
    %157 = arith.divf %155, %156 : vector<8x128xf32>
    %158 = arith.mulf %149, %128 : vector<8x128xf32>
    %159 = arith.mulf %143, %151 : vector<8x128xf32>
    %160 = arith.addf %158, %159 : vector<8x128xf32>
    %161 = math.tanh %160 : vector<8x128xf32>
    %162 = arith.mulf %157, %161 : vector<8x128xf32>
    %c4_48 = arith.constant 4 : index
    %c0_49 = arith.constant 0 : index
    %c0_50 = arith.constant 0 : index
    %163 = vector.load %arg11[%c4_48, %c0_49, %c0_50] : memref<8x8x128xf32, #tpu.memory_space<vmem>>, vector<1x8x128xf32>
    %164 = vector.shape_cast %163 : vector<1x8x128xf32> to vector<8x128xf32>
    %165 = vector.shape_cast %162 : vector<8x128xf32> to vector<1x8x128xf32>
    tpu.vector_store %arg11[%c4_48, %c0_49, %c0_50], %165 {strides = array<i32>} : memref<8x8x128xf32, #tpu.memory_space<vmem>>, vector<1x8x128xf32>,
    %c5 = arith.constant 5 : index
    %c0_51 = arith.constant 0 : index
    %c0_52 = arith.constant 0 : index
    %166 = vector.load %arg2[%c5, %c0_51, %c0_52] : memref<8x8x512xf32, #tpu.memory_space<vmem>>, vector<1x8x512xf32>
    %167 = vector.shape_cast %166 : vector<1x8x512xf32> to vector<8x512xf32>
    %cst_53 = arith.constant dense<0.000000e+00> : vector<8x512xf32>
    %168 = tpu.matmul %162, %3, %cst_53 {dimension_numbers = #tpu.dot_dimension_numbers<[1], [0], [0], [1], [0, 0, 1, 1], [], []>} : vector<8x128xf32>, vector<128x512xf32>, vector<8x512xf32> -> vector<8x512xf32>
    %169 = arith.addf %167, %168 : vector<8x512xf32>
    %170 = vector.extract_strided_slice %169 {offsets = [0, 0], sizes = [8, 128], strides = [1, 1]} : vector<8x512xf32> to vector<8x128xf32>
    %171 = arith.negf %170 : vector<8x128xf32>
    %172 = math.exp %171 : vector<8x128xf32>
    %cst_54 = arith.constant 1.000000e+00 : f32
    %173 = vector.broadcast %cst_54 : f32 to vector<8x128xf32>
    %174 = arith.addf %173, %172 : vector<8x128xf32>
    %175 = arith.divf %173, %174 : vector<8x128xf32>
    %176 = vector.extract_strided_slice %169 {offsets = [0, 128], sizes = [8, 128], strides = [1, 1]} : vector<8x512xf32> to vector<8x128xf32>
    %177 = arith.negf %176 : vector<8x128xf32>
    %178 = math.exp %177 : vector<8x128xf32>
    %cst_55 = arith.constant 1.000000e+00 : f32
    %179 = vector.broadcast %cst_55 : f32 to vector<8x128xf32>
    %180 = arith.addf %179, %178 : vector<8x128xf32>
    %181 = arith.divf %179, %180 : vector<8x128xf32>
    %182 = vector.extract_strided_slice %169 {offsets = [0, 256], sizes = [8, 128], strides = [1, 1]} : vector<8x512xf32> to vector<8x128xf32>
    %183 = math.tanh %182 : vector<8x128xf32>
    %184 = vector.extract_strided_slice %169 {offsets = [0, 384], sizes = [8, 128], strides = [1, 1]} : vector<8x512xf32> to vector<8x128xf32>
    %185 = arith.negf %184 : vector<8x128xf32>
    %186 = math.exp %185 : vector<8x128xf32>
    %cst_56 = arith.constant 1.000000e+00 : f32
    %187 = vector.broadcast %cst_56 : f32 to vector<8x128xf32>
    %188 = arith.addf %187, %186 : vector<8x128xf32>
    %189 = arith.divf %187, %188 : vector<8x128xf32>
    %190 = arith.mulf %181, %160 : vector<8x128xf32>
    %191 = arith.mulf %175, %183 : vector<8x128xf32>
    %192 = arith.addf %190, %191 : vector<8x128xf32>
    %193 = math.tanh %192 : vector<8x128xf32>
    %194 = arith.mulf %189, %193 : vector<8x128xf32>
    %c5_57 = arith.constant 5 : index
    %c0_58 = arith.constant 0 : index
    %c0_59 = arith.constant 0 : index
    %195 = vector.load %arg11[%c5_57, %c0_58, %c0_59] : memref<8x8x128xf32, #tpu.memory_space<vmem>>, vector<1x8x128xf32>
    %196 = vector.shape_cast %195 : vector<1x8x128xf32> to vector<8x128xf32>
    %197 = vector.shape_cast %194 : vector<8x128xf32> to vector<1x8x128xf32>
    tpu.vector_store %arg11[%c5_57, %c0_58, %c0_59], %197 {strides = array<i32>} : memref<8x8x128xf32, #tpu.memory_space<vmem>>, vector<1x8x128xf32>,
    %c6 = arith.constant 6 : index
    %c0_60 = arith.constant 0 : index
    %c0_61 = arith.constant 0 : index
    %198 = vector.load %arg2[%c6, %c0_60, %c0_61] : memref<8x8x512xf32, #tpu.memory_space<vmem>>, vector<1x8x512xf32>
    %199 = vector.shape_cast %198 : vector<1x8x512xf32> to vector<8x512xf32>
    %cst_62 = arith.constant dense<0.000000e+00> : vector<8x512xf32>
    %200 = tpu.matmul %194, %3, %cst_62 {dimension_numbers = #tpu.dot_dimension_numbers<[1], [0], [0], [1], [0, 0, 1, 1], [], []>} : vector<8x128xf32>, vector<128x512xf32>, vector<8x512xf32> -> vector<8x512xf32>
    %201 = arith.addf %199, %200 : vector<8x512xf32>
    %202 = vector.extract_strided_slice %201 {offsets = [0, 0], sizes = [8, 128], strides = [1, 1]} : vector<8x512xf32> to vector<8x128xf32>
    %203 = arith.negf %202 : vector<8x128xf32>
    %204 = math.exp %203 : vector<8x128xf32>
    %cst_63 = arith.constant 1.000000e+00 : f32
    %205 = vector.broadcast %cst_63 : f32 to vector<8x128xf32>
    %206 = arith.addf %205, %204 : vector<8x128xf32>
    %207 = arith.divf %205, %206 : vector<8x128xf32>
    %208 = vector.extract_strided_slice %201 {offsets = [0, 128], sizes = [8, 128], strides = [1, 1]} : vector<8x512xf32> to vector<8x128xf32>
    %209 = arith.negf %208 : vector<8x128xf32>
    %210 = math.exp %209 : vector<8x128xf32>
    %cst_64 = arith.constant 1.000000e+00 : f32
    %211 = vector.broadcast %cst_64 : f32 to vector<8x128xf32>
    %212 = arith.addf %211, %210 : vector<8x128xf32>
    %213 = arith.divf %211, %212 : vector<8x128xf32>
    %214 = vector.extract_strided_slice %201 {offsets = [0, 256], sizes = [8, 128], strides = [1, 1]} : vector<8x512xf32> to vector<8x128xf32>
    %215 = math.tanh %214 : vector<8x128xf32>
    %216 = vector.extract_strided_slice %201 {offsets = [0, 384], sizes = [8, 128], strides = [1, 1]} : vector<8x512xf32> to vector<8x128xf32>
    %217 = arith.negf %216 : vector<8x128xf32>
    %218 = math.exp %217 : vector<8x128xf32>
    %cst_65 = arith.constant 1.000000e+00 : f32
    %219 = vector.broadcast %cst_65 : f32 to vector<8x128xf32>
    %220 = arith.addf %219, %218 : vector<8x128xf32>
    %221 = arith.divf %219, %220 : vector<8x128xf32>
    %222 = arith.mulf %213, %192 : vector<8x128xf32>
    %223 = arith.mulf %207, %215 : vector<8x128xf32>
    %224 = arith.addf %222, %223 : vector<8x128xf32>
    %225 = math.tanh %224 : vector<8x128xf32>
    %226 = arith.mulf %221, %225 : vector<8x128xf32>
    %c6_66 = arith.constant 6 : index
    %c0_67 = arith.constant 0 : index
    %c0_68 = arith.constant 0 : index
    %227 = vector.load %arg11[%c6_66, %c0_67, %c0_68] : memref<8x8x128xf32, #tpu.memory_space<vmem>>, vector<1x8x128xf32>
    %228 = vector.shape_cast %227 : vector<1x8x128xf32> to vector<8x128xf32>
    %229 = vector.shape_cast %226 : vector<8x128xf32> to vector<1x8x128xf32>
    tpu.vector_store %arg11[%c6_66, %c0_67, %c0_68], %229 {strides = array<i32>} : memref<8x8x128xf32, #tpu.memory_space<vmem>>, vector<1x8x128xf32>,
    %c7 = arith.constant 7 : index
    %c0_69 = arith.constant 0 : index
    %c0_70 = arith.constant 0 : index
    %230 = vector.load %arg2[%c7, %c0_69, %c0_70] : memref<8x8x512xf32, #tpu.memory_space<vmem>>, vector<1x8x512xf32>
    %231 = vector.shape_cast %230 : vector<1x8x512xf32> to vector<8x512xf32>
    %cst_71 = arith.constant dense<0.000000e+00> : vector<8x512xf32>
    %232 = tpu.matmul %226, %3, %cst_71 {dimension_numbers = #tpu.dot_dimension_numbers<[1], [0], [0], [1], [0, 0, 1, 1], [], []>} : vector<8x128xf32>, vector<128x512xf32>, vector<8x512xf32> -> vector<8x512xf32>
    %233 = arith.addf %231, %232 : vector<8x512xf32>
    %234 = vector.extract_strided_slice %233 {offsets = [0, 0], sizes = [8, 128], strides = [1, 1]} : vector<8x512xf32> to vector<8x128xf32>
    %235 = arith.negf %234 : vector<8x128xf32>
    %236 = math.exp %235 : vector<8x128xf32>
    %cst_72 = arith.constant 1.000000e+00 : f32
    %237 = vector.broadcast %cst_72 : f32 to vector<8x128xf32>
    %238 = arith.addf %237, %236 : vector<8x128xf32>
    %239 = arith.divf %237, %238 : vector<8x128xf32>
    %240 = vector.extract_strided_slice %233 {offsets = [0, 128], sizes = [8, 128], strides = [1, 1]} : vector<8x512xf32> to vector<8x128xf32>
    %241 = arith.negf %240 : vector<8x128xf32>
    %242 = math.exp %241 : vector<8x128xf32>
    %cst_73 = arith.constant 1.000000e+00 : f32
    %243 = vector.broadcast %cst_73 : f32 to vector<8x128xf32>
    %244 = arith.addf %243, %242 : vector<8x128xf32>
    %245 = arith.divf %243, %244 : vector<8x128xf32>
    %246 = vector.extract_strided_slice %233 {offsets = [0, 256], sizes = [8, 128], strides = [1, 1]} : vector<8x512xf32> to vector<8x128xf32>
    %247 = math.tanh %246 : vector<8x128xf32>
    %248 = vector.extract_strided_slice %233 {offsets = [0, 384], sizes = [8, 128], strides = [1, 1]} : vector<8x512xf32> to vector<8x128xf32>
    %249 = arith.negf %248 : vector<8x128xf32>
    %250 = math.exp %249 : vector<8x128xf32>
    %cst_74 = arith.constant 1.000000e+00 : f32
    %251 = vector.broadcast %cst_74 : f32 to vector<8x128xf32>
    %252 = arith.addf %251, %250 : vector<8x128xf32>
    %253 = arith.divf %251, %252 : vector<8x128xf32>
    %254 = arith.mulf %245, %224 : vector<8x128xf32>
    %255 = arith.mulf %239, %247 : vector<8x128xf32>
    %256 = arith.addf %254, %255 : vector<8x128xf32>
    %257 = math.tanh %256 : vector<8x128xf32>
    %258 = arith.mulf %253, %257 : vector<8x128xf32>
    %c7_75 = arith.constant 7 : index
    %c0_76 = arith.constant 0 : index
    %c0_77 = arith.constant 0 : index
    %259 = vector.load %arg11[%c7_75, %c0_76, %c0_77] : memref<8x8x128xf32, #tpu.memory_space<vmem>>, vector<1x8x128xf32>
    %260 = vector.shape_cast %259 : vector<1x8x128xf32> to vector<8x128xf32>
    %261 = vector.shape_cast %258 : vector<8x128xf32> to vector<1x8x128xf32>
    tpu.vector_store %arg11[%c7_75, %c0_76, %c0_77], %261 {strides = array<i32>} : memref<8x8x128xf32, #tpu.memory_space<vmem>>, vector<1x8x128xf32>,
    %c0_78 = arith.constant 0 : index
    %c0_79 = arith.constant 0 : index
    %262 = vector.load %arg9[%c0_78, %c0_79] : memref<8x128xf32, #tpu.memory_space<vmem>>, vector<8x128xf32>
    tpu.vector_store %arg9[%c0_78, %c0_79], %258 {strides = array<i32>} : memref<8x128xf32, #tpu.memory_space<vmem>>, vector<8x128xf32>,
    %c0_80 = arith.constant 0 : index
    %c0_81 = arith.constant 0 : index
    %263 = vector.load %arg10[%c0_80, %c0_81] : memref<8x128xf32, #tpu.memory_space<vmem>>, vector<8x128xf32>
    tpu.vector_store %arg10[%c0_80, %c0_81], %256 {strides = array<i32>} : memref<8x128xf32, #tpu.memory_space<vmem>>, vector<8x128xf32>,
    %c0_82 = arith.constant 0 : index
    %c0_83 = arith.constant 0 : index
    %c0_84 = arith.constant 0 : index
    %264 = vector.load %arg11[%c0_82, %c0_83, %c0_84] : memref<8x8x128xf32, #tpu.memory_space<vmem>>, vector<8x8x128xf32>
    %c0_85 = arith.constant 0 : index
    %c0_86 = arith.constant 0 : index
    %c0_87 = arith.constant 0 : index
    %265 = vector.load %arg6[%c0_85, %c0_86, %c0_87] : memref<8x8x128xf32, #tpu.memory_space<vmem>>, vector<8x8x128xf32>
    tpu.vector_store %arg6[%c0_85, %c0_86, %c0_87], %264 {strides = array<i32>} : memref<8x8x128xf32, #tpu.memory_space<vmem>>, vector<8x8x128xf32>,
    %c1_i32 = arith.constant 1 : i32
    %266 = arith.cmpi eq, %arg1, %c1_i32 : i32
    %267 = arith.extui %266 : i1 to i32
    %c0_i32_88 = arith.constant 0 : i32
    %268 = arith.cmpi ne, %267, %c0_i32_88 : i32
    scf.if %268 {
      %c0_89 = arith.constant 0 : index
      %c0_90 = arith.constant 0 : index
      %269 = vector.load %arg7[%c0_89, %c0_90] : memref<8x128xf32, #tpu.memory_space<vmem>>, vector<8x128xf32>
      tpu.vector_store %arg7[%c0_89, %c0_90], %258 {strides = array<i32>} : memref<8x128xf32, #tpu.memory_space<vmem>>, vector<8x128xf32>,
      %c0_91 = arith.constant 0 : index
      %c0_92 = arith.constant 0 : index
      %270 = vector.load %arg8[%c0_91, %c0_92] : memref<8x128xf32, #tpu.memory_space<vmem>>, vector<8x128xf32>
      tpu.vector_store %arg8[%c0_91, %c0_92], %256 {strides = array<i32>} : memref<8x128xf32, #tpu.memory_space<vmem>>, vector<8x128xf32>,
    } else {
    }
    return
  }
  func.func @transform_0(%arg0: i32, %arg1: i32) -> (i32, i32, i32) {
    %c0_i32 = arith.constant 0 : i32
    %c0_i32_0 = arith.constant 0 : i32
    return %arg1, %arg0, %c0_i32 : i32, i32, i32
  }
  func.func @transform_1(%arg0: i32, %arg1: i32) -> (i32, i32) {
    %c0_i32 = arith.constant 0 : i32
    %c0_i32_0 = arith.constant 0 : i32
    %c0_i32_1 = arith.constant 0 : i32
    return %c0_i32, %c0_i32_0 : i32, i32
  }
  func.func @transform_2(%arg0: i32, %arg1: i32) -> (i32, i32) {
    %c0_i32 = arith.constant 0 : i32
    %c0_i32_0 = arith.constant 0 : i32
    return %arg0, %c0_i32 : i32, i32
  }
  func.func @transform_3(%arg0: i32, %arg1: i32) -> (i32, i32) {
    %c0_i32 = arith.constant 0 : i32
    %c0_i32_0 = arith.constant 0 : i32
    return %arg0, %c0_i32 : i32, i32
  }
  func.func @transform_4(%arg0: i32, %arg1: i32) -> (i32, i32, i32) {
    %c0_i32 = arith.constant 0 : i32
    %c0_i32_0 = arith.constant 0 : i32
    return %arg1, %arg0, %c0_i32 : i32, i32, i32
  }
  func.func @transform_5(%arg0: i32, %arg1: i32) -> (i32, i32) {
    %c0_i32 = arith.constant 0 : i32
    %c0_i32_0 = arith.constant 0 : i32
    return %arg0, %c0_i32 : i32, i32
  }
  func.func @transform_6(%arg0: i32, %arg1: i32) -> (i32, i32) {
    %c0_i32 = arith.constant 0 : i32
    %c0_i32_0 = arith.constant 0 : i32
    return %arg0, %c0_i32 : i32, i32
  }
}

module attributes {stable_mosaic.version = 11 : i64} {
  func.func @kernel(%arg0: i32, %arg1: i32, %arg2: memref<8x8x128xf32, #tpu.memory_space<vmem>>, %arg3: memref<128x512xf32, #tpu.memory_space<vmem>>, %arg4: memref<1x512xf32, #tpu.memory_space<vmem>>, %arg5: memref<128x512xf32, #tpu.memory_space<vmem>>, %arg6: memref<8x128xf32, #tpu.memory_space<vmem>>, %arg7: memref<8x128xf32, #tpu.memory_space<vmem>>, %arg8: memref<8x8x128xf32, #tpu.memory_space<vmem>>, %arg9: memref<8x128xf32, #tpu.memory_space<vmem>>, %arg10: memref<8x128xf32, #tpu.memory_space<vmem>>, %arg11: memref<8x128xf32, #tpu.memory_space<vmem>>, %arg12: memref<8x128xf32, #tpu.memory_space<vmem>>, %arg13: memref<8x8x128xf32, #tpu.memory_space<vmem>>, %arg14: memref<8x8x512xf32, #tpu.memory_space<vmem>>) attributes {dimension_semantics = [#tpu.dimension_semantics<parallel>, #tpu.dimension_semantics<arbitrary>], iteration_bounds = array<i64: 1, 2>, scalar_prefetch = 0 : i64, scratch_operands = 4 : i64, tpu.core_type = #tpu.core_type<tc>, window_params = [{transform_indices = @transform_0, window_bounds = array<i64: 8, 8, 128>}, {pipeline_mode = #tpu.pipeline_mode<synchronous>, transform_indices = @transform_1, window_bounds = array<i64: 128, 512>}, {pipeline_mode = #tpu.pipeline_mode<synchronous>, transform_indices = @transform_2, window_bounds = array<i64: 1, 512>}, {pipeline_mode = #tpu.pipeline_mode<synchronous>, transform_indices = @transform_3, window_bounds = array<i64: 128, 512>}, {transform_indices = @transform_4, window_bounds = array<i64: 8, 128>}, {transform_indices = @transform_5, window_bounds = array<i64: 8, 128>}, {transform_indices = @transform_6, window_bounds = array<i64: 8, 8, 128>}, {transform_indices = @transform_7, window_bounds = array<i64: 8, 128>}, {transform_indices = @transform_8, window_bounds = array<i64: 8, 128>}]} {
    %c0_i32 = arith.constant 0 : i32
    %0 = arith.cmpi eq, %arg1, %c0_i32 : i32
    %1 = arith.extui %0 : i1 to i32
    %c0_i32_0 = arith.constant 0 : i32
    %2 = arith.cmpi ne, %1, %c0_i32_0 : i32
    scf.if %2 {
      %c0_100 = arith.constant 0 : index
      %c0_101 = arith.constant 0 : index
      %279 = vector.load %arg6[%c0_100, %c0_101] : memref<8x128xf32, #tpu.memory_space<vmem>>, vector<8x128xf32>
      %c0_102 = arith.constant 0 : index
      %c0_103 = arith.constant 0 : index
      %280 = vector.load %arg11[%c0_102, %c0_103] : memref<8x128xf32, #tpu.memory_space<vmem>>, vector<8x128xf32>
      tpu.vector_store %arg11[%c0_102, %c0_103], %279 {strides = array<i32>} : memref<8x128xf32, #tpu.memory_space<vmem>>, vector<8x128xf32>,
      %c0_104 = arith.constant 0 : index
      %c0_105 = arith.constant 0 : index
      %281 = vector.load %arg7[%c0_104, %c0_105] : memref<8x128xf32, #tpu.memory_space<vmem>>, vector<8x128xf32>
      %c0_106 = arith.constant 0 : index
      %c0_107 = arith.constant 0 : index
      %282 = vector.load %arg12[%c0_106, %c0_107] : memref<8x128xf32, #tpu.memory_space<vmem>>, vector<8x128xf32>
      tpu.vector_store %arg12[%c0_106, %c0_107], %281 {strides = array<i32>} : memref<8x128xf32, #tpu.memory_space<vmem>>, vector<8x128xf32>,
    } else {
    }
    %c0 = arith.constant 0 : index
    %c0_1 = arith.constant 0 : index
    %3 = vector.load %arg3[%c0, %c0_1] : memref<128x512xf32, #tpu.memory_space<vmem>>, vector<128x512xf32>
    %c0_2 = arith.constant 0 : index
    %c0_3 = arith.constant 0 : index
    %c0_4 = arith.constant 0 : index
    %4 = vector.load %arg2[%c0_2, %c0_3, %c0_4] : memref<8x8x128xf32, #tpu.memory_space<vmem>>, vector<8x8x128xf32>
    %5 = vector.shape_cast %4 : vector<8x8x128xf32> to vector<64x128xf32>
    %cst = arith.constant dense<0.000000e+00> : vector<64x512xf32>
    %6 = tpu.matmul %5, %3, %cst {dimension_numbers = #tpu.dot_dimension_numbers<[1], [0], [0], [1], [0, 0, 1, 1], [], []>} : vector<64x128xf32>, vector<128x512xf32>, vector<64x512xf32> -> vector<64x512xf32>
    %c0_5 = arith.constant 0 : index
    %c0_6 = arith.constant 0 : index
    %7 = vector.load %arg4[%c0_5, %c0_6] : memref<1x512xf32, #tpu.memory_space<vmem>>, vector<1x512xf32>
    %8 = vector.broadcast %7 : vector<1x512xf32> to vector<64x512xf32>
    %9 = arith.addf %6, %8 : vector<64x512xf32>
    %10 = vector.shape_cast %9 : vector<64x512xf32> to vector<8x8x512xf32>
    %c0_7 = arith.constant 0 : index
    %c0_8 = arith.constant 0 : index
    %c0_9 = arith.constant 0 : index
    %11 = vector.load %arg14[%c0_7, %c0_8, %c0_9] : memref<8x8x512xf32, #tpu.memory_space<vmem>>, vector<8x8x512xf32>
    tpu.vector_store %arg14[%c0_7, %c0_8, %c0_9], %10 {strides = array<i32>} : memref<8x8x512xf32, #tpu.memory_space<vmem>>, vector<8x8x512xf32>,
    %c0_10 = arith.constant 0 : index
    %c0_11 = arith.constant 0 : index
    %12 = vector.load %arg5[%c0_10, %c0_11] : memref<128x512xf32, #tpu.memory_space<vmem>>, vector<128x512xf32>
    %c0_12 = arith.constant 0 : index
    %c0_13 = arith.constant 0 : index
    %13 = vector.load %arg11[%c0_12, %c0_13] : memref<8x128xf32, #tpu.memory_space<vmem>>, vector<8x128xf32>
    %c0_14 = arith.constant 0 : index
    %c0_15 = arith.constant 0 : index
    %14 = vector.load %arg12[%c0_14, %c0_15] : memref<8x128xf32, #tpu.memory_space<vmem>>, vector<8x128xf32>
    %c0_16 = arith.constant 0 : index
    %c0_17 = arith.constant 0 : index
    %c0_18 = arith.constant 0 : index
    %15 = vector.load %arg14[%c0_16, %c0_17, %c0_18] : memref<8x8x512xf32, #tpu.memory_space<vmem>>, vector<1x8x512xf32>
    %16 = vector.shape_cast %15 : vector<1x8x512xf32> to vector<8x512xf32>
    %cst_19 = arith.constant dense<0.000000e+00> : vector<8x512xf32>
    %17 = tpu.matmul %13, %12, %cst_19 {dimension_numbers = #tpu.dot_dimension_numbers<[1], [0], [0], [1], [0, 0, 1, 1], [], []>} : vector<8x128xf32>, vector<128x512xf32>, vector<8x512xf32> -> vector<8x512xf32>
    %18 = arith.addf %16, %17 : vector<8x512xf32>
    %19 = vector.extract_strided_slice %18 {offsets = [0, 0], sizes = [8, 128], strides = [1, 1]} : vector<8x512xf32> to vector<8x128xf32>
    %20 = arith.negf %19 : vector<8x128xf32>
    %21 = math.exp %20 : vector<8x128xf32>
    %cst_20 = arith.constant 1.000000e+00 : f32
    %22 = vector.broadcast %cst_20 : f32 to vector<8x128xf32>
    %23 = arith.addf %22, %21 : vector<8x128xf32>
    %24 = arith.divf %22, %23 : vector<8x128xf32>
    %25 = vector.extract_strided_slice %18 {offsets = [0, 128], sizes = [8, 128], strides = [1, 1]} : vector<8x512xf32> to vector<8x128xf32>
    %26 = arith.negf %25 : vector<8x128xf32>
    %27 = math.exp %26 : vector<8x128xf32>
    %cst_21 = arith.constant 1.000000e+00 : f32
    %28 = vector.broadcast %cst_21 : f32 to vector<8x128xf32>
    %29 = arith.addf %28, %27 : vector<8x128xf32>
    %30 = arith.divf %28, %29 : vector<8x128xf32>
    %31 = vector.extract_strided_slice %18 {offsets = [0, 256], sizes = [8, 128], strides = [1, 1]} : vector<8x512xf32> to vector<8x128xf32>
    %32 = math.tanh %31 : vector<8x128xf32>
    %33 = vector.extract_strided_slice %18 {offsets = [0, 384], sizes = [8, 128], strides = [1, 1]} : vector<8x512xf32> to vector<8x128xf32>
    %34 = arith.negf %33 : vector<8x128xf32>
    %35 = math.exp %34 : vector<8x128xf32>
    %cst_22 = arith.constant 1.000000e+00 : f32
    %36 = vector.broadcast %cst_22 : f32 to vector<8x128xf32>
    %37 = arith.addf %36, %35 : vector<8x128xf32>
    %38 = arith.divf %36, %37 : vector<8x128xf32>
    %39 = arith.mulf %30, %14 : vector<8x128xf32>
    %40 = arith.mulf %24, %32 : vector<8x128xf32>
    %41 = arith.addf %39, %40 : vector<8x128xf32>
    %42 = math.tanh %41 : vector<8x128xf32>
    %43 = arith.mulf %38, %42 : vector<8x128xf32>
    %c0_23 = arith.constant 0 : index
    %c0_24 = arith.constant 0 : index
    %c0_25 = arith.constant 0 : index
    %44 = vector.load %arg13[%c0_23, %c0_24, %c0_25] : memref<8x8x128xf32, #tpu.memory_space<vmem>>, vector<1x8x128xf32>
    %45 = vector.shape_cast %44 : vector<1x8x128xf32> to vector<8x128xf32>
    %46 = vector.shape_cast %43 : vector<8x128xf32> to vector<1x8x128xf32>
    tpu.vector_store %arg13[%c0_23, %c0_24, %c0_25], %46 {strides = array<i32>} : memref<8x8x128xf32, #tpu.memory_space<vmem>>, vector<1x8x128xf32>,
    %c1 = arith.constant 1 : index
    %c0_26 = arith.constant 0 : index
    %c0_27 = arith.constant 0 : index
    %47 = vector.load %arg14[%c1, %c0_26, %c0_27] : memref<8x8x512xf32, #tpu.memory_space<vmem>>, vector<1x8x512xf32>
    %48 = vector.shape_cast %47 : vector<1x8x512xf32> to vector<8x512xf32>
    %cst_28 = arith.constant dense<0.000000e+00> : vector<8x512xf32>
    %49 = tpu.matmul %43, %12, %cst_28 {dimension_numbers = #tpu.dot_dimension_numbers<[1], [0], [0], [1], [0, 0, 1, 1], [], []>} : vector<8x128xf32>, vector<128x512xf32>, vector<8x512xf32> -> vector<8x512xf32>
    %50 = arith.addf %48, %49 : vector<8x512xf32>
    %51 = vector.extract_strided_slice %50 {offsets = [0, 0], sizes = [8, 128], strides = [1, 1]} : vector<8x512xf32> to vector<8x128xf32>
    %52 = arith.negf %51 : vector<8x128xf32>
    %53 = math.exp %52 : vector<8x128xf32>
    %cst_29 = arith.constant 1.000000e+00 : f32
    %54 = vector.broadcast %cst_29 : f32 to vector<8x128xf32>
    %55 = arith.addf %54, %53 : vector<8x128xf32>
    %56 = arith.divf %54, %55 : vector<8x128xf32>
    %57 = vector.extract_strided_slice %50 {offsets = [0, 128], sizes = [8, 128], strides = [1, 1]} : vector<8x512xf32> to vector<8x128xf32>
    %58 = arith.negf %57 : vector<8x128xf32>
    %59 = math.exp %58 : vector<8x128xf32>
    %cst_30 = arith.constant 1.000000e+00 : f32
    %60 = vector.broadcast %cst_30 : f32 to vector<8x128xf32>
    %61 = arith.addf %60, %59 : vector<8x128xf32>
    %62 = arith.divf %60, %61 : vector<8x128xf32>
    %63 = vector.extract_strided_slice %50 {offsets = [0, 256], sizes = [8, 128], strides = [1, 1]} : vector<8x512xf32> to vector<8x128xf32>
    %64 = math.tanh %63 : vector<8x128xf32>
    %65 = vector.extract_strided_slice %50 {offsets = [0, 384], sizes = [8, 128], strides = [1, 1]} : vector<8x512xf32> to vector<8x128xf32>
    %66 = arith.negf %65 : vector<8x128xf32>
    %67 = math.exp %66 : vector<8x128xf32>
    %cst_31 = arith.constant 1.000000e+00 : f32
    %68 = vector.broadcast %cst_31 : f32 to vector<8x128xf32>
    %69 = arith.addf %68, %67 : vector<8x128xf32>
    %70 = arith.divf %68, %69 : vector<8x128xf32>
    %71 = arith.mulf %62, %41 : vector<8x128xf32>
    %72 = arith.mulf %56, %64 : vector<8x128xf32>
    %73 = arith.addf %71, %72 : vector<8x128xf32>
    %74 = math.tanh %73 : vector<8x128xf32>
    %75 = arith.mulf %70, %74 : vector<8x128xf32>
    %c1_32 = arith.constant 1 : index
    %c0_33 = arith.constant 0 : index
    %c0_34 = arith.constant 0 : index
    %76 = vector.load %arg13[%c1_32, %c0_33, %c0_34] : memref<8x8x128xf32, #tpu.memory_space<vmem>>, vector<1x8x128xf32>
    %77 = vector.shape_cast %76 : vector<1x8x128xf32> to vector<8x128xf32>
    %78 = vector.shape_cast %75 : vector<8x128xf32> to vector<1x8x128xf32>
    tpu.vector_store %arg13[%c1_32, %c0_33, %c0_34], %78 {strides = array<i32>} : memref<8x8x128xf32, #tpu.memory_space<vmem>>, vector<1x8x128xf32>,
    %c2 = arith.constant 2 : index
    %c0_35 = arith.constant 0 : index
    %c0_36 = arith.constant 0 : index
    %79 = vector.load %arg14[%c2, %c0_35, %c0_36] : memref<8x8x512xf32, #tpu.memory_space<vmem>>, vector<1x8x512xf32>
    %80 = vector.shape_cast %79 : vector<1x8x512xf32> to vector<8x512xf32>
    %cst_37 = arith.constant dense<0.000000e+00> : vector<8x512xf32>
    %81 = tpu.matmul %75, %12, %cst_37 {dimension_numbers = #tpu.dot_dimension_numbers<[1], [0], [0], [1], [0, 0, 1, 1], [], []>} : vector<8x128xf32>, vector<128x512xf32>, vector<8x512xf32> -> vector<8x512xf32>
    %82 = arith.addf %80, %81 : vector<8x512xf32>
    %83 = vector.extract_strided_slice %82 {offsets = [0, 0], sizes = [8, 128], strides = [1, 1]} : vector<8x512xf32> to vector<8x128xf32>
    %84 = arith.negf %83 : vector<8x128xf32>
    %85 = math.exp %84 : vector<8x128xf32>
    %cst_38 = arith.constant 1.000000e+00 : f32
    %86 = vector.broadcast %cst_38 : f32 to vector<8x128xf32>
    %87 = arith.addf %86, %85 : vector<8x128xf32>
    %88 = arith.divf %86, %87 : vector<8x128xf32>
    %89 = vector.extract_strided_slice %82 {offsets = [0, 128], sizes = [8, 128], strides = [1, 1]} : vector<8x512xf32> to vector<8x128xf32>
    %90 = arith.negf %89 : vector<8x128xf32>
    %91 = math.exp %90 : vector<8x128xf32>
    %cst_39 = arith.constant 1.000000e+00 : f32
    %92 = vector.broadcast %cst_39 : f32 to vector<8x128xf32>
    %93 = arith.addf %92, %91 : vector<8x128xf32>
    %94 = arith.divf %92, %93 : vector<8x128xf32>
    %95 = vector.extract_strided_slice %82 {offsets = [0, 256], sizes = [8, 128], strides = [1, 1]} : vector<8x512xf32> to vector<8x128xf32>
    %96 = math.tanh %95 : vector<8x128xf32>
    %97 = vector.extract_strided_slice %82 {offsets = [0, 384], sizes = [8, 128], strides = [1, 1]} : vector<8x512xf32> to vector<8x128xf32>
    %98 = arith.negf %97 : vector<8x128xf32>
    %99 = math.exp %98 : vector<8x128xf32>
    %cst_40 = arith.constant 1.000000e+00 : f32
    %100 = vector.broadcast %cst_40 : f32 to vector<8x128xf32>
    %101 = arith.addf %100, %99 : vector<8x128xf32>
    %102 = arith.divf %100, %101 : vector<8x128xf32>
    %103 = arith.mulf %94, %73 : vector<8x128xf32>
    %104 = arith.mulf %88, %96 : vector<8x128xf32>
    %105 = arith.addf %103, %104 : vector<8x128xf32>
    %106 = math.tanh %105 : vector<8x128xf32>
    %107 = arith.mulf %102, %106 : vector<8x128xf32>
    %c2_41 = arith.constant 2 : index
    %c0_42 = arith.constant 0 : index
    %c0_43 = arith.constant 0 : index
    %108 = vector.load %arg13[%c2_41, %c0_42, %c0_43] : memref<8x8x128xf32, #tpu.memory_space<vmem>>, vector<1x8x128xf32>
    %109 = vector.shape_cast %108 : vector<1x8x128xf32> to vector<8x128xf32>
    %110 = vector.shape_cast %107 : vector<8x128xf32> to vector<1x8x128xf32>
    tpu.vector_store %arg13[%c2_41, %c0_42, %c0_43], %110 {strides = array<i32>} : memref<8x8x128xf32, #tpu.memory_space<vmem>>, vector<1x8x128xf32>,
    %c3 = arith.constant 3 : index
    %c0_44 = arith.constant 0 : index
    %c0_45 = arith.constant 0 : index
    %111 = vector.load %arg14[%c3, %c0_44, %c0_45] : memref<8x8x512xf32, #tpu.memory_space<vmem>>, vector<1x8x512xf32>
    %112 = vector.shape_cast %111 : vector<1x8x512xf32> to vector<8x512xf32>
    %cst_46 = arith.constant dense<0.000000e+00> : vector<8x512xf32>
    %113 = tpu.matmul %107, %12, %cst_46 {dimension_numbers = #tpu.dot_dimension_numbers<[1], [0], [0], [1], [0, 0, 1, 1], [], []>} : vector<8x128xf32>, vector<128x512xf32>, vector<8x512xf32> -> vector<8x512xf32>
    %114 = arith.addf %112, %113 : vector<8x512xf32>
    %115 = vector.extract_strided_slice %114 {offsets = [0, 0], sizes = [8, 128], strides = [1, 1]} : vector<8x512xf32> to vector<8x128xf32>
    %116 = arith.negf %115 : vector<8x128xf32>
    %117 = math.exp %116 : vector<8x128xf32>
    %cst_47 = arith.constant 1.000000e+00 : f32
    %118 = vector.broadcast %cst_47 : f32 to vector<8x128xf32>
    %119 = arith.addf %118, %117 : vector<8x128xf32>
    %120 = arith.divf %118, %119 : vector<8x128xf32>
    %121 = vector.extract_strided_slice %114 {offsets = [0, 128], sizes = [8, 128], strides = [1, 1]} : vector<8x512xf32> to vector<8x128xf32>
    %122 = arith.negf %121 : vector<8x128xf32>
    %123 = math.exp %122 : vector<8x128xf32>
    %cst_48 = arith.constant 1.000000e+00 : f32
    %124 = vector.broadcast %cst_48 : f32 to vector<8x128xf32>
    %125 = arith.addf %124, %123 : vector<8x128xf32>
    %126 = arith.divf %124, %125 : vector<8x128xf32>
    %127 = vector.extract_strided_slice %114 {offsets = [0, 256], sizes = [8, 128], strides = [1, 1]} : vector<8x512xf32> to vector<8x128xf32>
    %128 = math.tanh %127 : vector<8x128xf32>
    %129 = vector.extract_strided_slice %114 {offsets = [0, 384], sizes = [8, 128], strides = [1, 1]} : vector<8x512xf32> to vector<8x128xf32>
    %130 = arith.negf %129 : vector<8x128xf32>
    %131 = math.exp %130 : vector<8x128xf32>
    %cst_49 = arith.constant 1.000000e+00 : f32
    %132 = vector.broadcast %cst_49 : f32 to vector<8x128xf32>
    %133 = arith.addf %132, %131 : vector<8x128xf32>
    %134 = arith.divf %132, %133 : vector<8x128xf32>
    %135 = arith.mulf %126, %105 : vector<8x128xf32>
    %136 = arith.mulf %120, %128 : vector<8x128xf32>
    %137 = arith.addf %135, %136 : vector<8x128xf32>
    %138 = math.tanh %137 : vector<8x128xf32>
    %139 = arith.mulf %134, %138 : vector<8x128xf32>
    %c3_50 = arith.constant 3 : index
    %c0_51 = arith.constant 0 : index
    %c0_52 = arith.constant 0 : index
    %140 = vector.load %arg13[%c3_50, %c0_51, %c0_52] : memref<8x8x128xf32, #tpu.memory_space<vmem>>, vector<1x8x128xf32>
    %141 = vector.shape_cast %140 : vector<1x8x128xf32> to vector<8x128xf32>
    %142 = vector.shape_cast %139 : vector<8x128xf32> to vector<1x8x128xf32>
    tpu.vector_store %arg13[%c3_50, %c0_51, %c0_52], %142 {strides = array<i32>} : memref<8x8x128xf32, #tpu.memory_space<vmem>>, vector<1x8x128xf32>,
    %c4 = arith.constant 4 : index
    %c0_53 = arith.constant 0 : index
    %c0_54 = arith.constant 0 : index
    %143 = vector.load %arg14[%c4, %c0_53, %c0_54] : memref<8x8x512xf32, #tpu.memory_space<vmem>>, vector<1x8x512xf32>
    %144 = vector.shape_cast %143 : vector<1x8x512xf32> to vector<8x512xf32>
    %cst_55 = arith.constant dense<0.000000e+00> : vector<8x512xf32>
    %145 = tpu.matmul %139, %12, %cst_55 {dimension_numbers = #tpu.dot_dimension_numbers<[1], [0], [0], [1], [0, 0, 1, 1], [], []>} : vector<8x128xf32>, vector<128x512xf32>, vector<8x512xf32> -> vector<8x512xf32>
    %146 = arith.addf %144, %145 : vector<8x512xf32>
    %147 = vector.extract_strided_slice %146 {offsets = [0, 0], sizes = [8, 128], strides = [1, 1]} : vector<8x512xf32> to vector<8x128xf32>
    %148 = arith.negf %147 : vector<8x128xf32>
    %149 = math.exp %148 : vector<8x128xf32>
    %cst_56 = arith.constant 1.000000e+00 : f32
    %150 = vector.broadcast %cst_56 : f32 to vector<8x128xf32>
    %151 = arith.addf %150, %149 : vector<8x128xf32>
    %152 = arith.divf %150, %151 : vector<8x128xf32>
    %153 = vector.extract_strided_slice %146 {offsets = [0, 128], sizes = [8, 128], strides = [1, 1]} : vector<8x512xf32> to vector<8x128xf32>
    %154 = arith.negf %153 : vector<8x128xf32>
    %155 = math.exp %154 : vector<8x128xf32>
    %cst_57 = arith.constant 1.000000e+00 : f32
    %156 = vector.broadcast %cst_57 : f32 to vector<8x128xf32>
    %157 = arith.addf %156, %155 : vector<8x128xf32>
    %158 = arith.divf %156, %157 : vector<8x128xf32>
    %159 = vector.extract_strided_slice %146 {offsets = [0, 256], sizes = [8, 128], strides = [1, 1]} : vector<8x512xf32> to vector<8x128xf32>
    %160 = math.tanh %159 : vector<8x128xf32>
    %161 = vector.extract_strided_slice %146 {offsets = [0, 384], sizes = [8, 128], strides = [1, 1]} : vector<8x512xf32> to vector<8x128xf32>
    %162 = arith.negf %161 : vector<8x128xf32>
    %163 = math.exp %162 : vector<8x128xf32>
    %cst_58 = arith.constant 1.000000e+00 : f32
    %164 = vector.broadcast %cst_58 : f32 to vector<8x128xf32>
    %165 = arith.addf %164, %163 : vector<8x128xf32>
    %166 = arith.divf %164, %165 : vector<8x128xf32>
    %167 = arith.mulf %158, %137 : vector<8x128xf32>
    %168 = arith.mulf %152, %160 : vector<8x128xf32>
    %169 = arith.addf %167, %168 : vector<8x128xf32>
    %170 = math.tanh %169 : vector<8x128xf32>
    %171 = arith.mulf %166, %170 : vector<8x128xf32>
    %c4_59 = arith.constant 4 : index
    %c0_60 = arith.constant 0 : index
    %c0_61 = arith.constant 0 : index
    %172 = vector.load %arg13[%c4_59, %c0_60, %c0_61] : memref<8x8x128xf32, #tpu.memory_space<vmem>>, vector<1x8x128xf32>
    %173 = vector.shape_cast %172 : vector<1x8x128xf32> to vector<8x128xf32>
    %174 = vector.shape_cast %171 : vector<8x128xf32> to vector<1x8x128xf32>
    tpu.vector_store %arg13[%c4_59, %c0_60, %c0_61], %174 {strides = array<i32>} : memref<8x8x128xf32, #tpu.memory_space<vmem>>, vector<1x8x128xf32>,
    %c5 = arith.constant 5 : index
    %c0_62 = arith.constant 0 : index
    %c0_63 = arith.constant 0 : index
    %175 = vector.load %arg14[%c5, %c0_62, %c0_63] : memref<8x8x512xf32, #tpu.memory_space<vmem>>, vector<1x8x512xf32>
    %176 = vector.shape_cast %175 : vector<1x8x512xf32> to vector<8x512xf32>
    %cst_64 = arith.constant dense<0.000000e+00> : vector<8x512xf32>
    %177 = tpu.matmul %171, %12, %cst_64 {dimension_numbers = #tpu.dot_dimension_numbers<[1], [0], [0], [1], [0, 0, 1, 1], [], []>} : vector<8x128xf32>, vector<128x512xf32>, vector<8x512xf32> -> vector<8x512xf32>
    %178 = arith.addf %176, %177 : vector<8x512xf32>
    %179 = vector.extract_strided_slice %178 {offsets = [0, 0], sizes = [8, 128], strides = [1, 1]} : vector<8x512xf32> to vector<8x128xf32>
    %180 = arith.negf %179 : vector<8x128xf32>
    %181 = math.exp %180 : vector<8x128xf32>
    %cst_65 = arith.constant 1.000000e+00 : f32
    %182 = vector.broadcast %cst_65 : f32 to vector<8x128xf32>
    %183 = arith.addf %182, %181 : vector<8x128xf32>
    %184 = arith.divf %182, %183 : vector<8x128xf32>
    %185 = vector.extract_strided_slice %178 {offsets = [0, 128], sizes = [8, 128], strides = [1, 1]} : vector<8x512xf32> to vector<8x128xf32>
    %186 = arith.negf %185 : vector<8x128xf32>
    %187 = math.exp %186 : vector<8x128xf32>
    %cst_66 = arith.constant 1.000000e+00 : f32
    %188 = vector.broadcast %cst_66 : f32 to vector<8x128xf32>
    %189 = arith.addf %188, %187 : vector<8x128xf32>
    %190 = arith.divf %188, %189 : vector<8x128xf32>
    %191 = vector.extract_strided_slice %178 {offsets = [0, 256], sizes = [8, 128], strides = [1, 1]} : vector<8x512xf32> to vector<8x128xf32>
    %192 = math.tanh %191 : vector<8x128xf32>
    %193 = vector.extract_strided_slice %178 {offsets = [0, 384], sizes = [8, 128], strides = [1, 1]} : vector<8x512xf32> to vector<8x128xf32>
    %194 = arith.negf %193 : vector<8x128xf32>
    %195 = math.exp %194 : vector<8x128xf32>
    %cst_67 = arith.constant 1.000000e+00 : f32
    %196 = vector.broadcast %cst_67 : f32 to vector<8x128xf32>
    %197 = arith.addf %196, %195 : vector<8x128xf32>
    %198 = arith.divf %196, %197 : vector<8x128xf32>
    %199 = arith.mulf %190, %169 : vector<8x128xf32>
    %200 = arith.mulf %184, %192 : vector<8x128xf32>
    %201 = arith.addf %199, %200 : vector<8x128xf32>
    %202 = math.tanh %201 : vector<8x128xf32>
    %203 = arith.mulf %198, %202 : vector<8x128xf32>
    %c5_68 = arith.constant 5 : index
    %c0_69 = arith.constant 0 : index
    %c0_70 = arith.constant 0 : index
    %204 = vector.load %arg13[%c5_68, %c0_69, %c0_70] : memref<8x8x128xf32, #tpu.memory_space<vmem>>, vector<1x8x128xf32>
    %205 = vector.shape_cast %204 : vector<1x8x128xf32> to vector<8x128xf32>
    %206 = vector.shape_cast %203 : vector<8x128xf32> to vector<1x8x128xf32>
    tpu.vector_store %arg13[%c5_68, %c0_69, %c0_70], %206 {strides = array<i32>} : memref<8x8x128xf32, #tpu.memory_space<vmem>>, vector<1x8x128xf32>,
    %c6 = arith.constant 6 : index
    %c0_71 = arith.constant 0 : index
    %c0_72 = arith.constant 0 : index
    %207 = vector.load %arg14[%c6, %c0_71, %c0_72] : memref<8x8x512xf32, #tpu.memory_space<vmem>>, vector<1x8x512xf32>
    %208 = vector.shape_cast %207 : vector<1x8x512xf32> to vector<8x512xf32>
    %cst_73 = arith.constant dense<0.000000e+00> : vector<8x512xf32>
    %209 = tpu.matmul %203, %12, %cst_73 {dimension_numbers = #tpu.dot_dimension_numbers<[1], [0], [0], [1], [0, 0, 1, 1], [], []>} : vector<8x128xf32>, vector<128x512xf32>, vector<8x512xf32> -> vector<8x512xf32>
    %210 = arith.addf %208, %209 : vector<8x512xf32>
    %211 = vector.extract_strided_slice %210 {offsets = [0, 0], sizes = [8, 128], strides = [1, 1]} : vector<8x512xf32> to vector<8x128xf32>
    %212 = arith.negf %211 : vector<8x128xf32>
    %213 = math.exp %212 : vector<8x128xf32>
    %cst_74 = arith.constant 1.000000e+00 : f32
    %214 = vector.broadcast %cst_74 : f32 to vector<8x128xf32>
    %215 = arith.addf %214, %213 : vector<8x128xf32>
    %216 = arith.divf %214, %215 : vector<8x128xf32>
    %217 = vector.extract_strided_slice %210 {offsets = [0, 128], sizes = [8, 128], strides = [1, 1]} : vector<8x512xf32> to vector<8x128xf32>
    %218 = arith.negf %217 : vector<8x128xf32>
    %219 = math.exp %218 : vector<8x128xf32>
    %cst_75 = arith.constant 1.000000e+00 : f32
    %220 = vector.broadcast %cst_75 : f32 to vector<8x128xf32>
    %221 = arith.addf %220, %219 : vector<8x128xf32>
    %222 = arith.divf %220, %221 : vector<8x128xf32>
    %223 = vector.extract_strided_slice %210 {offsets = [0, 256], sizes = [8, 128], strides = [1, 1]} : vector<8x512xf32> to vector<8x128xf32>
    %224 = math.tanh %223 : vector<8x128xf32>
    %225 = vector.extract_strided_slice %210 {offsets = [0, 384], sizes = [8, 128], strides = [1, 1]} : vector<8x512xf32> to vector<8x128xf32>
    %226 = arith.negf %225 : vector<8x128xf32>
    %227 = math.exp %226 : vector<8x128xf32>
    %cst_76 = arith.constant 1.000000e+00 : f32
    %228 = vector.broadcast %cst_76 : f32 to vector<8x128xf32>
    %229 = arith.addf %228, %227 : vector<8x128xf32>
    %230 = arith.divf %228, %229 : vector<8x128xf32>
    %231 = arith.mulf %222, %201 : vector<8x128xf32>
    %232 = arith.mulf %216, %224 : vector<8x128xf32>
    %233 = arith.addf %231, %232 : vector<8x128xf32>
    %234 = math.tanh %233 : vector<8x128xf32>
    %235 = arith.mulf %230, %234 : vector<8x128xf32>
    %c6_77 = arith.constant 6 : index
    %c0_78 = arith.constant 0 : index
    %c0_79 = arith.constant 0 : index
    %236 = vector.load %arg13[%c6_77, %c0_78, %c0_79] : memref<8x8x128xf32, #tpu.memory_space<vmem>>, vector<1x8x128xf32>
    %237 = vector.shape_cast %236 : vector<1x8x128xf32> to vector<8x128xf32>
    %238 = vector.shape_cast %235 : vector<8x128xf32> to vector<1x8x128xf32>
    tpu.vector_store %arg13[%c6_77, %c0_78, %c0_79], %238 {strides = array<i32>} : memref<8x8x128xf32, #tpu.memory_space<vmem>>, vector<1x8x128xf32>,
    %c7 = arith.constant 7 : index
    %c0_80 = arith.constant 0 : index
    %c0_81 = arith.constant 0 : index
    %239 = vector.load %arg14[%c7, %c0_80, %c0_81] : memref<8x8x512xf32, #tpu.memory_space<vmem>>, vector<1x8x512xf32>
    %240 = vector.shape_cast %239 : vector<1x8x512xf32> to vector<8x512xf32>
    %cst_82 = arith.constant dense<0.000000e+00> : vector<8x512xf32>
    %241 = tpu.matmul %235, %12, %cst_82 {dimension_numbers = #tpu.dot_dimension_numbers<[1], [0], [0], [1], [0, 0, 1, 1], [], []>} : vector<8x128xf32>, vector<128x512xf32>, vector<8x512xf32> -> vector<8x512xf32>
    %242 = arith.addf %240, %241 : vector<8x512xf32>
    %243 = vector.extract_strided_slice %242 {offsets = [0, 0], sizes = [8, 128], strides = [1, 1]} : vector<8x512xf32> to vector<8x128xf32>
    %244 = arith.negf %243 : vector<8x128xf32>
    %245 = math.exp %244 : vector<8x128xf32>
    %cst_83 = arith.constant 1.000000e+00 : f32
    %246 = vector.broadcast %cst_83 : f32 to vector<8x128xf32>
    %247 = arith.addf %246, %245 : vector<8x128xf32>
    %248 = arith.divf %246, %247 : vector<8x128xf32>
    %249 = vector.extract_strided_slice %242 {offsets = [0, 128], sizes = [8, 128], strides = [1, 1]} : vector<8x512xf32> to vector<8x128xf32>
    %250 = arith.negf %249 : vector<8x128xf32>
    %251 = math.exp %250 : vector<8x128xf32>
    %cst_84 = arith.constant 1.000000e+00 : f32
    %252 = vector.broadcast %cst_84 : f32 to vector<8x128xf32>
    %253 = arith.addf %252, %251 : vector<8x128xf32>
    %254 = arith.divf %252, %253 : vector<8x128xf32>
    %255 = vector.extract_strided_slice %242 {offsets = [0, 256], sizes = [8, 128], strides = [1, 1]} : vector<8x512xf32> to vector<8x128xf32>
    %256 = math.tanh %255 : vector<8x128xf32>
    %257 = vector.extract_strided_slice %242 {offsets = [0, 384], sizes = [8, 128], strides = [1, 1]} : vector<8x512xf32> to vector<8x128xf32>
    %258 = arith.negf %257 : vector<8x128xf32>
    %259 = math.exp %258 : vector<8x128xf32>
    %cst_85 = arith.constant 1.000000e+00 : f32
    %260 = vector.broadcast %cst_85 : f32 to vector<8x128xf32>
    %261 = arith.addf %260, %259 : vector<8x128xf32>
    %262 = arith.divf %260, %261 : vector<8x128xf32>
    %263 = arith.mulf %254, %233 : vector<8x128xf32>
    %264 = arith.mulf %248, %256 : vector<8x128xf32>
    %265 = arith.addf %263, %264 : vector<8x128xf32>
    %266 = math.tanh %265 : vector<8x128xf32>
    %267 = arith.mulf %262, %266 : vector<8x128xf32>
    %c7_86 = arith.constant 7 : index
    %c0_87 = arith.constant 0 : index
    %c0_88 = arith.constant 0 : index
    %268 = vector.load %arg13[%c7_86, %c0_87, %c0_88] : memref<8x8x128xf32, #tpu.memory_space<vmem>>, vector<1x8x128xf32>
    %269 = vector.shape_cast %268 : vector<1x8x128xf32> to vector<8x128xf32>
    %270 = vector.shape_cast %267 : vector<8x128xf32> to vector<1x8x128xf32>
    tpu.vector_store %arg13[%c7_86, %c0_87, %c0_88], %270 {strides = array<i32>} : memref<8x8x128xf32, #tpu.memory_space<vmem>>, vector<1x8x128xf32>,
    %c0_89 = arith.constant 0 : index
    %c0_90 = arith.constant 0 : index
    %271 = vector.load %arg11[%c0_89, %c0_90] : memref<8x128xf32, #tpu.memory_space<vmem>>, vector<8x128xf32>
    tpu.vector_store %arg11[%c0_89, %c0_90], %267 {strides = array<i32>} : memref<8x128xf32, #tpu.memory_space<vmem>>, vector<8x128xf32>,
    %c0_91 = arith.constant 0 : index
    %c0_92 = arith.constant 0 : index
    %272 = vector.load %arg12[%c0_91, %c0_92] : memref<8x128xf32, #tpu.memory_space<vmem>>, vector<8x128xf32>
    tpu.vector_store %arg12[%c0_91, %c0_92], %265 {strides = array<i32>} : memref<8x128xf32, #tpu.memory_space<vmem>>, vector<8x128xf32>,
    %c0_93 = arith.constant 0 : index
    %c0_94 = arith.constant 0 : index
    %c0_95 = arith.constant 0 : index
    %273 = vector.load %arg13[%c0_93, %c0_94, %c0_95] : memref<8x8x128xf32, #tpu.memory_space<vmem>>, vector<8x8x128xf32>
    %274 = tpu.transpose %273, [1, 0, 2] : vector<8x8x128xf32> -> vector<8x8x128xf32>
    %c0_96 = arith.constant 0 : index
    %c0_97 = arith.constant 0 : index
    %c0_98 = arith.constant 0 : index
    %275 = vector.load %arg8[%c0_96, %c0_97, %c0_98] : memref<8x8x128xf32, #tpu.memory_space<vmem>>, vector<8x8x128xf32>
    tpu.vector_store %arg8[%c0_96, %c0_97, %c0_98], %274 {strides = array<i32>} : memref<8x8x128xf32, #tpu.memory_space<vmem>>, vector<8x8x128xf32>,
    %c1_i32 = arith.constant 1 : i32
    %276 = arith.cmpi eq, %arg1, %c1_i32 : i32
    %277 = arith.extui %276 : i1 to i32
    %c0_i32_99 = arith.constant 0 : i32
    %278 = arith.cmpi ne, %277, %c0_i32_99 : i32
    scf.if %278 {
      %c0_100 = arith.constant 0 : index
      %c0_101 = arith.constant 0 : index
      %279 = vector.load %arg9[%c0_100, %c0_101] : memref<8x128xf32, #tpu.memory_space<vmem>>, vector<8x128xf32>
      tpu.vector_store %arg9[%c0_100, %c0_101], %267 {strides = array<i32>} : memref<8x128xf32, #tpu.memory_space<vmem>>, vector<8x128xf32>,
      %c0_102 = arith.constant 0 : index
      %c0_103 = arith.constant 0 : index
      %280 = vector.load %arg10[%c0_102, %c0_103] : memref<8x128xf32, #tpu.memory_space<vmem>>, vector<8x128xf32>
      tpu.vector_store %arg10[%c0_102, %c0_103], %265 {strides = array<i32>} : memref<8x128xf32, #tpu.memory_space<vmem>>, vector<8x128xf32>,
    } else {
    }
    return
  }
  func.func @transform_0(%arg0: i32, %arg1: i32) -> (i32, i32, i32) {
    %c0_i32 = arith.constant 0 : i32
    %c0_i32_0 = arith.constant 0 : i32
    return %arg1, %arg0, %c0_i32 : i32, i32, i32
  }
  func.func @transform_1(%arg0: i32, %arg1: i32) -> (i32, i32) {
    %c0_i32 = arith.constant 0 : i32
    %c0_i32_0 = arith.constant 0 : i32
    %c0_i32_1 = arith.constant 0 : i32
    return %c0_i32, %c0_i32_0 : i32, i32
  }
  func.func @transform_2(%arg0: i32, %arg1: i32) -> (i32, i32) {
    %c0_i32 = arith.constant 0 : i32
    %c0_i32_0 = arith.constant 0 : i32
    %c0_i32_1 = arith.constant 0 : i32
    return %c0_i32, %c0_i32_0 : i32, i32
  }
  func.func @transform_3(%arg0: i32, %arg1: i32) -> (i32, i32) {
    %c0_i32 = arith.constant 0 : i32
    %c0_i32_0 = arith.constant 0 : i32
    %c0_i32_1 = arith.constant 0 : i32
    return %c0_i32, %c0_i32_0 : i32, i32
  }
  func.func @transform_4(%arg0: i32, %arg1: i32) -> (i32, i32) {
    %c0_i32 = arith.constant 0 : i32
    %c0_i32_0 = arith.constant 0 : i32
    return %arg0, %c0_i32 : i32, i32
  }
  func.func @transform_5(%arg0: i32, %arg1: i32) -> (i32, i32) {
    %c0_i32 = arith.constant 0 : i32
    %c0_i32_0 = arith.constant 0 : i32
    return %arg0, %c0_i32 : i32, i32
  }
  func.func @transform_6(%arg0: i32, %arg1: i32) -> (i32, i32, i32) {
    %c0_i32 = arith.constant 0 : i32
    %c0_i32_0 = arith.constant 0 : i32
    return %arg0, %arg1, %c0_i32 : i32, i32, i32
  }
  func.func @transform_7(%arg0: i32, %arg1: i32) -> (i32, i32) {
    %c0_i32 = arith.constant 0 : i32
    %c0_i32_0 = arith.constant 0 : i32
    return %arg0, %c0_i32 : i32, i32
  }
  func.func @transform_8(%arg0: i32, %arg1: i32) -> (i32, i32) {
    %c0_i32 = arith.constant 0 : i32
    %c0_i32_0 = arith.constant 0 : i32
    return %arg0, %c0_i32 : i32, i32
  }
}

module attributes {stable_mosaic.version = 11 : i64} {
  func.func @_matmul_bias_kernel(%arg0: i32, %arg1: i32, %arg2: memref<128x128xf32, #tpu.memory_space<vmem>>, %arg3: memref<128x128xf32, #tpu.memory_space<vmem>>, %arg4: memref<1x128xf32, #tpu.memory_space<vmem>>, %arg5: memref<128x128xf32, #tpu.memory_space<vmem>>) attributes {dimension_semantics = [#tpu.dimension_semantics<parallel>, #tpu.dimension_semantics<parallel>], iteration_bounds = array<i64: 1, 1>, scalar_prefetch = 0 : i64, scratch_operands = 0 : i64, tpu.core_type = #tpu.core_type<tc>, window_params = [{transform_indices = @transform_0, window_bounds = array<i64: 128, 128>}, {transform_indices = @transform_1, window_bounds = array<i64: 128, 128>}, {transform_indices = @transform_2, window_bounds = array<i64: 1, 128>}, {transform_indices = @transform_3, window_bounds = array<i64: 128, 128>}]} {
    %c0 = arith.constant 0 : index
    %c0_0 = arith.constant 0 : index
    %0 = vector.load %arg2[%c0, %c0_0] : memref<128x128xf32, #tpu.memory_space<vmem>>, vector<128x128xf32>
    %c0_1 = arith.constant 0 : index
    %c0_2 = arith.constant 0 : index
    %1 = vector.load %arg3[%c0_1, %c0_2] : memref<128x128xf32, #tpu.memory_space<vmem>>, vector<128x128xf32>
    %cst = arith.constant dense<0.000000e+00> : vector<128x128xf32>
    %2 = tpu.matmul %0, %1, %cst {dimension_numbers = #tpu.dot_dimension_numbers<[1], [0], [0], [1], [0, 0, 1, 1], [], []>} : vector<128x128xf32>, vector<128x128xf32>, vector<128x128xf32> -> vector<128x128xf32>
    %c0_3 = arith.constant 0 : index
    %c0_4 = arith.constant 0 : index
    %3 = vector.load %arg4[%c0_3, %c0_4] : memref<1x128xf32, #tpu.memory_space<vmem>>, vector<1x128xf32>
    %4 = vector.broadcast %3 : vector<1x128xf32> to vector<128x128xf32>
    %5 = arith.addf %2, %4 : vector<128x128xf32>
    %c0_5 = arith.constant 0 : index
    %c0_6 = arith.constant 0 : index
    %6 = vector.load %arg5[%c0_5, %c0_6] : memref<128x128xf32, #tpu.memory_space<vmem>>, vector<128x128xf32>
    tpu.vector_store %arg5[%c0_5, %c0_6], %5 {strides = array<i32>} : memref<128x128xf32, #tpu.memory_space<vmem>>, vector<128x128xf32>,
    return
  }
  func.func @transform_0(%arg0: i32, %arg1: i32) -> (i32, i32) {
    %c0_i32 = arith.constant 0 : i32
    %c0_i32_0 = arith.constant 0 : i32
    return %arg1, %c0_i32 : i32, i32
  }
  func.func @transform_1(%arg0: i32, %arg1: i32) -> (i32, i32) {
    %c0_i32 = arith.constant 0 : i32
    %c0_i32_0 = arith.constant 0 : i32
    return %c0_i32, %arg0 : i32, i32
  }
  func.func @transform_2(%arg0: i32, %arg1: i32) -> (i32, i32) {
    %c0_i32 = arith.constant 0 : i32
    %c0_i32_0 = arith.constant 0 : i32
    return %c0_i32, %arg0 : i32, i32
  }
  func.func @transform_3(%arg0: i32, %arg1: i32) -> (i32, i32) {
    %c0_i32 = arith.constant 0 : i32
    return %arg1, %arg0 : i32, i32
  }
}

</mosaic_0001>

<llo_original>
// kernel: language_model_onehot.5
$region0: #{language_model_onehot.5}
  #allocation0 [shape = 'u32[]', space=smem, size = 0x4, offset = 0x4, fixed_abs, tag = 'smem constant byte address 0x4 - core index']
  #allocation1 [shape = 'u32[144,128]{1,0:T(1,128)}', space=vmem, size = 0x12000, scoped, tag = 'internal scratch']
  %s0 = inlined_call_operand.vmem [shape: f32[128,128], index: 0, kind: input, shape index: {}]
  %s1 = inlined_call_operand.vmem [shape: f32[128,128], index: 1, kind: input, shape index: {}]
  %s2 = inlined_call_operand.vmem [shape: f32[1,128], index: 2, kind: input, shape index: {}]
  %s3 = inlined_call_operand.vmem [shape: f32[128,128], index: 3, kind: output, shape index: {}]
  %s4 = sld [smem:[#allocation0]]
  $region22: #{language_model_onehot.5} parent=0
    _
  %s6 = ssub.s32 1, %s4
  %s7 = scalar_select 0, %s6, %s4
  // Predicated region
  $region2: #{language_model_onehot.5} parent=0 // pred_check
    _
  $region3: #{language_model_onehot.5} parent=0 // pred_check_branch
    %9 = sbr.rel (0) target = $region5
  $region4: #{language_model_onehot.5} parent=0 // pred_region
    _
  $region5: #{language_model_onehot.5} parent=0 // pred_fallthru
    _
  // Predicated region
  $region6: #{language_model_onehot.5} parent=0 // pred_check
    _
  $region7: #{language_model_onehot.5} parent=0 // pred_check_branch
    %11 = sbr.rel (0) target = $region9
  $region8: #{language_model_onehot.5} parent=0 // pred_region
    _
  $region9: #{language_model_onehot.5} parent=0 // pred_fallthru
    _
  // Predicated region
  $region10: #{language_model_onehot.5} parent=0 // pred_check
    _
  $region11: #{language_model_onehot.5} parent=0 // pred_check_branch
    %13 = sbr.rel (0) target = $region13
  $region12: #{language_model_onehot.5} parent=0 // pred_region
    _
  $region13: #{language_model_onehot.5} parent=0 // pred_fallthru
    _
  %v14 = vld [vmem:[%s0] sm:$0xff]
  %v15 = vld [vmem:[%s0 + $0x8] sm:$0xff]
  %v16 = vld [vmem:[%s0 + $0x10] sm:$0xff]
  %v17 = vld [vmem:[%s0 + $0x18] sm:$0xff]
  %v18 = vld [vmem:[%s0 + $0x20] sm:$0xff]
  %v19 = vld [vmem:[%s0 + $0x28] sm:$0xff]
  %v20 = vld [vmem:[%s0 + $0x30] sm:$0xff]
  %v21 = vld [vmem:[%s0 + $0x38] sm:$0xff]
  %v22 = vld [vmem:[%s0 + $0x40] sm:$0xff]
  %v23 = vld [vmem:[%s0 + $0x48] sm:$0xff]
  %v24 = vld [vmem:[%s0 + $0x50] sm:$0xff]
  %v25 = vld [vmem:[%s0 + $0x58] sm:$0xff]
  %v26 = vld [vmem:[%s0 + $0x60] sm:$0xff]
  %v27 = vld [vmem:[%s0 + $0x68] sm:$0xff]
  %v28 = vld [vmem:[%s0 + $0x70] sm:$0xff]
  %v29 = vld [vmem:[%s0 + $0x78] sm:$0xff]
  %v30 = vld [vmem:[%s1] sm:$0xff]
  %v31 = vld [vmem:[%s1 + $0x8] sm:$0xff]
  %v32 = vld [vmem:[%s1 + $0x10] sm:$0xff]
  %v33 = vld [vmem:[%s1 + $0x18] sm:$0xff]
  %v34 = vld [vmem:[%s1 + $0x20] sm:$0xff]
  %v35 = vld [vmem:[%s1 + $0x28] sm:$0xff]
  %v36 = vld [vmem:[%s1 + $0x30] sm:$0xff]
  %v37 = vld [vmem:[%s1 + $0x38] sm:$0xff]
  %v38 = vld [vmem:[%s1 + $0x40] sm:$0xff]
  %v39 = vld [vmem:[%s1 + $0x48] sm:$0xff]
  %v40 = vld [vmem:[%s1 + $0x50] sm:$0xff]
  %v41 = vld [vmem:[%s1 + $0x58] sm:$0xff]
  %v42 = vld [vmem:[%s1 + $0x60] sm:$0xff]
  %v43 = vld [vmem:[%s1 + $0x68] sm:$0xff]
  %v44 = vld [vmem:[%s1 + $0x70] sm:$0xff]
  %v45 = vld [vmem:[%s1 + $0x78] sm:$0xff]
  %v46 = vld [vmem:[%s2] sm:$0x1]
  %v48 = vlaneseq
  %v49 = vshrl.u32 %v48, 7
  %v50 = vsub.s32 0, %v49
  %v51 = vrot.slane %v46, %v50
  %53 = vmatprep.subr.mxu0 0.0
  %54 = vmatpush1.msra.mxu0 %v30
  %55 = vmatprep.subr.mxu0 0.0
  %56 = vmatpush1.msra.mxu0 %v31
  %57 = vmatprep.subr.mxu0 0.0
  %58 = vmatpush1.msra.mxu0 %v32
  %59 = vmatprep.subr.mxu0 0.0
  %60 = vmatpush1.msra.mxu0 %v33
  %61 = vmatprep.subr.mxu0 0.0
  %62 = vmatpush1.msra.mxu0 %v34
  %63 = vmatprep.subr.mxu0 0.0
  %64 = vmatpush1.msra.mxu0 %v35
  %65 = vmatprep.subr.mxu0 0.0
  %66 = vmatpush1.msra.mxu0 %v36
  %67 = vmatprep.subr.mxu0 0.0
  %68 = vmatpush1.msra.mxu0 %v37
  %69 = vmatprep.subr.mxu0 0.0
  %70 = vmatpush1.msra.mxu0 %v38
  %71 = vmatprep.subr.mxu0 0.0
  %72 = vmatpush1.msra.mxu0 %v39
  %73 = vmatprep.subr.mxu0 0.0
  %74 = vmatpush1.msra.mxu0 %v40
  %75 = vmatprep.subr.mxu0 0.0
  %76 = vmatpush1.msra.mxu0 %v41
  %77 = vmatprep.subr.mxu0 0.0
  %78 = vmatpush1.msra.mxu0 %v42
  %79 = vmatprep.subr.mxu0 0.0
  %80 = vmatpush1.msra.mxu0 %v43
  %81 = vmatprep.subr.mxu0 0.0
  %82 = vmatpush1.msra.mxu0 %v44
  %83 = vmatprep.subr.mxu0 0.0
  %84 = vmatpush1.msra.mxu0 %v45
  %85 = vmatprep.subr.mxu0 0.0
  %86 = vmatpush1.msra.mxu0 0.0
  %87 = vmatprep.subr.mxu0 0.0
  %88 = vmatpush1.msra.mxu0 0.0
  %89 = vmatprep.subr.mxu0 0.0
  %90 = vmatpush1.msra.mxu0 0.0
  %91 = vmatprep.subr.mxu0 0.0
  %92 = vmatpush1.msra.mxu0 0.0
  %93 = vmatprep.subr.mxu0 0.0
  %94 = vmatpush1.msra.mxu0 0.0
  %95 = vmatprep.subr.mxu0 0.0
  %96 = vmatpush1.msra.mxu0 0.0
  %97 = vmatprep.subr.mxu0 0.0
  %98 = vmatpush1.msra.mxu0 0.0
  %99 = vmatprep.subr.mxu0 0.0
  %100 = vmatpush1.msra.mxu0 0.0
  %101 = vmatprep.subr.mxu0 0.0
  %102 = vmatpush1.msra.mxu0 0.0
  %103 = vmatprep.subr.mxu0 0.0
  %104 = vmatpush1.msra.mxu0 0.0
  %105 = vmatprep.subr.mxu0 0.0
  %106 = vmatpush1.msra.mxu0 0.0
  %107 = vmatprep.subr.mxu0 0.0
  %108 = vmatpush1.msra.mxu0 0.0
  %109 = vmatprep.subr.mxu0 0.0
  %110 = vmatpush1.msra.mxu0 0.0
  %111 = vmatprep.subr.mxu0 0.0
  %112 = vmatpush1.msra.mxu0 0.0
  %113 = vmatprep.subr.mxu0 0.0
  %114 = vmatpush1.msra.mxu0 0.0
  %115 = vmatprep.subr.mxu0 0.0
  %116 = vmatpush1.msra.mxu0 0.0
  %117 = vmatprep.mubr.f32.mxu0 0.0
  %118 = vmatmul.mubr.f32.gmra.mrb[0].mxu0 %v14
  %v119 = vpop.f32.mrb[0].mxu0
  %v120 = vadd.f32 %v51, %v119
  %v121 = vpop.f32.mrb[0].mxu0
  %122 = vmatprep.mubr.f32.mxu0 0.0
  %123 = vmatmul.mubr.f32.gmra.mrb[0].mxu0 %v15
  %v124 = vpop.f32.mrb[0].mxu0
  %v125 = vadd.f32 %v51, %v124
  %v126 = vpop.f32.mrb[0].mxu0
  %127 = vmatprep.mubr.f32.mxu0 0.0
  %128 = vmatmul.mubr.f32.gmra.mrb[0].mxu0 %v16
  %v129 = vpop.f32.mrb[0].mxu0
  %v130 = vadd.f32 %v51, %v129
  %v131 = vpop.f32.mrb[0].mxu0
  %132 = vmatprep.mubr.f32.mxu0 0.0
  %133 = vmatmul.mubr.f32.gmra.mrb[0].mxu0 %v17
  %v134 = vpop.f32.mrb[0].mxu0
  %v135 = vadd.f32 %v51, %v134
  %v136 = vpop.f32.mrb[0].mxu0
  %137 = vmatprep.mubr.f32.mxu0 0.0
  %138 = vmatmul.mubr.f32.gmra.mrb[0].mxu0 %v18
  %v139 = vpop.f32.mrb[0].mxu0
  %v140 = vadd.f32 %v51, %v139
  %v141 = vpop.f32.mrb[0].mxu0
  %142 = vmatprep.mubr.f32.mxu0 0.0
  %143 = vmatmul.mubr.f32.gmra.mrb[0].mxu0 %v19
  %v144 = vpop.f32.mrb[0].mxu0
  %v145 = vadd.f32 %v51, %v144
  %v146 = vpop.f32.mrb[0].mxu0
  %147 = vmatprep.mubr.f32.mxu0 0.0
  %148 = vmatmul.mubr.f32.gmra.mrb[0].mxu0 %v20
  %v149 = vpop.f32.mrb[0].mxu0
  %v150 = vadd.f32 %v51, %v149
  %v151 = vpop.f32.mrb[0].mxu0
  %152 = vmatprep.mubr.f32.mxu0 0.0
  %153 = vmatmul.mubr.f32.gmra.mrb[0].mxu0 %v21
  %v154 = vpop.f32.mrb[0].mxu0
  %v155 = vadd.f32 %v51, %v154
  %v156 = vpop.f32.mrb[0].mxu0
  %157 = vmatprep.mubr.f32.mxu0 0.0
  %158 = vmatmul.mubr.f32.gmra.mrb[0].mxu0 %v22
  %v159 = vpop.f32.mrb[0].mxu0
  %v160 = vadd.f32 %v51, %v159
  %v161 = vpop.f32.mrb[0].mxu0
  %162 = vmatprep.mubr.f32.mxu0 0.0
  %163 = vmatmul.mubr.f32.gmra.mrb[0].mxu0 %v23
  %v164 = vpop.f32.mrb[0].mxu0
  %v165 = vadd.f32 %v51, %v164
  %v166 = vpop.f32.mrb[0].mxu0
  %167 = vmatprep.mubr.f32.mxu0 0.0
  %168 = vmatmul.mubr.f32.gmra.mrb[0].mxu0 %v24
  %v169 = vpop.f32.mrb[0].mxu0
  %v170 = vadd.f32 %v51, %v169
  %v171 = vpop.f32.mrb[0].mxu0
  %172 = vmatprep.mubr.f32.mxu0 0.0
  %173 = vmatmul.mubr.f32.gmra.mrb[0].mxu0 %v25
  %v174 = vpop.f32.mrb[0].mxu0
  %v175 = vadd.f32 %v51, %v174
  %v176 = vpop.f32.mrb[0].mxu0
  %177 = vmatprep.mubr.f32.mxu0 0.0
  %178 = vmatmul.mubr.f32.gmra.mrb[0].mxu0 %v26
  %v179 = vpop.f32.mrb[0].mxu0
  %v180 = vadd.f32 %v51, %v179
  %v181 = vpop.f32.mrb[0].mxu0
  %182 = vmatprep.mubr.f32.mxu0 0.0
  %183 = vmatmul.mubr.f32.gmra.mrb[0].mxu0 %v27
  %v184 = vpop.f32.mrb[0].mxu0
  %v185 = vadd.f32 %v51, %v184
  %v186 = vpop.f32.mrb[0].mxu0
  %187 = vmatprep.mubr.f32.mxu0 0.0
  %188 = vmatmul.mubr.f32.gmra.mrb[0].mxu0 %v28
  %v189 = vpop.f32.mrb[0].mxu0
  %v190 = vadd.f32 %v51, %v189
  %v191 = vpop.f32.mrb[0].mxu0
  %192 = vmatprep.mubr.f32.mxu0 0.0
  %193 = vmatmul.mubr.f32.gmra.mrb[0].mxu0 %v29
  %v194 = vpop.f32.mrb[0].mxu0
  %v195 = vadd.f32 %v51, %v194
  %v196 = vpop.f32.mrb[0].mxu0
  %197 = vdwg.mxu0
  %198 = vst [vmem:[%s3] sm:$0xff] %v120
  %199 = vst [vmem:[%s3 + $0x8] sm:$0xff] %v125
  %200 = vst [vmem:[%s3 + $0x10] sm:$0xff] %v130
  %201 = vst [vmem:[%s3 + $0x18] sm:$0xff] %v135
  %202 = vst [vmem:[%s3 + $0x20] sm:$0xff] %v140
  %203 = vst [vmem:[%s3 + $0x28] sm:$0xff] %v145
  %204 = vst [vmem:[%s3 + $0x30] sm:$0xff] %v150
  %205 = vst [vmem:[%s3 + $0x38] sm:$0xff] %v155
  %206 = vst [vmem:[%s3 + $0x40] sm:$0xff] %v160
  %207 = vst [vmem:[%s3 + $0x48] sm:$0xff] %v165
  %208 = vst [vmem:[%s3 + $0x50] sm:$0xff] %v170
  %209 = vst [vmem:[%s3 + $0x58] sm:$0xff] %v175
  %210 = vst [vmem:[%s3 + $0x60] sm:$0xff] %v180
  %211 = vst [vmem:[%s3 + $0x68] sm:$0xff] %v185
  %212 = vst [vmem:[%s3 + $0x70] sm:$0xff] %v190
  %213 = vst [vmem:[%s3 + $0x78] sm:$0xff] %v195
  // Predicated region
  $region14: #{language_model_onehot.5} parent=0 // pred_check
    _
  $region15: #{language_model_onehot.5} parent=0 // pred_check_branch
    %215 = sbr.rel (0) target = $region17
  $region16: #{language_model_onehot.5} parent=0 // pred_region
    _
  $region17: #{language_model_onehot.5} parent=0 // pred_fallthru
    _
  // Predicated region
  $region18: #{language_model_onehot.5} parent=0 // pred_check
    _
  $region19: #{language_model_onehot.5} parent=0 // pred_check_branch
    %217 = sbr.rel (0) target = $region21
  $region20: #{language_model_onehot.5} parent=0 // pred_region
    _
  $region21: #{language_model_onehot.5} parent=0 // pred_fallthru
    _

// kernel: language_model_onehot.3
$region0: #{language_model_onehot.3}
  #allocation0 [shape = 'u32[]', space=smem, size = 0x4, offset = 0x4, fixed_abs, tag = 'smem constant byte address 0x4 - core index']
  #allocation1 [shape = 'u32[144,128]{1,0:T(1,128)}', space=vmem, size = 0x12000, scoped, tag = 'internal scratch']
  #allocation2 [shape = 'f32[8,128]{1,0:T(8,128)}', space=vmem, size = 0x1000, scoped, tag = 'scratch operand']
  #allocation3 [shape = 'f32[8,128]{1,0:T(8,128)}', space=vmem, size = 0x1000, scoped, tag = 'scratch operand']
  #allocation4 [shape = 'f32[8,8,128]{2,1,0:T(8,128)}', space=vmem, size = 0x8000, scoped, tag = 'scratch operand']
  %s0 = inlined_call_operand.vmem [shape: f32[16,8,512], index: 0, kind: input, shape index: {}]
  %s1 = inlined_call_operand.vmem [shape: f32[128,512], index: 1, kind: input, shape index: {}]
  %s2 = inlined_call_operand.vmem [shape: f32[8,128], index: 2, kind: input, shape index: {}]
  %s3 = inlined_call_operand.vmem [shape: f32[8,128], index: 3, kind: input, shape index: {}]
  %s4 = inlined_call_operand.vmem [shape: f32[16,8,128], index: 4, kind: output, shape index: {0}]
  %s5 = inlined_call_operand.vmem [shape: f32[8,128], index: 5, kind: output, shape index: {1}]
  %s6 = inlined_call_operand.vmem [shape: f32[8,128], index: 6, kind: output, shape index: {2}]
  %7 = xla_tuple %s4, %s5, %s6
  %s8 = sld [smem:[#allocation0]]
  $region73: #{language_model_onehot.3} parent=0
    _
  %s10 = ssub.s32 1, %s8
  %s11 = scalar_select 0, %s10, %s8
  loop: start=0, step=1, limit=4
  $region2: #{language_model_onehot.3} parent=0 // loop_pre_header
    _
  $region3: #{language_model_onehot.3} parent=0 // loop_header
    %s13 = sphi 0, %s17
    %p14 = scmp.ge.s32.totalorder %s13, 4
    %s20 = sphi 0, %s32
    %s21 = sphi 0, %s28
    %s22 = sphi 0, %s20
    %s23 = sphi 0, %s21
    %s24 = sphi 0, %s22
    %s25 = sphi 0, %s23
    %s37 = sphi 0, %s39
    %s40 = sphi 0, %s37
    %s41 = sphi 0, %s40
    %s57 = sphi 0, %s41
    %s61 = sphi 0, %s61
    %s63 = sphi 0, %s61
    %s64 = sphi 0, %s63
    %s78 = sphi 0, %s64
    %s84 = sphi 0, %s86
    %s87 = sphi 0, %s84
    %s88 = sphi 0, %s87
    %s104 = sphi 0, %s88
    %s110 = sphi 0, %s112
    %s113 = sphi 0, %s110
    %s114 = sphi 0, %s113
    %s130 = sphi 0, %s114
    %s138 = sphi 0, %s140
    %s141 = sphi 0, %s138
    %s142 = sphi 0, %s141
    %s158 = sphi 0, %s142
    %s164 = sphi 0, %s166
    %s167 = sphi 0, %s164
    %s168 = sphi 0, %s167
    %s184 = sphi 0, %s168
    %s190 = sphi 0, %s192
    %s193 = sphi 0, %s190
    %s194 = sphi 0, %s193
    %s210 = sphi 0, %s194
  $region4: #{language_model_onehot.3} parent=0 // loop_header_branch
    %16 = sbr.rel (%p14) target = $region8
  $region5: #{language_model_onehot.3} parent=0 // loop_body
    %s18 = ssub.s32 %s13, 1
    %s19 = ssub.s32 %s13, 2
    %s26 = sadd.s32 1, %s21
    %p27 = scmp.ge.s32.totalorder %s26, 2
    %s28 = scalar_select %p27, 0, %s26
    %s29 = sadd.s32 1, %s20
    %s30 = scalar_select %p27, %s29, %s20
    %p31 = scmp.ge.s32.totalorder %s30, 1
    %s32 = scalar_select %p31, 0, %s30
    %s33 = ssub.s32 %s21, %s28
    %s34 = ssub.s32 %s20, %s32
    %s35 = sor.u32 %s33, %s34
    %p36 = scmp.eq.s32.totalorder %s35, 0
    %s38 = sadd.s32 %s37, 1
    %s39 = scalar_select %p36, %s37, %s38
    %p42 = pneg %p36
    %p43 = scmp.eq.s32.totalorder %s13, 1
    %p44 = por %p42, %p43
    %p45 = scmp.ne.s32.totalorder %s37, %s40
    %p46 = scmp.eq.s32.totalorder %s13, 0
    %p47 = por %p45, %p46
    %p48 = scmp.ne.s32.totalorder %s37, %s40
    %p49 = scmp.eq.s32.totalorder %s18, 1
    %p50 = por %p48, %p49
    %p51 = scmp.ne.s32.totalorder %s40, %s41
    %p52 = scmp.eq.s32.totalorder %s18, 0
    %p53 = por %p51, %p52
    %p54 = scmp.ne.s32.totalorder %s40, %s41
    %p55 = scmp.eq.s32.totalorder %s19, 1
    %p56 = por %p54, %p55
    %p58 = scmp.ne.s32.totalorder %s41, %s57
    %p59 = scmp.eq.s32.totalorder %s19, 0
    %p60 = por %p58, %p59
    %s62 = sadd.s32 %s61, 1
    %p65 = scmp.eq.s32.totalorder %s13, 1
    %p66 = scmp.ne.s32.totalorder %s61, %s63
    %p67 = scmp.eq.s32.totalorder %s13, 0
    %p68 = por %p66, %p67
    %p69 = scmp.ne.s32.totalorder %s61, %s63
    %p70 = scmp.eq.s32.totalorder %s18, 1
    %p71 = por %p69, %p70
    %p72 = scmp.ne.s32.totalorder %s63, %s64
    %p73 = scmp.eq.s32.totalorder %s18, 0
    %p74 = por %p72, %p73
    %p75 = scmp.ne.s32.totalorder %s63, %s64
    %p76 = scmp.eq.s32.totalorder %s19, 1
    %p77 = por %p75, %p76
    %p79 = scmp.ne.s32.totalorder %s64, %s78
    %p80 = scmp.eq.s32.totalorder %s19, 0
    %p81 = por %p79, %p80
    %s82 = ssub.s32 %s20, %s32
    %p83 = scmp.eq.s32.totalorder %s82, 0
    %s85 = sadd.s32 %s84, 1
    %s86 = scalar_select %p83, %s84, %s85
    %p89 = pneg %p83
    %p90 = scmp.eq.s32.totalorder %s13, 1
    %p91 = por %p89, %p90
    %p92 = scmp.ne.s32.totalorder %s84, %s87
    %p93 = scmp.eq.s32.totalorder %s13, 0
    %p94 = por %p92, %p93
    %p95 = scmp.ne.s32.totalorder %s84, %s87
    %p96 = scmp.eq.s32.totalorder %s18, 1
    %p97 = por %p95, %p96
    %p98 = scmp.ne.s32.totalorder %s87, %s88
    %p99 = scmp.eq.s32.totalorder %s18, 0
    %p100 = por %p98, %p99
    %p101 = scmp.ne.s32.totalorder %s87, %s88
    %p102 = scmp.eq.s32.totalorder %s19, 1
    %p103 = por %p101, %p102
    %p105 = scmp.ne.s32.totalorder %s88, %s104
    %p106 = scmp.eq.s32.totalorder %s19, 0
    %p107 = por %p105, %p106
    %s108 = ssub.s32 %s20, %s32
    %p109 = scmp.eq.s32.totalorder %s108, 0
    %s111 = sadd.s32 %s110, 1
    %s112 = scalar_select %p109, %s110, %s111
    %p115 = pneg %p109
    %p116 = scmp.eq.s32.totalorder %s13, 1
    %p117 = por %p115, %p116
    %p118 = scmp.ne.s32.totalorder %s110, %s113
    %p119 = scmp.eq.s32.totalorder %s13, 0
    %p120 = por %p118, %p119
    %p121 = scmp.ne.s32.totalorder %s110, %s113
    %p122 = scmp.eq.s32.totalorder %s18, 1
    %p123 = por %p121, %p122
    %p124 = scmp.ne.s32.totalorder %s113, %s114
    %p125 = scmp.eq.s32.totalorder %s18, 0
    %p126 = por %p124, %p125
    %p127 = scmp.ne.s32.totalorder %s113, %s114
    %p128 = scmp.eq.s32.totalorder %s19, 1
    %p129 = por %p127, %p128
    %p131 = scmp.ne.s32.totalorder %s114, %s130
    %p132 = scmp.eq.s32.totalorder %s19, 0
    %p133 = por %p131, %p132
    %s134 = ssub.s32 %s21, %s28
    %s135 = ssub.s32 %s20, %s32
    %s136 = sor.u32 %s134, %s135
    %p137 = scmp.eq.s32.totalorder %s136, 0
    %s139 = sadd.s32 %s138, 1
    %s140 = scalar_select %p137, %s138, %s139
    %p143 = pneg %p137
    %p144 = scmp.eq.s32.totalorder %s13, 1
    %p145 = por %p143, %p144
    %p146 = scmp.ne.s32.totalorder %s138, %s141
    %p147 = scmp.eq.s32.totalorder %s13, 0
    %p148 = por %p146, %p147
    %p149 = scmp.ne.s32.totalorder %s138, %s141
    %p150 = scmp.eq.s32.totalorder %s18, 1
    %p151 = por %p149, %p150
    %p152 = scmp.ne.s32.totalorder %s141, %s142
    %p153 = scmp.eq.s32.totalorder %s18, 0
    %p154 = por %p152, %p153
    %p155 = scmp.ne.s32.totalorder %s141, %s142
    %p156 = scmp.eq.s32.totalorder %s19, 1
    %p157 = por %p155, %p156
    %p159 = scmp.ne.s32.totalorder %s142, %s158
    %p160 = scmp.eq.s32.totalorder %s19, 0
    %p161 = por %p159, %p160
    %s162 = ssub.s32 %s20, %s32
    %p163 = scmp.eq.s32.totalorder %s162, 0
    %s165 = sadd.s32 %s164, 1
    %s166 = scalar_select %p163, %s164, %s165
    %p169 = pneg %p163
    %p170 = scmp.eq.s32.totalorder %s13, 1
    %p171 = por %p169, %p170
    %p172 = scmp.ne.s32.totalorder %s164, %s167
    %p173 = scmp.eq.s32.totalorder %s13, 0
    %p174 = por %p172, %p173
    %p175 = scmp.ne.s32.totalorder %s164, %s167
    %p176 = scmp.eq.s32.totalorder %s18, 1
    %p177 = por %p175, %p176
    %p178 = scmp.ne.s32.totalorder %s167, %s168
    %p179 = scmp.eq.s32.totalorder %s18, 0
    %p180 = por %p178, %p179
    %p181 = scmp.ne.s32.totalorder %s167, %s168
    %p182 = scmp.eq.s32.totalorder %s19, 1
    %p183 = por %p181, %p182
    %p185 = scmp.ne.s32.totalorder %s168, %s184
    %p186 = scmp.eq.s32.totalorder %s19, 0
    %p187 = por %p185, %p186
    %s188 = ssub.s32 %s20, %s32
    %p189 = scmp.eq.s32.totalorder %s188, 0
    %s191 = sadd.s32 %s190, 1
    %s192 = scalar_select %p189, %s190, %s191
    %p195 = pneg %p189
    %p196 = scmp.eq.s32.totalorder %s13, 1
    %p197 = por %p195, %p196
    %p198 = scmp.ne.s32.totalorder %s190, %s193
    %p199 = scmp.eq.s32.totalorder %s13, 0
    %p200 = por %p198, %p199
    %p201 = scmp.ne.s32.totalorder %s190, %s193
    %p202 = scmp.eq.s32.totalorder %s18, 1
    %p203 = por %p201, %p202
    %p204 = scmp.ne.s32.totalorder %s193, %s194
    %p205 = scmp.eq.s32.totalorder %s18, 0
    %p206 = por %p204, %p205
    %p207 = scmp.ne.s32.totalorder %s193, %s194
    %p208 = scmp.eq.s32.totalorder %s19, 1
    %p209 = por %p207, %p208
    %p211 = scmp.ne.s32.totalorder %s194, %s210
    %p212 = scmp.eq.s32.totalorder %s19, 0
    %p213 = por %p211, %p212
    %p214 = scmp.le.s32.totalorder 1, %s13
    %p215 = scmp.lt.s32.totalorder %s13, 3
    %p216 = pnand %p214, %p215
    %p217 = pneg %p216
    // Predicated region
    $region9: #{language_model_onehot.3} parent=5 // pred_check
      _
    $region10: #{language_model_onehot.3} parent=5 // pred_check_branch
      %219 = sbr.rel (%p216) target = $region12
    $region11: #{language_model_onehot.3} parent=5 // pred_region
      %s220 = ssub.s32 %s13, 1
      // Predicated region
      $region13: #{language_model_onehot.3} parent=11 // pred_check
        %p221 = pneg %p74
      $region14: #{language_model_onehot.3} parent=11 // pred_check_branch
        %223 = sbr.rel (%p221) target = $region16
      $region15: #{language_model_onehot.3} parent=11 // pred_region
        _
      $region16: #{language_model_onehot.3} parent=11 // pred_fallthru
        _
      // Predicated region
      $region17: #{language_model_onehot.3} parent=11 // pred_check
        %p224 = pneg %p100
      $region18: #{language_model_onehot.3} parent=11 // pred_check_branch
        %226 = sbr.rel (%p224) target = $region20
      $region19: #{language_model_onehot.3} parent=11 // pred_region
        %p227 = scmp.lt.s32.totalorder %s22, 0
        %s228 = scalar_select %p227, %s22, 0
        %s229 = smul.addr %s228, 8
        %s230 = scalar_lea.vmem %s2, %s229
      $region20: #{language_model_onehot.3} parent=11 // pred_fallthru
        _
      // Predicated region
      $region21: #{language_model_onehot.3} parent=11 // pred_check
        %p231 = pneg %p126
      $region22: #{language_model_onehot.3} parent=11 // pred_check_branch
        %233 = sbr.rel (%p231) target = $region24
      $region23: #{language_model_onehot.3} parent=11 // pred_region
        %p234 = scmp.lt.s32.totalorder %s22, 0
        %s235 = scalar_select %p234, %s22, 0
        %s236 = smul.addr %s235, 8
        %s237 = scalar_lea.vmem %s3, %s236
      $region24: #{language_model_onehot.3} parent=11 // pred_fallthru
        _
    $region12: #{language_model_onehot.3} parent=5 // pred_fallthru
      _
    %p238 = scmp.lt.s32.totalorder %s13, 2
    // Predicated region
    $region25: #{language_model_onehot.3} parent=5 // pred_check
      %p239 = pneg %p238
    $region26: #{language_model_onehot.3} parent=5 // pred_check_branch
      %241 = sbr.rel (%p239) target = $region28
    $region27: #{language_model_onehot.3} parent=5 // pred_region
      // Predicated region
      $region29: #{language_model_onehot.3} parent=27 // pred_check
        %p242 = pneg %p47
      $region30: #{language_model_onehot.3} parent=27 // pred_check_branch
        %244 = sbr.rel (%p242) target = $region32
      $region31: #{language_model_onehot.3} parent=27 // pred_region
        %s245 = smul.u32 8, %s21
        %p246 = scmp.lt.s32.totalorder %s245, 15
        %s247 = scalar_select %p246, %s245, 15
        %p248 = scmp.lt.s32.totalorder %s20, 0
        %s249 = scalar_select %p248, %s20, 0
        %s250 = smul.addr %s249, 4
        %s251 = smul.addr %s247, 4
        %s252 = sadd.s32 %s250, %s251
        %s253 = smul.addr %s252, 8
        %s254 = scalar_lea.vmem %s0, %s253
        %s255 = smul.u32 8, %s21
      $region32: #{language_model_onehot.3} parent=27 // pred_fallthru
        _
    $region28: #{language_model_onehot.3} parent=5 // pred_fallthru
      _
    %p256 = scmp.le.s32.totalorder 1, %s13
    %p257 = scmp.lt.s32.totalorder %s13, 3
    %p258 = pnand %p256, %p257
    %p259 = pneg %p258
    // Predicated region
    $region33: #{language_model_onehot.3} parent=5 // pred_check
      _
    $region34: #{language_model_onehot.3} parent=5 // pred_check_branch
      %261 = sbr.rel (%p258) target = $region36
    $region35: #{language_model_onehot.3} parent=5 // pred_region
      %s262 = ssub.s32 %s13, 1
      %s263 = smul.u32 8, %s23
      %p264 = scmp.lt.s32.totalorder %s263, 15
      %s265 = scalar_select %p264, %s263, 15
      %p266 = scmp.lt.s32.totalorder %s22, 0
      %s267 = scalar_select %p266, %s22, 0
      %s268 = smul.addr %s267, 4
      %s269 = smul.addr %s265, 4
      %s270 = sadd.s32 %s268, %s269
      %s271 = smul.addr %s270, 8
      %s272 = scalar_lea.vmem %s0, %s271
      %p273 = pneg %p53
      %p274 = pneg %p50
      %p275 = pneg %p74
      %p276 = pneg %p71
      %p277 = scmp.lt.s32.totalorder %s22, 0
      %s278 = scalar_select %p277, %s22, 0
      %s279 = smul.addr %s278, 8
      %s280 = scalar_lea.vmem %s2, %s279
      %p281 = pneg %p100
      %p282 = pneg %p97
      %p283 = scmp.lt.s32.totalorder %s22, 0
      %s284 = scalar_select %p283, %s22, 0
      %s285 = smul.addr %s284, 8
      %s286 = scalar_lea.vmem %s3, %s285
      %p287 = pneg %p126
      %p288 = pneg %p123
      %p289 = pneg %p154
      %p290 = pneg %p151
      %s291 = smul.u32 8, %s23
      %p292 = scmp.lt.s32.totalorder %s291, 15
      %s293 = scalar_select %p292, %s291, 15
      %p294 = scmp.lt.s32.totalorder %s22, 0
      %s295 = scalar_select %p294, %s22, 0
      %s296 = sadd.s32 %s295, %s293
      %s297 = smul.addr %s296, 8
      %s298 = scalar_lea.vmem %s4, %s297
      %p299 = pneg %p180
      %p300 = pneg %p177
      %p301 = scmp.lt.s32.totalorder %s22, 0
      %s302 = scalar_select %p301, %s22, 0
      %s303 = smul.addr %s302, 8
      %s304 = scalar_lea.vmem %s5, %s303
      %p305 = pneg %p206
      %p306 = pneg %p203
      %p307 = scmp.lt.s32.totalorder %s22, 0
      %s308 = scalar_select %p307, %s22, 0
      %s309 = smul.addr %s308, 8
      %s310 = scalar_lea.vmem %s6, %s309
      %s311 = smul.u32 8, %s23
      %p312 = scmp.lt.s32.totalorder %s311, 15
      %s313 = scalar_select %p312, %s311, 15
      %p314 = scmp.lt.s32.totalorder %s22, 0
      %s315 = scalar_select %p314, %s22, 0
      %s316 = smul.addr %s315, 4
      %s317 = smul.addr %s313, 4
      %s318 = sadd.s32 %s316, %s317
      %s319 = smul.addr %s318, 8
      %s320 = scalar_lea.vmem %s0, %s319
      %s321 = smul.u32 8, %s23
      %p322 = scmp.lt.s32.totalorder %s22, 0
      %s323 = scalar_select %p322, %s22, 0
      %s324 = smul.addr %s323, 8
      %s325 = scalar_lea.vmem %s2, %s324
      %p326 = scmp.lt.s32.totalorder %s22, 0
      %s327 = scalar_select %p326, %s22, 0
      %s328 = smul.addr %s327, 8
      %s329 = scalar_lea.vmem %s3, %s328
      %s330 = smul.u32 8, %s23
      %p331 = scmp.lt.s32.totalorder %s330, 15
      %s332 = scalar_select %p331, %s330, 15
      %p333 = scmp.lt.s32.totalorder %s22, 0
      %s334 = scalar_select %p333, %s22, 0
      %s335 = sadd.s32 %s334, %s332
      %s336 = smul.addr %s335, 8
      %s337 = scalar_lea.vmem %s4, %s336
      %s338 = smul.u32 8, %s23
      %p339 = scmp.lt.s32.totalorder %s22, 0
      %s340 = scalar_select %p339, %s22, 0
      %s341 = smul.addr %s340, 8
      %s342 = scalar_lea.vmem %s5, %s341
      %p343 = scmp.lt.s32.totalorder %s22, 0
      %s344 = scalar_select %p343, %s22, 0
      %s345 = smul.addr %s344, 8
      %s346 = scalar_lea.vmem %s6, %s345
      %p347 = scmp.eq.s32.totalorder %s23, 0
      // Predicated region
      $region37: #{language_model_onehot.3} parent=35 // pred_check
        %p348 = pneg %p347
      $region38: #{language_model_onehot.3} parent=35 // pred_check_branch
        %350 = sbr.rel (%p348) target = $region40
      $region39: #{language_model_onehot.3} parent=35 // pred_region
        %v351 = vld [vmem:[%s325] sm:$0xff]
        %352 = vst [vmem:[#allocation2] sm:$0xff] %v351
        %v353 = vld [vmem:[%s329] sm:$0xff]
        %354 = vst [vmem:[#allocation3] sm:$0xff] %v353
      $region40: #{language_model_onehot.3} parent=35 // pred_fallthru
        _
      %v355 = vld [vmem:[%s1] sm:$0xff]
      %v356 = vld [vmem:[%s1 + $0x8] sm:$0xff]
      %v357 = vld [vmem:[%s1 + $0x10] sm:$0xff]
      %v358 = vld [vmem:[%s1 + $0x18] sm:$0xff]
      %v359 = vld [vmem:[%s1 + $0x20] sm:$0xff]
      %v360 = vld [vmem:[%s1 + $0x28] sm:$0xff]
      %v361 = vld [vmem:[%s1 + $0x30] sm:$0xff]
      %v362 = vld [vmem:[%s1 + $0x38] sm:$0xff]
      %v363 = vld [vmem:[%s1 + $0x40] sm:$0xff]
      %v364 = vld [vmem:[%s1 + $0x48] sm:$0xff]
      %v365 = vld [vmem:[%s1 + $0x50] sm:$0xff]
      %v366 = vld [vmem:[%s1 + $0x58] sm:$0xff]
      %v367 = vld [vmem:[%s1 + $0x60] sm:$0xff]
      %v368 = vld [vmem:[%s1 + $0x68] sm:$0xff]
      %v369 = vld [vmem:[%s1 + $0x70] sm:$0xff]
      %v370 = vld [vmem:[%s1 + $0x78] sm:$0xff]
      %v371 = vld [vmem:[%s1 + $0x80] sm:$0xff]
      %v372 = vld [vmem:[%s1 + $0x88] sm:$0xff]
      %v373 = vld [vmem:[%s1 + $0x90] sm:$0xff]
      %v374 = vld [vmem:[%s1 + $0x98] sm:$0xff]
      %v375 = vld [vmem:[%s1 + $0xa0] sm:$0xff]
      %v376 = vld [vmem:[%s1 + $0xa8] sm:$0xff]
      %v377 = vld [vmem:[%s1 + $0xb0] sm:$0xff]
      %v378 = vld [vmem:[%s1 + $0xb8] sm:$0xff]
      %v379 = vld [vmem:[%s1 + $0xc0] sm:$0xff]
      %v380 = vld [vmem:[%s1 + $0xc8] sm:$0xff]
      %v381 = vld [vmem:[%s1 + $0xd0] sm:$0xff]
      %v382 = vld [vmem:[%s1 + $0xd8] sm:$0xff]
      %v383 = vld [vmem:[%s1 + $0xe0] sm:$0xff]
      %v384 = vld [vmem:[%s1 + $0xe8] sm:$0xff]
      %v385 = vld [vmem:[%s1 + $0xf0] sm:$0xff]
      %v386 = vld [vmem:[%s1 + $0xf8] sm:$0xff]
      %v387 = vld [vmem:[%s1 + $0x100] sm:$0xff]
      %v388 = vld [vmem:[%s1 + $0x108] sm:$0xff]
      %v389 = vld [vmem:[%s1 + $0x110] sm:$0xff]
      %v390 = vld [vmem:[%s1 + $0x118] sm:$0xff]
      %v391 = vld [vmem:[%s1 + $0x120] sm:$0xff]
      %v392 = vld [vmem:[%s1 + $0x128] sm:$0xff]
      %v393 = vld [vmem:[%s1 + $0x130] sm:$0xff]
      %v394 = vld [vmem:[%s1 + $0x138] sm:$0xff]
      %v395 = vld [vmem:[%s1 + $0x140] sm:$0xff]
      %v396 = vld [vmem:[%s1 + $0x148] sm:$0xff]
      %v397 = vld [vmem:[%s1 + $0x150] sm:$0xff]
      %v398 = vld [vmem:[%s1 + $0x158] sm:$0xff]
      %v399 = vld [vmem:[%s1 + $0x160] sm:$0xff]
      %v400 = vld [vmem:[%s1 + $0x168] sm:$0xff]
      %v401 = vld [vmem:[%s1 + $0x170] sm:$0xff]
      %v402 = vld [vmem:[%s1 + $0x178] sm:$0xff]
      %v403 = vld [vmem:[%s1 + $0x180] sm:$0xff]
      %v404 = vld [vmem:[%s1 + $0x188] sm:$0xff]
      %v405 = vld [vmem:[%s1 + $0x190] sm:$0xff]
      %v406 = vld [vmem:[%s1 + $0x198] sm:$0xff]
      %v407 = vld [vmem:[%s1 + $0x1a0] sm:$0xff]
      %v408 = vld [vmem:[%s1 + $0x1a8] sm:$0xff]
      %v409 = vld [vmem:[%s1 + $0x1b0] sm:$0xff]
      %v410 = vld [vmem:[%s1 + $0x1b8] sm:$0xff]
      %v411 = vld [vmem:[%s1 + $0x1c0] sm:$0xff]
      %v412 = vld [vmem:[%s1 + $0x1c8] sm:$0xff]
      %v413 = vld [vmem:[%s1 + $0x1d0] sm:$0xff]
      %v414 = vld [vmem:[%s1 + $0x1d8] sm:$0xff]
      %v415 = vld [vmem:[%s1 + $0x1e0] sm:$0xff]
      %v416 = vld [vmem:[%s1 + $0x1e8] sm:$0xff]
      %v417 = vld [vmem:[%s1 + $0x1f0] sm:$0xff]
      %v418 = vld [vmem:[%s1 + $0x1f8] sm:$0xff]
      %v419 = vld [vmem:[#allocation2] sm:$0xff]
      %v420 = vld [vmem:[#allocation3] sm:$0xff]
      %v421 = vld [vmem:[%s320] sm:$0xff]
      %v422 = vld [vmem:[%s320 + $0x8] sm:$0xff]
      %v423 = vld [vmem:[%s320 + $0x10] sm:$0xff]
      %v424 = vld [vmem:[%s320 + $0x18] sm:$0xff]
      %425 = vmatprep.subr.mxu0 %v356
      %426 = vmatpush1.msra.mxu0 %v355
      %427 = vmatprep.subr.mxu0 %v360
      %428 = vmatpush1.msra.mxu0 %v359
      %429 = vmatprep.subr.mxu0 %v364
      %430 = vmatpush1.msra.mxu0 %v363
      %431 = vmatprep.subr.mxu0 %v368
      %432 = vmatpush1.msra.mxu0 %v367
      %433 = vmatprep.subr.mxu0 %v372
      %434 = vmatpush1.msra.mxu0 %v371
      %435 = vmatprep.subr.mxu0 %v376
      %436 = vmatpush1.msra.mxu0 %v375
      %437 = vmatprep.subr.mxu0 %v380
      %438 = vmatpush1.msra.mxu0 %v379
      %439 = vmatprep.subr.mxu0 %v384
      %440 = vmatpush1.msra.mxu0 %v383
      %441 = vmatprep.subr.mxu0 %v388
      %442 = vmatpush1.msra.mxu0 %v387
      %443 = vmatprep.subr.mxu0 %v392
      %444 = vmatpush1.msra.mxu0 %v391
      %445 = vmatprep.subr.mxu0 %v396
      %446 = vmatpush1.msra.mxu0 %v395
      %447 = vmatprep.subr.mxu0 %v400
      %448 = vmatpush1.msra.mxu0 %v399
      %449 = vmatprep.subr.mxu0 %v404
      %450 = vmatpush1.msra.mxu0 %v403
      %451 = vmatprep.subr.mxu0 %v408
      %452 = vmatpush1.msra.mxu0 %v407
      %453 = vmatprep.subr.mxu0 %v412
      %454 = vmatpush1.msra.mxu0 %v411
      %455 = vmatprep.subr.mxu0 %v416
      %456 = vmatpush1.msra.mxu0 %v415
      %457 = vmatprep.subr.mxu0 0.0
      %458 = vmatpush1.msra.mxu0 0.0
      %459 = vmatprep.subr.mxu0 0.0
      %460 = vmatpush1.msra.mxu0 0.0
      %461 = vmatprep.subr.mxu0 0.0
      %462 = vmatpush1.msra.mxu0 0.0
      %463 = vmatprep.subr.mxu0 0.0
      %464 = vmatpush1.msra.mxu0 0.0
      %465 = vmatprep.subr.mxu0 0.0
      %466 = vmatpush1.msra.mxu0 0.0
      %467 = vmatprep.subr.mxu0 0.0
      %468 = vmatpush1.msra.mxu0 0.0
      %469 = vmatprep.subr.mxu0 0.0
      %470 = vmatpush1.msra.mxu0 0.0
      %471 = vmatprep.subr.mxu0 0.0
      %472 = vmatpush1.msra.mxu0 0.0
      %473 = vmatprep.subr.mxu0 0.0
      %474 = vmatpush1.msra.mxu0 0.0
      %475 = vmatprep.subr.mxu0 0.0
      %476 = vmatpush1.msra.mxu0 0.0
      %477 = vmatprep.subr.mxu0 0.0
      %478 = vmatpush1.msra.mxu0 0.0
      %479 = vmatprep.subr.mxu0 0.0
      %480 = vmatpush1.msra.mxu0 0.0
      %481 = vmatprep.subr.mxu0 0.0
      %482 = vmatpush1.msra.mxu0 0.0
      %483 = vmatprep.subr.mxu0 0.0
      %484 = vmatpush1.msra.mxu0 0.0
      %485 = vmatprep.subr.mxu0 0.0
      %486 = vmatpush1.msra.mxu0 0.0
      %487 = vmatprep.subr.mxu0 0.0
      %488 = vmatpush1.msra.mxu0 0.0
      %489 = vmatprep.mubr.f32.mxu0 0.0
      %490 = vmatmul.mubr.f32.gmra.mrb[0].mxu0 %v419
      %v491 = vpop.f32.mrb[0].mxu0
      %v492 = vadd.f32 0.0, %v491
      %v493 = vpop.f32.mrb[0].mxu0
      %v494 = vadd.f32 0.0, %v493
      %495 = vdwg.mxu0
      %496 = vmatprep.subr.mxu0 %v358
      %497 = vmatpush1.msra.mxu0 %v357
      %498 = vmatprep.subr.mxu0 %v362
      %499 = vmatpush1.msra.mxu0 %v361
      %500 = vmatprep.subr.mxu0 %v366
      %501 = vmatpush1.msra.mxu0 %v365
      %502 = vmatprep.subr.mxu0 %v370
      %503 = vmatpush1.msra.mxu0 %v369
      %504 = vmatprep.subr.mxu0 %v374
      %505 = vmatpush1.msra.mxu0 %v373
      %506 = vmatprep.subr.mxu0 %v378
      %507 = vmatpush1.msra.mxu0 %v377
      %508 = vmatprep.subr.mxu0 %v382
      %509 = vmatpush1.msra.mxu0 %v381
      %510 = vmatprep.subr.mxu0 %v386
      %511 = vmatpush1.msra.mxu0 %v385
      %512 = vmatprep.subr.mxu0 %v390
      %513 = vmatpush1.msra.mxu0 %v389
      %514 = vmatprep.subr.mxu0 %v394
      %515 = vmatpush1.msra.mxu0 %v393
      %516 = vmatprep.subr.mxu0 %v398
      %517 = vmatpush1.msra.mxu0 %v397
      %518 = vmatprep.subr.mxu0 %v402
      %519 = vmatpush1.msra.mxu0 %v401
      %520 = vmatprep.subr.mxu0 %v406
      %521 = vmatpush1.msra.mxu0 %v405
      %522 = vmatprep.subr.mxu0 %v410
      %523 = vmatpush1.msra.mxu0 %v409
      %524 = vmatprep.subr.mxu0 %v414
      %525 = vmatpush1.msra.mxu0 %v413
      %526 = vmatprep.subr.mxu0 %v418
      %527 = vmatpush1.msra.mxu0 %v417
      %528 = vmatprep.subr.mxu0 0.0
      %529 = vmatpush1.msra.mxu0 0.0
      %530 = vmatprep.subr.mxu0 0.0
      %531 = vmatpush1.msra.mxu0 0.0
      %532 = vmatprep.subr.mxu0 0.0
      %533 = vmatpush1.msra.mxu0 0.0
      %534 = vmatprep.subr.mxu0 0.0
      %535 = vmatpush1.msra.mxu0 0.0
      %536 = vmatprep.subr.mxu0 0.0
      %537 = vmatpush1.msra.mxu0 0.0
      %538 = vmatprep.subr.mxu0 0.0
      %539 = vmatpush1.msra.mxu0 0.0
      %540 = vmatprep.subr.mxu0 0.0
      %541 = vmatpush1.msra.mxu0 0.0
      %542 = vmatprep.subr.mxu0 0.0
      %543 = vmatpush1.msra.mxu0 0.0
      %544 = vmatprep.subr.mxu0 0.0
      %545 = vmatpush1.msra.mxu0 0.0
      %546 = vmatprep.subr.mxu0 0.0
      %547 = vmatpush1.msra.mxu0 0.0
      %548 = vmatprep.subr.mxu0 0.0
      %549 = vmatpush1.msra.mxu0 0.0
      %550 = vmatprep.subr.mxu0 0.0
      %551 = vmatpush1.msra.mxu0 0.0
      %552 = vmatprep.subr.mxu0 0.0
      %553 = vmatpush1.msra.mxu0 0.0
      %554 = vmatprep.subr.mxu0 0.0
      %555 = vmatpush1.msra.mxu0 0.0
      %556 = vmatprep.subr.mxu0 0.0
      %557 = vmatpush1.msra.mxu0 0.0
      %558 = vmatprep.subr.mxu0 0.0
      %559 = vmatpush1.msra.mxu0 0.0
      %560 = vmatprep.mubr.f32.mxu0 0.0
      %561 = vmatmul.mubr.f32.gmra.mrb[0].mxu0 %v419
      %v562 = vpop.f32.mrb[0].mxu0
      %v563 = vadd.f32 0.0, %v562
      %v564 = vpop.f32.mrb[0].mxu0
      %v565 = vadd.f32 0.0, %v564
      %566 = vdwg.mxu0
      %v567 = vadd.f32 %v421, %v492
      %v568 = vadd.f32 %v422, %v494
      %v569 = vadd.f32 %v423, %v563
      %v570 = vadd.f32 %v424, %v565
      %v571 = vxor.u32 %v567, 2147483648
      %v572 = vmul.f32 %v571, 1.442695
      %v573 = vpow.pop %v572
      %v574 = vadd.f32 %v573, 1.0
      %v575 = vrcp.pop %v574
      %v576 = vmul.f32 1.0, %v575
      %v577 = vxor.u32 %v568, 2147483648
      %v578 = vmul.f32 %v577, 1.442695
      %v579 = vpow.pop %v578
      %v580 = vadd.f32 %v579, 1.0
      %v581 = vrcp.pop %v580
      %v582 = vmul.f32 1.0, %v581
      %v583 = vtanh.pop %v569
      %v584 = vxor.u32 %v570, 2147483648
      %v585 = vmul.f32 %v584, 1.442695
      %v586 = vpow.pop %v585
      %v587 = vadd.f32 %v586, 1.0
      %v588 = vrcp.pop %v587
      %v589 = vmul.f32 1.0, %v588
      %v590 = vmul.f32 %v582, %v420
      %v591 = vmul.f32 %v576, %v583
      %v592 = vadd.f32 %v590, %v591
      %v593 = vtanh.pop %v592
      %v594 = vmul.f32 %v589, %v593
      %595 = vst [vmem:[#allocation4] sm:$0xff] %v594
      %s596 = scalar_lea.vmem %s320, 32
      %v597 = vld [vmem:[%s596] sm:$0xff]
      %v598 = vld [vmem:[%s596 + $0x8] sm:$0xff]
      %v599 = vld [vmem:[%s596 + $0x10] sm:$0xff]
      %v600 = vld [vmem:[%s596 + $0x18] sm:$0xff]
      %601 = vmatprep.subr.mxu0 %v356
      %602 = vmatpush1.msra.mxu0 %v355
      %603 = vmatprep.subr.mxu0 %v360
      %604 = vmatpush1.msra.mxu0 %v359
      %605 = vmatprep.subr.mxu0 %v364
      %606 = vmatpush1.msra.mxu0 %v363
      %607 = vmatprep.subr.mxu0 %v368
      %608 = vmatpush1.msra.mxu0 %v367
      %609 = vmatprep.subr.mxu0 %v372
      %610 = vmatpush1.msra.mxu0 %v371
      %611 = vmatprep.subr.mxu0 %v376
      %612 = vmatpush1.msra.mxu0 %v375
      %613 = vmatprep.subr.mxu0 %v380
      %614 = vmatpush1.msra.mxu0 %v379
      %615 = vmatprep.subr.mxu0 %v384
      %616 = vmatpush1.msra.mxu0 %v383
      %617 = vmatprep.subr.mxu0 %v388
      %618 = vmatpush1.msra.mxu0 %v387
      %619 = vmatprep.subr.mxu0 %v392
      %620 = vmatpush1.msra.mxu0 %v391
      %621 = vmatprep.subr.mxu0 %v396
      %622 = vmatpush1.msra.mxu0 %v395
      %623 = vmatprep.subr.mxu0 %v400
      %624 = vmatpush1.msra.mxu0 %v399
      %625 = vmatprep.subr.mxu0 %v404
      %626 = vmatpush1.msra.mxu0 %v403
      %627 = vmatprep.subr.mxu0 %v408
      %628 = vmatpush1.msra.mxu0 %v407
      %629 = vmatprep.subr.mxu0 %v412
      %630 = vmatpush1.msra.mxu0 %v411
      %631 = vmatprep.subr.mxu0 %v416
      %632 = vmatpush1.msra.mxu0 %v415
      %633 = vmatprep.subr.mxu0 0.0
      %634 = vmatpush1.msra.mxu0 0.0
      %635 = vmatprep.subr.mxu0 0.0
      %636 = vmatpush1.msra.mxu0 0.0
      %637 = vmatprep.subr.mxu0 0.0
      %638 = vmatpush1.msra.mxu0 0.0
      %639 = vmatprep.subr.mxu0 0.0
      %640 = vmatpush1.msra.mxu0 0.0
      %641 = vmatprep.subr.mxu0 0.0
      %642 = vmatpush1.msra.mxu0 0.0
      %643 = vmatprep.subr.mxu0 0.0
      %644 = vmatpush1.msra.mxu0 0.0
      %645 = vmatprep.subr.mxu0 0.0
      %646 = vmatpush1.msra.mxu0 0.0
      %647 = vmatprep.subr.mxu0 0.0
      %648 = vmatpush1.msra.mxu0 0.0
      %649 = vmatprep.subr.mxu0 0.0
      %650 = vmatpush1.msra.mxu0 0.0
      %651 = vmatprep.subr.mxu0 0.0
      %652 = vmatpush1.msra.mxu0 0.0
      %653 = vmatprep.subr.mxu0 0.0
      %654 = vmatpush1.msra.mxu0 0.0
      %655 = vmatprep.subr.mxu0 0.0
      %656 = vmatpush1.msra.mxu0 0.0
      %657 = vmatprep.subr.mxu0 0.0
      %658 = vmatpush1.msra.mxu0 0.0
      %659 = vmatprep.subr.mxu0 0.0
      %660 = vmatpush1.msra.mxu0 0.0
      %661 = vmatprep.subr.mxu0 0.0
      %662 = vmatpush1.msra.mxu0 0.0
      %663 = vmatprep.subr.mxu0 0.0
      %664 = vmatpush1.msra.mxu0 0.0
      %665 = vmatprep.mubr.f32.mxu0 0.0
      %666 = vmatmul.mubr.f32.gmra.mrb[0].mxu0 %v594
      %v667 = vpop.f32.mrb[0].mxu0
      %v668 = vadd.f32 0.0, %v667
      %v669 = vpop.f32.mrb[0].mxu0
      %v670 = vadd.f32 0.0, %v669
      %671 = vdwg.mxu0
      %672 = vmatprep.subr.mxu0 %v358
      %673 = vmatpush1.msra.mxu0 %v357
      %674 = vmatprep.subr.mxu0 %v362
      %675 = vmatpush1.msra.mxu0 %v361
      %676 = vmatprep.subr.mxu0 %v366
      %677 = vmatpush1.msra.mxu0 %v365
      %678 = vmatprep.subr.mxu0 %v370
      %679 = vmatpush1.msra.mxu0 %v369
      %680 = vmatprep.subr.mxu0 %v374
      %681 = vmatpush1.msra.mxu0 %v373
      %682 = vmatprep.subr.mxu0 %v378
      %683 = vmatpush1.msra.mxu0 %v377
      %684 = vmatprep.subr.mxu0 %v382
      %685 = vmatpush1.msra.mxu0 %v381
      %686 = vmatprep.subr.mxu0 %v386
      %687 = vmatpush1.msra.mxu0 %v385
      %688 = vmatprep.subr.mxu0 %v390
      %689 = vmatpush1.msra.mxu0 %v389
      %690 = vmatprep.subr.mxu0 %v394
      %691 = vmatpush1.msra.mxu0 %v393
      %692 = vmatprep.subr.mxu0 %v398
      %693 = vmatpush1.msra.mxu0 %v397
      %694 = vmatprep.subr.mxu0 %v402
      %695 = vmatpush1.msra.mxu0 %v401
      %696 = vmatprep.subr.mxu0 %v406
      %697 = vmatpush1.msra.mxu0 %v405
      %698 = vmatprep.subr.mxu0 %v410
      %699 = vmatpush1.msra.mxu0 %v409
      %700 = vmatprep.subr.mxu0 %v414
      %701 = vmatpush1.msra.mxu0 %v413
      %702 = vmatprep.subr.mxu0 %v418
      %703 = vmatpush1.msra.mxu0 %v417
      %704 = vmatprep.subr.mxu0 0.0
      %705 = vmatpush1.msra.mxu0 0.0
      %706 = vmatprep.subr.mxu0 0.0
      %707 = vmatpush1.msra.mxu0 0.0
      %708 = vmatprep.subr.mxu0 0.0
      %709 = vmatpush1.msra.mxu0 0.0
      %710 = vmatprep.subr.mxu0 0.0
      %711 = vmatpush1.msra.mxu0 0.0
      %712 = vmatprep.subr.mxu0 0.0
      %713 = vmatpush1.msra.mxu0 0.0
      %714 = vmatprep.subr.mxu0 0.0
      %715 = vmatpush1.msra.mxu0 0.0
      %716 = vmatprep.subr.mxu0 0.0
      %717 = vmatpush1.msra.mxu0 0.0
      %718 = vmatprep.subr.mxu0 0.0
      %719 = vmatpush1.msra.mxu0 0.0
      %720 = vmatprep.subr.mxu0 0.0
      %721 = vmatpush1.msra.mxu0 0.0
      %722 = vmatprep.subr.mxu0 0.0
      %723 = vmatpush1.msra.mxu0 0.0
      %724 = vmatprep.subr.mxu0 0.0
      %725 = vmatpush1.msra.mxu0 0.0
      %726 = vmatprep.subr.mxu0 0.0
      %727 = vmatpush1.msra.mxu0 0.0
      %728 = vmatprep.subr.mxu0 0.0
      %729 = vmatpush1.msra.mxu0 0.0
      %730 = vmatprep.subr.mxu0 0.0
      %731 = vmatpush1.msra.mxu0 0.0
      %732 = vmatprep.subr.mxu0 0.0
      %733 = vmatpush1.msra.mxu0 0.0
      %734 = vmatprep.subr.mxu0 0.0
      %735 = vmatpush1.msra.mxu0 0.0
      %736 = vmatprep.mubr.f32.mxu0 0.0
      %737 = vmatmul.mubr.f32.gmra.mrb[0].mxu0 %v594
      %v738 = vpop.f32.mrb[0].mxu0
      %v739 = vadd.f32 0.0, %v738
      %v740 = vpop.f32.mrb[0].mxu0
      %v741 = vadd.f32 0.0, %v740
      %742 = vdwg.mxu0
      %v743 = vadd.f32 %v597, %v668
      %v744 = vadd.f32 %v598, %v670
      %v745 = vadd.f32 %v599, %v739
      %v746 = vadd.f32 %v600, %v741
      %v747 = vxor.u32 %v743, 2147483648
      %v748 = vmul.f32 %v747, 1.442695
      %v749 = vpow.pop %v748
      %v750 = vadd.f32 %v749, 1.0
      %v751 = vrcp.pop %v750
      %v752 = vmul.f32 1.0, %v751
      %v753 = vxor.u32 %v744, 2147483648
      %v754 = vmul.f32 %v753, 1.442695
      %v755 = vpow.pop %v754
      %v756 = vadd.f32 %v755, 1.0
      %v757 = vrcp.pop %v756
      %v758 = vmul.f32 1.0, %v757
      %v759 = vtanh.pop %v745
      %v760 = vxor.u32 %v746, 2147483648
      %v761 = vmul.f32 %v760, 1.442695
      %v762 = vpow.pop %v761
      %v763 = vadd.f32 %v762, 1.0
      %v764 = vrcp.pop %v763
      %v765 = vmul.f32 1.0, %v764
      %v766 = vmul.f32 %v758, %v592
      %v767 = vmul.f32 %v752, %v759
      %v768 = vadd.f32 %v766, %v767
      %v769 = vtanh.pop %v768
      %v770 = vmul.f32 %v765, %v769
      %s771 = scalar_lea.vmem [#allocation4], 8
      %772 = vst [vmem:[%s771] sm:$0xff] %v770
      %s773 = scalar_lea.vmem %s320, 64
      %v774 = vld [vmem:[%s773] sm:$0xff]
      %v775 = vld [vmem:[%s773 + $0x8] sm:$0xff]
      %v776 = vld [vmem:[%s773 + $0x10] sm:$0xff]
      %v777 = vld [vmem:[%s773 + $0x18] sm:$0xff]
      %778 = vmatprep.subr.mxu0 %v356
      %779 = vmatpush1.msra.mxu0 %v355
      %780 = vmatprep.subr.mxu0 %v360
      %781 = vmatpush1.msra.mxu0 %v359
      %782 = vmatprep.subr.mxu0 %v364
      %783 = vmatpush1.msra.mxu0 %v363
      %784 = vmatprep.subr.mxu0 %v368
      %785 = vmatpush1.msra.mxu0 %v367
      %786 = vmatprep.subr.mxu0 %v372
      %787 = vmatpush1.msra.mxu0 %v371
      %788 = vmatprep.subr.mxu0 %v376
      %789 = vmatpush1.msra.mxu0 %v375
      %790 = vmatprep.subr.mxu0 %v380
      %791 = vmatpush1.msra.mxu0 %v379
      %792 = vmatprep.subr.mxu0 %v384
      %793 = vmatpush1.msra.mxu0 %v383
      %794 = vmatprep.subr.mxu0 %v388
      %795 = vmatpush1.msra.mxu0 %v387
      %796 = vmatprep.subr.mxu0 %v392
      %797 = vmatpush1.msra.mxu0 %v391
      %798 = vmatprep.subr.mxu0 %v396
      %799 = vmatpush1.msra.mxu0 %v395
      %800 = vmatprep.subr.mxu0 %v400
      %801 = vmatpush1.msra.mxu0 %v399
      %802 = vmatprep.subr.mxu0 %v404
      %803 = vmatpush1.msra.mxu0 %v403
      %804 = vmatprep.subr.mxu0 %v408
      %805 = vmatpush1.msra.mxu0 %v407
      %806 = vmatprep.subr.mxu0 %v412
      %807 = vmatpush1.msra.mxu0 %v411
      %808 = vmatprep.subr.mxu0 %v416
      %809 = vmatpush1.msra.mxu0 %v415
      %810 = vmatprep.subr.mxu0 0.0
      %811 = vmatpush1.msra.mxu0 0.0
      %812 = vmatprep.subr.mxu0 0.0
      %813 = vmatpush1.msra.mxu0 0.0
      %814 = vmatprep.subr.mxu0 0.0
      %815 = vmatpush1.msra.mxu0 0.0
      %816 = vmatprep.subr.mxu0 0.0
      %817 = vmatpush1.msra.mxu0 0.0
      %818 = vmatprep.subr.mxu0 0.0
      %819 = vmatpush1.msra.mxu0 0.0
      %820 = vmatprep.subr.mxu0 0.0
      %821 = vmatpush1.msra.mxu0 0.0
      %822 = vmatprep.subr.mxu0 0.0
      %823 = vmatpush1.msra.mxu0 0.0
      %824 = vmatprep.subr.mxu0 0.0
      %825 = vmatpush1.msra.mxu0 0.0
      %826 = vmatprep.subr.mxu0 0.0
      %827 = vmatpush1.msra.mxu0 0.0
      %828 = vmatprep.subr.mxu0 0.0
      %829 = vmatpush1.msra.mxu0 0.0
      %830 = vmatprep.subr.mxu0 0.0
      %831 = vmatpush1.msra.mxu0 0.0
      %832 = vmatprep.subr.mxu0 0.0
      %833 = vmatpush1.msra.mxu0 0.0
      %834 = vmatprep.subr.mxu0 0.0
      %835 = vmatpush1.msra.mxu0 0.0
      %836 = vmatprep.subr.mxu0 0.0
      %837 = vmatpush1.msra.mxu0 0.0
      %838 = vmatprep.subr.mxu0 0.0
      %839 = vmatpush1.msra.mxu0 0.0
      %840 = vmatprep.subr.mxu0 0.0
      %841 = vmatpush1.msra.mxu0 0.0
      %842 = vmatprep.mubr.f32.mxu0 0.0
      %843 = vmatmul.mubr.f32.gmra.mrb[0].mxu0 %v770
      %v844 = vpop.f32.mrb[0].mxu0
      %v845 = vadd.f32 0.0, %v844
      %v846 = vpop.f32.mrb[0].mxu0
      %v847 = vadd.f32 0.0, %v846
      %848 = vdwg.mxu0
      %849 = vmatprep.subr.mxu0 %v358
      %850 = vmatpush1.msra.mxu0 %v357
      %851 = vmatprep.subr.mxu0 %v362
      %852 = vmatpush1.msra.mxu0 %v361
      %853 = vmatprep.subr.mxu0 %v366
      %854 = vmatpush1.msra.mxu0 %v365
      %855 = vmatprep.subr.mxu0 %v370
      %856 = vmatpush1.msra.mxu0 %v369
      %857 = vmatprep.subr.mxu0 %v374
      %858 = vmatpush1.msra.mxu0 %v373
      %859 = vmatprep.subr.mxu0 %v378
      %860 = vmatpush1.msra.mxu0 %v377
      %861 = vmatprep.subr.mxu0 %v382
      %862 = vmatpush1.msra.mxu0 %v381
      %863 = vmatprep.subr.mxu0 %v386
      %864 = vmatpush1.msra.mxu0 %v385
      %865 = vmatprep.subr.mxu0 %v390
      %866 = vmatpush1.msra.mxu0 %v389
      %867 = vmatprep.subr.mxu0 %v394
      %868 = vmatpush1.msra.mxu0 %v393
      %869 = vmatprep.subr.mxu0 %v398
      %870 = vmatpush1.msra.mxu0 %v397
      %871 = vmatprep.subr.mxu0 %v402
      %872 = vmatpush1.msra.mxu0 %v401
      %873 = vmatprep.subr.mxu0 %v406
      %874 = vmatpush1.msra.mxu0 %v405
      %875 = vmatprep.subr.mxu0 %v410
      %876 = vmatpush1.msra.mxu0 %v409
      %877 = vmatprep.subr.mxu0 %v414
      %878 = vmatpush1.msra.mxu0 %v413
      %879 = vmatprep.subr.mxu0 %v418
      %880 = vmatpush1.msra.mxu0 %v417
      %881 = vmatprep.subr.mxu0 0.0
      %882 = vmatpush1.msra.mxu0 0.0
      %883 = vmatprep.subr.mxu0 0.0
      %884 = vmatpush1.msra.mxu0 0.0
      %885 = vmatprep.subr.mxu0 0.0
      %886 = vmatpush1.msra.mxu0 0.0
      %887 = vmatprep.subr.mxu0 0.0
      %888 = vmatpush1.msra.mxu0 0.0
      %889 = vmatprep.subr.mxu0 0.0
      %890 = vmatpush1.msra.mxu0 0.0
      %891 = vmatprep.subr.mxu0 0.0
      %892 = vmatpush1.msra.mxu0 0.0
      %893 = vmatprep.subr.mxu0 0.0
      %894 = vmatpush1.msra.mxu0 0.0
      %895 = vmatprep.subr.mxu0 0.0
      %896 = vmatpush1.msra.mxu0 0.0
      %897 = vmatprep.subr.mxu0 0.0
      %898 = vmatpush1.msra.mxu0 0.0
      %899 = vmatprep.subr.mxu0 0.0
      %900 = vmatpush1.msra.mxu0 0.0
      %901 = vmatprep.subr.mxu0 0.0
      %902 = vmatpush1.msra.mxu0 0.0
      %903 = vmatprep.subr.mxu0 0.0
      %904 = vmatpush1.msra.mxu0 0.0
      %905 = vmatprep.subr.mxu0 0.0
      %906 = vmatpush1.msra.mxu0 0.0
      %907 = vmatprep.subr.mxu0 0.0
      %908 = vmatpush1.msra.mxu0 0.0
      %909 = vmatprep.subr.mxu0 0.0
      %910 = vmatpush1.msra.mxu0 0.0
      %911 = vmatprep.subr.mxu0 0.0
      %912 = vmatpush1.msra.mxu0 0.0
      %913 = vmatprep.mubr.f32.mxu0 0.0
      %914 = vmatmul.mubr.f32.gmra.mrb[0].mxu0 %v770
      %v915 = vpop.f32.mrb[0].mxu0
      %v916 = vadd.f32 0.0, %v915
      %v917 = vpop.f32.mrb[0].mxu0
      %v918 = vadd.f32 0.0, %v917
      %919 = vdwg.mxu0
      %v920 = vadd.f32 %v774, %v845
      %v921 = vadd.f32 %v775, %v847
      %v922 = vadd.f32 %v776, %v916
      %v923 = vadd.f32 %v777, %v918
      %v924 = vxor.u32 %v920, 2147483648
      %v925 = vmul.f32 %v924, 1.442695
      %v926 = vpow.pop %v925
      %v927 = vadd.f32 %v926, 1.0
      %v928 = vrcp.pop %v927
      %v929 = vmul.f32 1.0, %v928
      %v930 = vxor.u32 %v921, 2147483648
      %v931 = vmul.f32 %v930, 1.442695
      %v932 = vpow.pop %v931
      %v933 = vadd.f32 %v932, 1.0
      %v934 = vrcp.pop %v933
      %v935 = vmul.f32 1.0, %v934
      %v936 = vtanh.pop %v922
      %v937 = vxor.u32 %v923, 2147483648
      %v938 = vmul.f32 %v937, 1.442695
      %v939 = vpow.pop %v938
      %v940 = vadd.f32 %v939, 1.0
      %v941 = vrcp.pop %v940
      %v942 = vmul.f32 1.0, %v941
      %v943 = vmul.f32 %v935, %v768
      %v944 = vmul.f32 %v929, %v936
      %v945 = vadd.f32 %v943, %v944
      %v946 = vtanh.pop %v945
      %v947 = vmul.f32 %v942, %v946
      %s948 = scalar_lea.vmem [#allocation4], 16
      %949 = vst [vmem:[%s948] sm:$0xff] %v947
      %s950 = scalar_lea.vmem %s320, 96
      %v951 = vld [vmem:[%s950] sm:$0xff]
      %v952 = vld [vmem:[%s950 + $0x8] sm:$0xff]
      %v953 = vld [vmem:[%s950 + $0x10] sm:$0xff]
      %v954 = vld [vmem:[%s950 + $0x18] sm:$0xff]
      %955 = vmatprep.subr.mxu0 %v356
      %956 = vmatpush1.msra.mxu0 %v355
      %957 = vmatprep.subr.mxu0 %v360
      %958 = vmatpush1.msra.mxu0 %v359
      %959 = vmatprep.subr.mxu0 %v364
      %960 = vmatpush1.msra.mxu0 %v363
      %961 = vmatprep.subr.mxu0 %v368
      %962 = vmatpush1.msra.mxu0 %v367
      %963 = vmatprep.subr.mxu0 %v372
      %964 = vmatpush1.msra.mxu0 %v371
      %965 = vmatprep.subr.mxu0 %v376
      %966 = vmatpush1.msra.mxu0 %v375
      %967 = vmatprep.subr.mxu0 %v380
      %968 = vmatpush1.msra.mxu0 %v379
      %969 = vmatprep.subr.mxu0 %v384
      %970 = vmatpush1.msra.mxu0 %v383
      %971 = vmatprep.subr.mxu0 %v388
      %972 = vmatpush1.msra.mxu0 %v387
      %973 = vmatprep.subr.mxu0 %v392
      %974 = vmatpush1.msra.mxu0 %v391
      %975 = vmatprep.subr.mxu0 %v396
      %976 = vmatpush1.msra.mxu0 %v395
      %977 = vmatprep.subr.mxu0 %v400
      %978 = vmatpush1.msra.mxu0 %v399
      %979 = vmatprep.subr.mxu0 %v404
      %980 = vmatpush1.msra.mxu0 %v403
      %981 = vmatprep.subr.mxu0 %v408
      %982 = vmatpush1.msra.mxu0 %v407
      %983 = vmatprep.subr.mxu0 %v412
      %984 = vmatpush1.msra.mxu0 %v411
      %985 = vmatprep.subr.mxu0 %v416
      %986 = vmatpush1.msra.mxu0 %v415
      %987 = vmatprep.subr.mxu0 0.0
      %988 = vmatpush1.msra.mxu0 0.0
      %989 = vmatprep.subr.mxu0 0.0
      %990 = vmatpush1.msra.mxu0 0.0
      %991 = vmatprep.subr.mxu0 0.0
      %992 = vmatpush1.msra.mxu0 0.0
      %993 = vmatprep.subr.mxu0 0.0
      %994 = vmatpush1.msra.mxu0 0.0
      %995 = vmatprep.subr.mxu0 0.0
      %996 = vmatpush1.msra.mxu0 0.0
      %997 = vmatprep.subr.mxu0 0.0
      %998 = vmatpush1.msra.mxu0 0.0
      %999 = vmatprep.subr.mxu0 0.0
      %1000 = vmatpush1.msra.mxu0 0.0
      %1001 = vmatprep.subr.mxu0 0.0
      %1002 = vmatpush1.msra.mxu0 0.0
      %1003 = vmatprep.subr.mxu0 0.0
      %1004 = vmatpush1.msra.mxu0 0.0
      %1005 = vmatprep.subr.mxu0 0.0
      %1006 = vmatpush1.msra.mxu0 0.0
      %1007 = vmatprep.subr.mxu0 0.0
      %1008 = vmatpush1.msra.mxu0 0.0
      %1009 = vmatprep.subr.mxu0 0.0
      %1010 = vmatpush1.msra.mxu0 0.0
      %1011 = vmatprep.subr.mxu0 0.0
      %1012 = vmatpush1.msra.mxu0 0.0
      %1013 = vmatprep.subr.mxu0 0.0
      %1014 = vmatpush1.msra.mxu0 0.0
      %1015 = vmatprep.subr.mxu0 0.0
      %1016 = vmatpush1.msra.mxu0 0.0
      %1017 = vmatprep.subr.mxu0 0.0
      %1018 = vmatpush1.msra.mxu0 0.0
      %1019 = vmatprep.mubr.f32.mxu0 0.0
      %1020 = vmatmul.mubr.f32.gmra.mrb[0].mxu0 %v947
      %v1021 = vpop.f32.mrb[0].mxu0
      %v1022 = vadd.f32 0.0, %v1021
      %v1023 = vpop.f32.mrb[0].mxu0
      %v1024 = vadd.f32 0.0, %v1023
      %1025 = vdwg.mxu0
      %1026 = vmatprep.subr.mxu0 %v358
      %1027 = vmatpush1.msra.mxu0 %v357
      %1028 = vmatprep.subr.mxu0 %v362
      %1029 = vmatpush1.msra.mxu0 %v361
      %1030 = vmatprep.subr.mxu0 %v366
      %1031 = vmatpush1.msra.mxu0 %v365
      %1032 = vmatprep.subr.mxu0 %v370
      %1033 = vmatpush1.msra.mxu0 %v369
      %1034 = vmatprep.subr.mxu0 %v374
      %1035 = vmatpush1.msra.mxu0 %v373
      %1036 = vmatprep.subr.mxu0 %v378
      %1037 = vmatpush1.msra.mxu0 %v377
      %1038 = vmatprep.subr.mxu0 %v382
      %1039 = vmatpush1.msra.mxu0 %v381
      %1040 = vmatprep.subr.mxu0 %v386
      %1041 = vmatpush1.msra.mxu0 %v385
      %1042 = vmatprep.subr.mxu0 %v390
      %1043 = vmatpush1.msra.mxu0 %v389
      %1044 = vmatprep.subr.mxu0 %v394
      %1045 = vmatpush1.msra.mxu0 %v393
      %1046 = vmatprep.subr.mxu0 %v398
      %1047 = vmatpush1.msra.mxu0 %v397
      %1048 = vmatprep.subr.mxu0 %v402
      %1049 = vmatpush1.msra.mxu0 %v401
      %1050 = vmatprep.subr.mxu0 %v406
      %1051 = vmatpush1.msra.mxu0 %v405
      %1052 = vmatprep.subr.mxu0 %v410
      %1053 = vmatpush1.msra.mxu0 %v409
      %1054 = vmatprep.subr.mxu0 %v414
      %1055 = vmatpush1.msra.mxu0 %v413
      %1056 = vmatprep.subr.mxu0 %v418
      %1057 = vmatpush1.msra.mxu0 %v417
      %1058 = vmatprep.subr.mxu0 0.0
      %1059 = vmatpush1.msra.mxu0 0.0
      %1060 = vmatprep.subr.mxu0 0.0
      %1061 = vmatpush1.msra.mxu0 0.0
      %1062 = vmatprep.subr.mxu0 0.0
      %1063 = vmatpush1.msra.mxu0 0.0
      %1064 = vmatprep.subr.mxu0 0.0
      %1065 = vmatpush1.msra.mxu0 0.0
      %1066 = vmatprep.subr.mxu0 0.0
      %1067 = vmatpush1.msra.mxu0 0.0
      %1068 = vmatprep.subr.mxu0 0.0
      %1069 = vmatpush1.msra.mxu0 0.0
      %1070 = vmatprep.subr.mxu0 0.0
      %1071 = vmatpush1.msra.mxu0 0.0
      %1072 = vmatprep.subr.mxu0 0.0
      %1073 = vmatpush1.msra.mxu0 0.0
      %1074 = vmatprep.subr.mxu0 0.0
      %1075 = vmatpush1.msra.mxu0 0.0
      %1076 = vmatprep.subr.mxu0 0.0
      %1077 = vmatpush1.msra.mxu0 0.0
      %1078 = vmatprep.subr.mxu0 0.0
      %1079 = vmatpush1.msra.mxu0 0.0
      %1080 = vmatprep.subr.mxu0 0.0
      %1081 = vmatpush1.msra.mxu0 0.0
      %1082 = vmatprep.subr.mxu0 0.0
      %1083 = vmatpush1.msra.mxu0 0.0
      %1084 = vmatprep.subr.mxu0 0.0
      %1085 = vmatpush1.msra.mxu0 0.0
      %1086 = vmatprep.subr.mxu0 0.0
      %1087 = vmatpush1.msra.mxu0 0.0
      %1088 = vmatprep.subr.mxu0 0.0
      %1089 = vmatpush1.msra.mxu0 0.0
      %1090 = vmatprep.mubr.f32.mxu0 0.0
      %1091 = vmatmul.mubr.f32.gmra.mrb[0].mxu0 %v947
      %v1092 = vpop.f32.mrb[0].mxu0
      %v1093 = vadd.f32 0.0, %v1092
      %v1094 = vpop.f32.mrb[0].mxu0
      %v1095 = vadd.f32 0.0, %v1094
      %1096 = vdwg.mxu0
      %v1097 = vadd.f32 %v951, %v1022
      %v1098 = vadd.f32 %v952, %v1024
      %v1099 = vadd.f32 %v953, %v1093
      %v1100 = vadd.f32 %v954, %v1095
      %v1101 = vxor.u32 %v1097, 2147483648
      %v1102 = vmul.f32 %v1101, 1.442695
      %v1103 = vpow.pop %v1102
      %v1104 = vadd.f32 %v1103, 1.0
      %v1105 = vrcp.pop %v1104
      %v1106 = vmul.f32 1.0, %v1105
      %v1107 = vxor.u32 %v1098, 2147483648
      %v1108 = vmul.f32 %v1107, 1.442695
      %v1109 = vpow.pop %v1108
      %v1110 = vadd.f32 %v1109, 1.0
      %v1111 = vrcp.pop %v1110
      %v1112 = vmul.f32 1.0, %v1111
      %v1113 = vtanh.pop %v1099
      %v1114 = vxor.u32 %v1100, 2147483648
      %v1115 = vmul.f32 %v1114, 1.442695
      %v1116 = vpow.pop %v1115
      %v1117 = vadd.f32 %v1116, 1.0
      %v1118 = vrcp.pop %v1117
      %v1119 = vmul.f32 1.0, %v1118
      %v1120 = vmul.f32 %v1112, %v945
      %v1121 = vmul.f32 %v1106, %v1113
      %v1122 = vadd.f32 %v1120, %v1121
      %v1123 = vtanh.pop %v1122
      %v1124 = vmul.f32 %v1119, %v1123
      %s1125 = scalar_lea.vmem [#allocation4], 24
      %1126 = vst [vmem:[%s1125] sm:$0xff] %v1124
      %s1127 = scalar_lea.vmem %s320, 128
      %v1128 = vld [vmem:[%s1127] sm:$0xff]
      %v1129 = vld [vmem:[%s1127 + $0x8] sm:$0xff]
      %v1130 = vld [vmem:[%s1127 + $0x10] sm:$0xff]
      %v1131 = vld [vmem:[%s1127 + $0x18] sm:$0xff]
      %1132 = vmatprep.subr.mxu0 %v356
      %1133 = vmatpush1.msra.mxu0 %v355
      %1134 = vmatprep.subr.mxu0 %v360
      %1135 = vmatpush1.msra.mxu0 %v359
      %1136 = vmatprep.subr.mxu0 %v364
      %1137 = vmatpush1.msra.mxu0 %v363
      %1138 = vmatprep.subr.mxu0 %v368
      %1139 = vmatpush1.msra.mxu0 %v367
      %1140 = vmatprep.subr.mxu0 %v372
      %1141 = vmatpush1.msra.mxu0 %v371
      %1142 = vmatprep.subr.mxu0 %v376
      %1143 = vmatpush1.msra.mxu0 %v375
      %1144 = vmatprep.subr.mxu0 %v380
      %1145 = vmatpush1.msra.mxu0 %v379
      %1146 = vmatprep.subr.mxu0 %v384
      %1147 = vmatpush1.msra.mxu0 %v383
      %1148 = vmatprep.subr.mxu0 %v388
      %1149 = vmatpush1.msra.mxu0 %v387
      %1150 = vmatprep.subr.mxu0 %v392
      %1151 = vmatpush1.msra.mxu0 %v391
      %1152 = vmatprep.subr.mxu0 %v396
      %1153 = vmatpush1.msra.mxu0 %v395
      %1154 = vmatprep.subr.mxu0 %v400
      %1155 = vmatpush1.msra.mxu0 %v399
      %1156 = vmatprep.subr.mxu0 %v404
      %1157 = vmatpush1.msra.mxu0 %v403
      %1158 = vmatprep.subr.mxu0 %v408
      %1159 = vmatpush1.msra.mxu0 %v407
      %1160 = vmatprep.subr.mxu0 %v412
      %1161 = vmatpush1.msra.mxu0 %v411
      %1162 = vmatprep.subr.mxu0 %v416
      %1163 = vmatpush1.msra.mxu0 %v415
      %1164 = vmatprep.subr.mxu0 0.0
      %1165 = vmatpush1.msra.mxu0 0.0
      %1166 = vmatprep.subr.mxu0 0.0
      %1167 = vmatpush1.msra.mxu0 0.0
      %1168 = vmatprep.subr.mxu0 0.0
      %1169 = vmatpush1.msra.mxu0 0.0
      %1170 = vmatprep.subr.mxu0 0.0
      %1171 = vmatpush1.msra.mxu0 0.0
      %1172 = vmatprep.subr.mxu0 0.0
      %1173 = vmatpush1.msra.mxu0 0.0
      %1174 = vmatprep.subr.mxu0 0.0
      %1175 = vmatpush1.msra.mxu0 0.0
      %1176 = vmatprep.subr.mxu0 0.0
      %1177 = vmatpush1.msra.mxu0 0.0
      %1178 = vmatprep.subr.mxu0 0.0
      %1179 = vmatpush1.msra.mxu0 0.0
      %1180 = vmatprep.subr.mxu0 0.0
      %1181 = vmatpush1.msra.mxu0 0.0
      %1182 = vmatprep.subr.mxu0 0.0
      %1183 = vmatpush1.msra.mxu0 0.0
      %1184 = vmatprep.subr.mxu0 0.0
      %1185 = vmatpush1.msra.mxu0 0.0
      %1186 = vmatprep.subr.mxu0 0.0
      %1187 = vmatpush1.msra.mxu0 0.0
      %1188 = vmatprep.subr.mxu0 0.0
      %1189 = vmatpush1.msra.mxu0 0.0
      %1190 = vmatprep.subr.mxu0 0.0
      %1191 = vmatpush1.msra.mxu0 0.0
      %1192 = vmatprep.subr.mxu0 0.0
      %1193 = vmatpush1.msra.mxu0 0.0
      %1194 = vmatprep.subr.mxu0 0.0
      %1195 = vmatpush1.msra.mxu0 0.0
      %1196 = vmatprep.mubr.f32.mxu0 0.0
      %1197 = vmatmul.mubr.f32.gmra.mrb[0].mxu0 %v1124
      %v1198 = vpop.f32.mrb[0].mxu0
      %v1199 = vadd.f32 0.0, %v1198
      %v1200 = vpop.f32.mrb[0].mxu0
      %v1201 = vadd.f32 0.0, %v1200
      %1202 = vdwg.mxu0
      %1203 = vmatprep.subr.mxu0 %v358
      %1204 = vmatpush1.msra.mxu0 %v357
      %1205 = vmatprep.subr.mxu0 %v362
      %1206 = vmatpush1.msra.mxu0 %v361
      %1207 = vmatprep.subr.mxu0 %v366
      %1208 = vmatpush1.msra.mxu0 %v365
      %1209 = vmatprep.subr.mxu0 %v370
      %1210 = vmatpush1.msra.mxu0 %v369
      %1211 = vmatprep.subr.mxu0 %v374
      %1212 = vmatpush1.msra.mxu0 %v373
      %1213 = vmatprep.subr.mxu0 %v378
      %1214 = vmatpush1.msra.mxu0 %v377
      %1215 = vmatprep.subr.mxu0 %v382
      %1216 = vmatpush1.msra.mxu0 %v381
      %1217 = vmatprep.subr.mxu0 %v386
      %1218 = vmatpush1.msra.mxu0 %v385
      %1219 = vmatprep.subr.mxu0 %v390
      %1220 = vmatpush1.msra.mxu0 %v389
      %1221 = vmatprep.subr.mxu0 %v394
      %1222 = vmatpush1.msra.mxu0 %v393
      %1223 = vmatprep.subr.mxu0 %v398
      %1224 = vmatpush1.msra.mxu0 %v397
      %1225 = vmatprep.subr.mxu0 %v402
      %1226 = vmatpush1.msra.mxu0 %v401
      %1227 = vmatprep.subr.mxu0 %v406
      %1228 = vmatpush1.msra.mxu0 %v405
      %1229 = vmatprep.subr.mxu0 %v410
      %1230 = vmatpush1.msra.mxu0 %v409
      %1231 = vmatprep.subr.mxu0 %v414
      %1232 = vmatpush1.msra.mxu0 %v413
      %1233 = vmatprep.subr.mxu0 %v418
      %1234 = vmatpush1.msra.mxu0 %v417
      %1235 = vmatprep.subr.mxu0 0.0
      %1236 = vmatpush1.msra.mxu0 0.0
      %1237 = vmatprep.subr.mxu0 0.0
      %1238 = vmatpush1.msra.mxu0 0.0
      %1239 = vmatprep.subr.mxu0 0.0
      %1240 = vmatpush1.msra.mxu0 0.0
      %1241 = vmatprep.subr.mxu0 0.0
      %1242 = vmatpush1.msra.mxu0 0.0
      %1243 = vmatprep.subr.mxu0 0.0
      %1244 = vmatpush1.msra.mxu0 0.0
      %1245 = vmatprep.subr.mxu0 0.0
      %1246 = vmatpush1.msra.mxu0 0.0
      %1247 = vmatprep.subr.mxu0 0.0
      %1248 = vmatpush1.msra.mxu0 0.0
      %1249 = vmatprep.subr.mxu0 0.0
      %1250 = vmatpush1.msra.mxu0 0.0
      %1251 = vmatprep.subr.mxu0 0.0
      %1252 = vmatpush1.msra.mxu0 0.0
      %1253 = vmatprep.subr.mxu0 0.0
      %1254 = vmatpush1.msra.mxu0 0.0
      %1255 = vmatprep.subr.mxu0 0.0
      %1256 = vmatpush1.msra.mxu0 0.0
      %1257 = vmatprep.subr.mxu0 0.0
      %1258 = vmatpush1.msra.mxu0 0.0
      %1259 = vmatprep.subr.mxu0 0.0
      %1260 = vmatpush1.msra.mxu0 0.0
      %1261 = vmatprep.subr.mxu0 0.0
      %1262 = vmatpush1.msra.mxu0 0.0
      %1263 = vmatprep.subr.mxu0 0.0
      %1264 = vmatpush1.msra.mxu0 0.0
      %1265 = vmatprep.subr.mxu0 0.0
      %1266 = vmatpush1.msra.mxu0 0.0
      %1267 = vmatprep.mubr.f32.mxu0 0.0
      %1268 = vmatmul.mubr.f32.gmra.mrb[0].mxu0 %v1124
      %v1269 = vpop.f32.mrb[0].mxu0
      %v1270 = vadd.f32 0.0, %v1269
      %v1271 = vpop.f32.mrb[0].mxu0
      %v1272 = vadd.f32 0.0, %v1271
      %1273 = vdwg.mxu0
      %v1274 = vadd.f32 %v1128, %v1199
      %v1275 = vadd.f32 %v1129, %v1201
      %v1276 = vadd.f32 %v1130, %v1270
      %v1277 = vadd.f32 %v1131, %v1272
      %v1278 = vxor.u32 %v1274, 2147483648
      %v1279 = vmul.f32 %v1278, 1.442695
      %v1280 = vpow.pop %v1279
      %v1281 = vadd.f32 %v1280, 1.0
      %v1282 = vrcp.pop %v1281
      %v1283 = vmul.f32 1.0, %v1282
      %v1284 = vxor.u32 %v1275, 2147483648
      %v1285 = vmul.f32 %v1284, 1.442695
      %v1286 = vpow.pop %v1285
      %v1287 = vadd.f32 %v1286, 1.0
      %v1288 = vrcp.pop %v1287
      %v1289 = vmul.f32 1.0, %v1288
      %v1290 = vtanh.pop %v1276
      %v1291 = vxor.u32 %v1277, 2147483648
      %v1292 = vmul.f32 %v1291, 1.442695
      %v1293 = vpow.pop %v1292
      %v1294 = vadd.f32 %v1293, 1.0
      %v1295 = vrcp.pop %v1294
      %v1296 = vmul.f32 1.0, %v1295
      %v1297 = vmul.f32 %v1289, %v1122
      %v1298 = vmul.f32 %v1283, %v1290
      %v1299 = vadd.f32 %v1297, %v1298
      %v1300 = vtanh.pop %v1299
      %v1301 = vmul.f32 %v1296, %v1300
      %s1302 = scalar_lea.vmem [#allocation4], 32
      %1303 = vst [vmem:[%s1302] sm:$0xff] %v1301
      %s1304 = scalar_lea.vmem %s320, 160
      %v1305 = vld [vmem:[%s1304] sm:$0xff]
      %v1306 = vld [vmem:[%s1304 + $0x8] sm:$0xff]
      %v1307 = vld [vmem:[%s1304 + $0x10] sm:$0xff]
      %v1308 = vld [vmem:[%s1304 + $0x18] sm:$0xff]
      %1309 = vmatprep.subr.mxu0 %v356
      %1310 = vmatpush1.msra.mxu0 %v355
      %1311 = vmatprep.subr.mxu0 %v360
      %1312 = vmatpush1.msra.mxu0 %v359
      %1313 = vmatprep.subr.mxu0 %v364
      %1314 = vmatpush1.msra.mxu0 %v363
      %1315 = vmatprep.subr.mxu0 %v368
      %1316 = vmatpush1.msra.mxu0 %v367
      %1317 = vmatprep.subr.mxu0 %v372
      %1318 = vmatpush1.msra.mxu0 %v371
      %1319 = vmatprep.subr.mxu0 %v376
      %1320 = vmatpush1.msra.mxu0 %v375
      %1321 = vmatprep.subr.mxu0 %v380
      %1322 = vmatpush1.msra.mxu0 %v379
      %1323 = vmatprep.subr.mxu0 %v384
      %1324 = vmatpush1.msra.mxu0 %v383
      %1325 = vmatprep.subr.mxu0 %v388
      %1326 = vmatpush1.msra.mxu0 %v387
      %1327 = vmatprep.subr.mxu0 %v392
      %1328 = vmatpush1.msra.mxu0 %v391
      %1329 = vmatprep.subr.mxu0 %v396
      %1330 = vmatpush1.msra.mxu0 %v395
      %1331 = vmatprep.subr.mxu0 %v400
      %1332 = vmatpush1.msra.mxu0 %v399
      %1333 = vmatprep.subr.mxu0 %v404
      %1334 = vmatpush1.msra.mxu0 %v403
      %1335 = vmatprep.subr.mxu0 %v408
      %1336 = vmatpush1.msra.mxu0 %v407
      %1337 = vmatprep.subr.mxu0 %v412
      %1338 = vmatpush1.msra.mxu0 %v411
      %1339 = vmatprep.subr.mxu0 %v416
      %1340 = vmatpush1.msra.mxu0 %v415
      %1341 = vmatprep.subr.mxu0 0.0
      %1342 = vmatpush1.msra.mxu0 0.0
      %1343 = vmatprep.subr.mxu0 0.0
      %1344 = vmatpush1.msra.mxu0 0.0
      %1345 = vmatprep.subr.mxu0 0.0
      %1346 = vmatpush1.msra.mxu0 0.0
      %1347 = vmatprep.subr.mxu0 0.0
      %1348 = vmatpush1.msra.mxu0 0.0
      %1349 = vmatprep.subr.mxu0 0.0
      %1350 = vmatpush1.msra.mxu0 0.0
      %1351 = vmatprep.subr.mxu0 0.0
      %1352 = vmatpush1.msra.mxu0 0.0
      %1353 = vmatprep.subr.mxu0 0.0
      %1354 = vmatpush1.msra.mxu0 0.0
      %1355 = vmatprep.subr.mxu0 0.0
      %1356 = vmatpush1.msra.mxu0 0.0
      %1357 = vmatprep.subr.mxu0 0.0
      %1358 = vmatpush1.msra.mxu0 0.0
      %1359 = vmatprep.subr.mxu0 0.0
      %1360 = vmatpush1.msra.mxu0 0.0
      %1361 = vmatprep.subr.mxu0 0.0
      %1362 = vmatpush1.msra.mxu0 0.0
      %1363 = vmatprep.subr.mxu0 0.0
      %1364 = vmatpush1.msra.mxu0 0.0
      %1365 = vmatprep.subr.mxu0 0.0
      %1366 = vmatpush1.msra.mxu0 0.0
      %1367 = vmatprep.subr.mxu0 0.0
      %1368 = vmatpush1.msra.mxu0 0.0
      %1369 = vmatprep.subr.mxu0 0.0
      %1370 = vmatpush1.msra.mxu0 0.0
      %1371 = vmatprep.subr.mxu0 0.0
      %1372 = vmatpush1.msra.mxu0 0.0
      %1373 = vmatprep.mubr.f32.mxu0 0.0
      %1374 = vmatmul.mubr.f32.gmra.mrb[0].mxu0 %v1301
      %v1375 = vpop.f32.mrb[0].mxu0
      %v1376 = vadd.f32 0.0, %v1375
      %v1377 = vpop.f32.mrb[0].mxu0
      %v1378 = vadd.f32 0.0, %v1377
      %1379 = vdwg.mxu0
      %1380 = vmatprep.subr.mxu0 %v358
      %1381 = vmatpush1.msra.mxu0 %v357
      %1382 = vmatprep.subr.mxu0 %v362
      %1383 = vmatpush1.msra.mxu0 %v361
      %1384 = vmatprep.subr.mxu0 %v366
      %1385 = vmatpush1.msra.mxu0 %v365
      %1386 = vmatprep.subr.mxu0 %v370
      %1387 = vmatpush1.msra.mxu0 %v369
      %1388 = vmatprep.subr.mxu0 %v374
      %1389 = vmatpush1.msra.mxu0 %v373
      %1390 = vmatprep.subr.mxu0 %v378
      %1391 = vmatpush1.msra.mxu0 %v377
      %1392 = vmatprep.subr.mxu0 %v382
      %1393 = vmatpush1.msra.mxu0 %v381
      %1394 = vmatprep.subr.mxu0 %v386
      %1395 = vmatpush1.msra.mxu0 %v385
      %1396 = vmatprep.subr.mxu0 %v390
      %1397 = vmatpush1.msra.mxu0 %v389
      %1398 = vmatprep.subr.mxu0 %v394
      %1399 = vmatpush1.msra.mxu0 %v393
      %1400 = vmatprep.subr.mxu0 %v398
      %1401 = vmatpush1.msra.mxu0 %v397
      %1402 = vmatprep.subr.mxu0 %v402
      %1403 = vmatpush1.msra.mxu0 %v401
      %1404 = vmatprep.subr.mxu0 %v406
      %1405 = vmatpush1.msra.mxu0 %v405
      %1406 = vmatprep.subr.mxu0 %v410
      %1407 = vmatpush1.msra.mxu0 %v409
      %1408 = vmatprep.subr.mxu0 %v414
      %1409 = vmatpush1.msra.mxu0 %v413
      %1410 = vmatprep.subr.mxu0 %v418
      %1411 = vmatpush1.msra.mxu0 %v417
      %1412 = vmatprep.subr.mxu0 0.0
      %1413 = vmatpush1.msra.mxu0 0.0
      %1414 = vmatprep.subr.mxu0 0.0
      %1415 = vmatpush1.msra.mxu0 0.0
      %1416 = vmatprep.subr.mxu0 0.0
      %1417 = vmatpush1.msra.mxu0 0.0
      %1418 = vmatprep.subr.mxu0 0.0
      %1419 = vmatpush1.msra.mxu0 0.0
      %1420 = vmatprep.subr.mxu0 0.0
      %1421 = vmatpush1.msra.mxu0 0.0
      %1422 = vmatprep.subr.mxu0 0.0
      %1423 = vmatpush1.msra.mxu0 0.0
      %1424 = vmatprep.subr.mxu0 0.0
      %1425 = vmatpush1.msra.mxu0 0.0
      %1426 = vmatprep.subr.mxu0 0.0
      %1427 = vmatpush1.msra.mxu0 0.0
      %1428 = vmatprep.subr.mxu0 0.0
      %1429 = vmatpush1.msra.mxu0 0.0
      %1430 = vmatprep.subr.mxu0 0.0
      %1431 = vmatpush1.msra.mxu0 0.0
      %1432 = vmatprep.subr.mxu0 0.0
      %1433 = vmatpush1.msra.mxu0 0.0
      %1434 = vmatprep.subr.mxu0 0.0
      %1435 = vmatpush1.msra.mxu0 0.0
      %1436 = vmatprep.subr.mxu0 0.0
      %1437 = vmatpush1.msra.mxu0 0.0
      %1438 = vmatprep.subr.mxu0 0.0
      %1439 = vmatpush1.msra.mxu0 0.0
      %1440 = vmatprep.subr.mxu0 0.0
      %1441 = vmatpush1.msra.mxu0 0.0
      %1442 = vmatprep.subr.mxu0 0.0
      %1443 = vmatpush1.msra.mxu0 0.0
      %1444 = vmatprep.mubr.f32.mxu0 0.0
      %1445 = vmatmul.mubr.f32.gmra.mrb[0].mxu0 %v1301
      %v1446 = vpop.f32.mrb[0].mxu0
      %v1447 = vadd.f32 0.0, %v1446
      %v1448 = vpop.f32.mrb[0].mxu0
      %v1449 = vadd.f32 0.0, %v1448
      %1450 = vdwg.mxu0
      %v1451 = vadd.f32 %v1305, %v1376
      %v1452 = vadd.f32 %v1306, %v1378
      %v1453 = vadd.f32 %v1307, %v1447
      %v1454 = vadd.f32 %v1308, %v1449
      %v1455 = vxor.u32 %v1451, 2147483648
      %v1456 = vmul.f32 %v1455, 1.442695
      %v1457 = vpow.pop %v1456
      %v1458 = vadd.f32 %v1457, 1.0
      %v1459 = vrcp.pop %v1458
      %v1460 = vmul.f32 1.0, %v1459
      %v1461 = vxor.u32 %v1452, 2147483648
      %v1462 = vmul.f32 %v1461, 1.442695
      %v1463 = vpow.pop %v1462
      %v1464 = vadd.f32 %v1463, 1.0
      %v1465 = vrcp.pop %v1464
      %v1466 = vmul.f32 1.0, %v1465
      %v1467 = vtanh.pop %v1453
      %v1468 = vxor.u32 %v1454, 2147483648
      %v1469 = vmul.f32 %v1468, 1.442695
      %v1470 = vpow.pop %v1469
      %v1471 = vadd.f32 %v1470, 1.0
      %v1472 = vrcp.pop %v1471
      %v1473 = vmul.f32 1.0, %v1472
      %v1474 = vmul.f32 %v1466, %v1299
      %v1475 = vmul.f32 %v1460, %v1467
      %v1476 = vadd.f32 %v1474, %v1475
      %v1477 = vtanh.pop %v1476
      %v1478 = vmul.f32 %v1473, %v1477
      %s1479 = scalar_lea.vmem [#allocation4], 40
      %1480 = vst [vmem:[%s1479] sm:$0xff] %v1478
      %s1481 = scalar_lea.vmem %s320, 192
      %v1482 = vld [vmem:[%s1481] sm:$0xff]
      %v1483 = vld [vmem:[%s1481 + $0x8] sm:$0xff]
      %v1484 = vld [vmem:[%s1481 + $0x10] sm:$0xff]
      %v1485 = vld [vmem:[%s1481 + $0x18] sm:$0xff]
      %1486 = vmatprep.subr.mxu0 %v356
      %1487 = vmatpush1.msra.mxu0 %v355
      %1488 = vmatprep.subr.mxu0 %v360
      %1489 = vmatpush1.msra.mxu0 %v359
      %1490 = vmatprep.subr.mxu0 %v364
      %1491 = vmatpush1.msra.mxu0 %v363
      %1492 = vmatprep.subr.mxu0 %v368
      %1493 = vmatpush1.msra.mxu0 %v367
      %1494 = vmatprep.subr.mxu0 %v372
      %1495 = vmatpush1.msra.mxu0 %v371
      %1496 = vmatprep.subr.mxu0 %v376
      %1497 = vmatpush1.msra.mxu0 %v375
      %1498 = vmatprep.subr.mxu0 %v380
      %1499 = vmatpush1.msra.mxu0 %v379
      %1500 = vmatprep.subr.mxu0 %v384
      %1501 = vmatpush1.msra.mxu0 %v383
      %1502 = vmatprep.subr.mxu0 %v388
      %1503 = vmatpush1.msra.mxu0 %v387
      %1504 = vmatprep.subr.mxu0 %v392
      %1505 = vmatpush1.msra.mxu0 %v391
      %1506 = vmatprep.subr.mxu0 %v396
      %1507 = vmatpush1.msra.mxu0 %v395
      %1508 = vmatprep.subr.mxu0 %v400
      %1509 = vmatpush1.msra.mxu0 %v399
      %1510 = vmatprep.subr.mxu0 %v404
      %1511 = vmatpush1.msra.mxu0 %v403
      %1512 = vmatprep.subr.mxu0 %v408
      %1513 = vmatpush1.msra.mxu0 %v407
      %1514 = vmatprep.subr.mxu0 %v412
      %1515 = vmatpush1.msra.mxu0 %v411
      %1516 = vmatprep.subr.mxu0 %v416
      %1517 = vmatpush1.msra.mxu0 %v415
      %1518 = vmatprep.subr.mxu0 0.0
      %1519 = vmatpush1.msra.mxu0 0.0
      %1520 = vmatprep.subr.mxu0 0.0
      %1521 = vmatpush1.msra.mxu0 0.0
      %1522 = vmatprep.subr.mxu0 0.0
      %1523 = vmatpush1.msra.mxu0 0.0
      %1524 = vmatprep.subr.mxu0 0.0
      %1525 = vmatpush1.msra.mxu0 0.0
      %1526 = vmatprep.subr.mxu0 0.0
      %1527 = vmatpush1.msra.mxu0 0.0
      %1528 = vmatprep.subr.mxu0 0.0
      %1529 = vmatpush1.msra.mxu0 0.0
      %1530 = vmatprep.subr.mxu0 0.0
      %1531 = vmatpush1.msra.mxu0 0.0
      %1532 = vmatprep.subr.mxu0 0.0
      %1533 = vmatpush1.msra.mxu0 0.0
      %1534 = vmatprep.subr.mxu0 0.0
      %1535 = vmatpush1.msra.mxu0 0.0
      %1536 = vmatprep.subr.mxu0 0.0
      %1537 = vmatpush1.msra.mxu0 0.0
      %1538 = vmatprep.subr.mxu0 0.0
      %1539 = vmatpush1.msra.mxu0 0.0
      %1540 = vmatprep.subr.mxu0 0.0
      %1541 = vmatpush1.msra.mxu0 0.0
      %1542 = vmatprep.subr.mxu0 0.0
      %1543 = vmatpush1.msra.mxu0 0.0
      %1544 = vmatprep.subr.mxu0 0.0
      %1545 = vmatpush1.msra.mxu0 0.0
      %1546 = vmatprep.subr.mxu0 0.0
      %1547 = vmatpush1.msra.mxu0 0.0
      %1548 = vmatprep.subr.mxu0 0.0
      %1549 = vmatpush1.msra.mxu0 0.0
      %1550 = vmatprep.mubr.f32.mxu0 0.0
      %1551 = vmatmul.mubr.f32.gmra.mrb[0].mxu0 %v1478
      %v1552 = vpop.f32.mrb[0].mxu0
      %v1553 = vadd.f32 0.0, %v1552
      %v1554 = vpop.f32.mrb[0].mxu0
      %v1555 = vadd.f32 0.0, %v1554
      %1556 = vdwg.mxu0
      %1557 = vmatprep.subr.mxu0 %v358
      %1558 = vmatpush1.msra.mxu0 %v357
      %1559 = vmatprep.subr.mxu0 %v362
      %1560 = vmatpush1.msra.mxu0 %v361
      %1561 = vmatprep.subr.mxu0 %v366
      %1562 = vmatpush1.msra.mxu0 %v365
      %1563 = vmatprep.subr.mxu0 %v370
      %1564 = vmatpush1.msra.mxu0 %v369
      %1565 = vmatprep.subr.mxu0 %v374
      %1566 = vmatpush1.msra.mxu0 %v373
      %1567 = vmatprep.subr.mxu0 %v378
      %1568 = vmatpush1.msra.mxu0 %v377
      %1569 = vmatprep.subr.mxu0 %v382
      %1570 = vmatpush1.msra.mxu0 %v381
      %1571 = vmatprep.subr.mxu0 %v386
      %1572 = vmatpush1.msra.mxu0 %v385
      %1573 = vmatprep.subr.mxu0 %v390
      %1574 = vmatpush1.msra.mxu0 %v389
      %1575 = vmatprep.subr.mxu0 %v394
      %1576 = vmatpush1.msra.mxu0 %v393
      %1577 = vmatprep.subr.mxu0 %v398
      %1578 = vmatpush1.msra.mxu0 %v397
      %1579 = vmatprep.subr.mxu0 %v402
      %1580 = vmatpush1.msra.mxu0 %v401
      %1581 = vmatprep.subr.mxu0 %v406
      %1582 = vmatpush1.msra.mxu0 %v405
      %1583 = vmatprep.subr.mxu0 %v410
      %1584 = vmatpush1.msra.mxu0 %v409
      %1585 = vmatprep.subr.mxu0 %v414
      %1586 = vmatpush1.msra.mxu0 %v413
      %1587 = vmatprep.subr.mxu0 %v418
      %1588 = vmatpush1.msra.mxu0 %v417
      %1589 = vmatprep.subr.mxu0 0.0
      %1590 = vmatpush1.msra.mxu0 0.0
      %1591 = vmatprep.subr.mxu0 0.0
      %1592 = vmatpush1.msra.mxu0 0.0
      %1593 = vmatprep.subr.mxu0 0.0
      %1594 = vmatpush1.msra.mxu0 0.0
      %1595 = vmatprep.subr.mxu0 0.0
      %1596 = vmatpush1.msra.mxu0 0.0
      %1597 = vmatprep.subr.mxu0 0.0
      %1598 = vmatpush1.msra.mxu0 0.0
      %1599 = vmatprep.subr.mxu0 0.0
      %1600 = vmatpush1.msra.mxu0 0.0
      %1601 = vmatprep.subr.mxu0 0.0
      %1602 = vmatpush1.msra.mxu0 0.0
      %1603 = vmatprep.subr.mxu0 0.0
      %1604 = vmatpush1.msra.mxu0 0.0
      %1605 = vmatprep.subr.mxu0 0.0
      %1606 = vmatpush1.msra.mxu0 0.0
      %1607 = vmatprep.subr.mxu0 0.0
      %1608 = vmatpush1.msra.mxu0 0.0
      %1609 = vmatprep.subr.mxu0 0.0
      %1610 = vmatpush1.msra.mxu0 0.0
      %1611 = vmatprep.subr.mxu0 0.0
      %1612 = vmatpush1.msra.mxu0 0.0
      %1613 = vmatprep.subr.mxu0 0.0
      %1614 = vmatpush1.msra.mxu0 0.0
      %1615 = vmatprep.subr.mxu0 0.0
      %1616 = vmatpush1.msra.mxu0 0.0
      %1617 = vmatprep.subr.mxu0 0.0
      %1618 = vmatpush1.msra.mxu0 0.0
      %1619 = vmatprep.subr.mxu0 0.0
      %1620 = vmatpush1.msra.mxu0 0.0
      %1621 = vmatprep.mubr.f32.mxu0 0.0
      %1622 = vmatmul.mubr.f32.gmra.mrb[0].mxu0 %v1478
      %v1623 = vpop.f32.mrb[0].mxu0
      %v1624 = vadd.f32 0.0, %v1623
      %v1625 = vpop.f32.mrb[0].mxu0
      %v1626 = vadd.f32 0.0, %v1625
      %1627 = vdwg.mxu0
      %v1628 = vadd.f32 %v1482, %v1553
      %v1629 = vadd.f32 %v1483, %v1555
      %v1630 = vadd.f32 %v1484, %v1624
      %v1631 = vadd.f32 %v1485, %v1626
      %v1632 = vxor.u32 %v1628, 2147483648
      %v1633 = vmul.f32 %v1632, 1.442695
      %v1634 = vpow.pop %v1633
      %v1635 = vadd.f32 %v1634, 1.0
      %v1636 = vrcp.pop %v1635
      %v1637 = vmul.f32 1.0, %v1636
      %v1638 = vxor.u32 %v1629, 2147483648
      %v1639 = vmul.f32 %v1638, 1.442695
      %v1640 = vpow.pop %v1639
      %v1641 = vadd.f32 %v1640, 1.0
      %v1642 = vrcp.pop %v1641
      %v1643 = vmul.f32 1.0, %v1642
      %v1644 = vtanh.pop %v1630
      %v1645 = vxor.u32 %v1631, 2147483648
      %v1646 = vmul.f32 %v1645, 1.442695
      %v1647 = vpow.pop %v1646
      %v1648 = vadd.f32 %v1647, 1.0
      %v1649 = vrcp.pop %v1648
      %v1650 = vmul.f32 1.0, %v1649
      %v1651 = vmul.f32 %v1643, %v1476
      %v1652 = vmul.f32 %v1637, %v1644
      %v1653 = vadd.f32 %v1651, %v1652
      %v1654 = vtanh.pop %v1653
      %v1655 = vmul.f32 %v1650, %v1654
      %s1656 = scalar_lea.vmem [#allocation4], 48
      %1657 = vst [vmem:[%s1656] sm:$0xff] %v1655
      %s1658 = scalar_lea.vmem %s320, 224
      %v1659 = vld [vmem:[%s1658] sm:$0xff]
      %v1660 = vld [vmem:[%s1658 + $0x8] sm:$0xff]
      %v1661 = vld [vmem:[%s1658 + $0x10] sm:$0xff]
      %v1662 = vld [vmem:[%s1658 + $0x18] sm:$0xff]
      %1663 = vmatprep.subr.mxu0 %v356
      %1664 = vmatpush1.msra.mxu0 %v355
      %1665 = vmatprep.subr.mxu0 %v360
      %1666 = vmatpush1.msra.mxu0 %v359
      %1667 = vmatprep.subr.mxu0 %v364
      %1668 = vmatpush1.msra.mxu0 %v363
      %1669 = vmatprep.subr.mxu0 %v368
      %1670 = vmatpush1.msra.mxu0 %v367
      %1671 = vmatprep.subr.mxu0 %v372
      %1672 = vmatpush1.msra.mxu0 %v371
      %1673 = vmatprep.subr.mxu0 %v376
      %1674 = vmatpush1.msra.mxu0 %v375
      %1675 = vmatprep.subr.mxu0 %v380
      %1676 = vmatpush1.msra.mxu0 %v379
      %1677 = vmatprep.subr.mxu0 %v384
      %1678 = vmatpush1.msra.mxu0 %v383
      %1679 = vmatprep.subr.mxu0 %v388
      %1680 = vmatpush1.msra.mxu0 %v387
      %1681 = vmatprep.subr.mxu0 %v392
      %1682 = vmatpush1.msra.mxu0 %v391
      %1683 = vmatprep.subr.mxu0 %v396
      %1684 = vmatpush1.msra.mxu0 %v395
      %1685 = vmatprep.subr.mxu0 %v400
      %1686 = vmatpush1.msra.mxu0 %v399
      %1687 = vmatprep.subr.mxu0 %v404
      %1688 = vmatpush1.msra.mxu0 %v403
      %1689 = vmatprep.subr.mxu0 %v408
      %1690 = vmatpush1.msra.mxu0 %v407
      %1691 = vmatprep.subr.mxu0 %v412
      %1692 = vmatpush1.msra.mxu0 %v411
      %1693 = vmatprep.subr.mxu0 %v416
      %1694 = vmatpush1.msra.mxu0 %v415
      %1695 = vmatprep.subr.mxu0 0.0
      %1696 = vmatpush1.msra.mxu0 0.0
      %1697 = vmatprep.subr.mxu0 0.0
      %1698 = vmatpush1.msra.mxu0 0.0
      %1699 = vmatprep.subr.mxu0 0.0
      %1700 = vmatpush1.msra.mxu0 0.0
      %1701 = vmatprep.subr.mxu0 0.0
      %1702 = vmatpush1.msra.mxu0 0.0
      %1703 = vmatprep.subr.mxu0 0.0
      %1704 = vmatpush1.msra.mxu0 0.0
      %1705 = vmatprep.subr.mxu0 0.0
      %1706 = vmatpush1.msra.mxu0 0.0
      %1707 = vmatprep.subr.mxu0 0.0
      %1708 = vmatpush1.msra.mxu0 0.0
      %1709 = vmatprep.subr.mxu0 0.0
      %1710 = vmatpush1.msra.mxu0 0.0
      %1711 = vmatprep.subr.mxu0 0.0
      %1712 = vmatpush1.msra.mxu0 0.0
      %1713 = vmatprep.subr.mxu0 0.0
      %1714 = vmatpush1.msra.mxu0 0.0
      %1715 = vmatprep.subr.mxu0 0.0
      %1716 = vmatpush1.msra.mxu0 0.0
      %1717 = vmatprep.subr.mxu0 0.0
      %1718 = vmatpush1.msra.mxu0 0.0
      %1719 = vmatprep.subr.mxu0 0.0
      %1720 = vmatpush1.msra.mxu0 0.0
      %1721 = vmatprep.subr.mxu0 0.0
      %1722 = vmatpush1.msra.mxu0 0.0
      %1723 = vmatprep.subr.mxu0 0.0
      %1724 = vmatpush1.msra.mxu0 0.0
      %1725 = vmatprep.subr.mxu0 0.0
      %1726 = vmatpush1.msra.mxu0 0.0
      %1727 = vmatprep.mubr.f32.mxu0 0.0
      %1728 = vmatmul.mubr.f32.gmra.mrb[0].mxu0 %v1655
      %v1729 = vpop.f32.mrb[0].mxu0
      %v1730 = vadd.f32 0.0, %v1729
      %v1731 = vpop.f32.mrb[0].mxu0
      %v1732 = vadd.f32 0.0, %v1731
      %1733 = vdwg.mxu0
      %1734 = vmatprep.subr.mxu0 %v358
      %1735 = vmatpush1.msra.mxu0 %v357
      %1736 = vmatprep.subr.mxu0 %v362
      %1737 = vmatpush1.msra.mxu0 %v361
      %1738 = vmatprep.subr.mxu0 %v366
      %1739 = vmatpush1.msra.mxu0 %v365
      %1740 = vmatprep.subr.mxu0 %v370
      %1741 = vmatpush1.msra.mxu0 %v369
      %1742 = vmatprep.subr.mxu0 %v374
      %1743 = vmatpush1.msra.mxu0 %v373
      %1744 = vmatprep.subr.mxu0 %v378
      %1745 = vmatpush1.msra.mxu0 %v377
      %1746 = vmatprep.subr.mxu0 %v382
      %1747 = vmatpush1.msra.mxu0 %v381
      %1748 = vmatprep.subr.mxu0 %v386
      %1749 = vmatpush1.msra.mxu0 %v385
      %1750 = vmatprep.subr.mxu0 %v390
      %1751 = vmatpush1.msra.mxu0 %v389
      %1752 = vmatprep.subr.mxu0 %v394
      %1753 = vmatpush1.msra.mxu0 %v393
      %1754 = vmatprep.subr.mxu0 %v398
      %1755 = vmatpush1.msra.mxu0 %v397
      %1756 = vmatprep.subr.mxu0 %v402
      %1757 = vmatpush1.msra.mxu0 %v401
      %1758 = vmatprep.subr.mxu0 %v406
      %1759 = vmatpush1.msra.mxu0 %v405
      %1760 = vmatprep.subr.mxu0 %v410
      %1761 = vmatpush1.msra.mxu0 %v409
      %1762 = vmatprep.subr.mxu0 %v414
      %1763 = vmatpush1.msra.mxu0 %v413
      %1764 = vmatprep.subr.mxu0 %v418
      %1765 = vmatpush1.msra.mxu0 %v417
      %1766 = vmatprep.subr.mxu0 0.0
      %1767 = vmatpush1.msra.mxu0 0.0
      %1768 = vmatprep.subr.mxu0 0.0
      %1769 = vmatpush1.msra.mxu0 0.0
      %1770 = vmatprep.subr.mxu0 0.0
      %1771 = vmatpush1.msra.mxu0 0.0
      %1772 = vmatprep.subr.mxu0 0.0
      %1773 = vmatpush1.msra.mxu0 0.0
      %1774 = vmatprep.subr.mxu0 0.0
      %1775 = vmatpush1.msra.mxu0 0.0
      %1776 = vmatprep.subr.mxu0 0.0
      %1777 = vmatpush1.msra.mxu0 0.0
      %1778 = vmatprep.subr.mxu0 0.0
      %1779 = vmatpush1.msra.mxu0 0.0
      %1780 = vmatprep.subr.mxu0 0.0
      %1781 = vmatpush1.msra.mxu0 0.0
      %1782 = vmatprep.subr.mxu0 0.0
      %1783 = vmatpush1.msra.mxu0 0.0
      %1784 = vmatprep.subr.mxu0 0.0
      %1785 = vmatpush1.msra.mxu0 0.0
      %1786 = vmatprep.subr.mxu0 0.0
      %1787 = vmatpush1.msra.mxu0 0.0
      %1788 = vmatprep.subr.mxu0 0.0
      %1789 = vmatpush1.msra.mxu0 0.0
      %1790 = vmatprep.subr.mxu0 0.0
      %1791 = vmatpush1.msra.mxu0 0.0
      %1792 = vmatprep.subr.mxu0 0.0
      %1793 = vmatpush1.msra.mxu0 0.0
      %1794 = vmatprep.subr.mxu0 0.0
      %1795 = vmatpush1.msra.mxu0 0.0
      %1796 = vmatprep.subr.mxu0 0.0
      %1797 = vmatpush1.msra.mxu0 0.0
      %1798 = vmatprep.mubr.f32.mxu0 0.0
      %1799 = vmatmul.mubr.f32.gmra.mrb[0].mxu0 %v1655
      %v1800 = vpop.f32.mrb[0].mxu0
      %v1801 = vadd.f32 0.0, %v1800
      %v1802 = vpop.f32.mrb[0].mxu0
      %v1803 = vadd.f32 0.0, %v1802
      %1804 = vdwg.mxu0
      %v1805 = vadd.f32 %v1659, %v1730
      %v1806 = vadd.f32 %v1660, %v1732
      %v1807 = vadd.f32 %v1661, %v1801
      %v1808 = vadd.f32 %v1662, %v1803
      %v1809 = vxor.u32 %v1805, 2147483648
      %v1810 = vmul.f32 %v1809, 1.442695
      %v1811 = vpow.pop %v1810
      %v1812 = vadd.f32 %v1811, 1.0
      %v1813 = vrcp.pop %v1812
      %v1814 = vmul.f32 1.0, %v1813
      %v1815 = vxor.u32 %v1806, 2147483648
      %v1816 = vmul.f32 %v1815, 1.442695
      %v1817 = vpow.pop %v1816
      %v1818 = vadd.f32 %v1817, 1.0
      %v1819 = vrcp.pop %v1818
      %v1820 = vmul.f32 1.0, %v1819
      %v1821 = vtanh.pop %v1807
      %v1822 = vxor.u32 %v1808, 2147483648
      %v1823 = vmul.f32 %v1822, 1.442695
      %v1824 = vpow.pop %v1823
      %v1825 = vadd.f32 %v1824, 1.0
      %v1826 = vrcp.pop %v1825
      %v1827 = vmul.f32 1.0, %v1826
      %v1828 = vmul.f32 %v1820, %v1653
      %v1829 = vmul.f32 %v1814, %v1821
      %v1830 = vadd.f32 %v1828, %v1829
      %v1831 = vtanh.pop %v1830
      %v1832 = vmul.f32 %v1827, %v1831
      %s1833 = scalar_lea.vmem [#allocation4], 56
      %1834 = vst [vmem:[%s1833] sm:$0xff] %v1832
      %1835 = vst [vmem:[#allocation2] sm:$0xff] %v1832
      %1836 = vst [vmem:[#allocation3] sm:$0xff] %v1830
      %v1837 = vld [vmem:[#allocation4] sm:$0xff]
      %v1838 = vld [vmem:[#allocation4 + $0x8] sm:$0xff]
      %v1839 = vld [vmem:[#allocation4 + $0x10] sm:$0xff]
      %v1840 = vld [vmem:[#allocation4 + $0x18] sm:$0xff]
      %v1841 = vld [vmem:[#allocation4 + $0x20] sm:$0xff]
      %v1842 = vld [vmem:[#allocation4 + $0x28] sm:$0xff]
      %v1843 = vld [vmem:[#allocation4 + $0x30] sm:$0xff]
      %v1844 = vld [vmem:[#allocation4 + $0x38] sm:$0xff]
      %1845 = vst [vmem:[%s337] sm:$0xff] %v1837
      %1846 = vst [vmem:[%s337 + $0x8] sm:$0xff] %v1838
      %1847 = vst [vmem:[%s337 + $0x10] sm:$0xff] %v1839
      %1848 = vst [vmem:[%s337 + $0x18] sm:$0xff] %v1840
      %1849 = vst [vmem:[%s337 + $0x20] sm:$0xff] %v1841
      %1850 = vst [vmem:[%s337 + $0x28] sm:$0xff] %v1842
      %1851 = vst [vmem:[%s337 + $0x30] sm:$0xff] %v1843
      %1852 = vst [vmem:[%s337 + $0x38] sm:$0xff] %v1844
      %p1853 = scmp.eq.s32.totalorder %s23, 1
      // Predicated region
      $region41: #{language_model_onehot.3} parent=35 // pred_check
        %p1854 = pneg %p1853
      $region42: #{language_model_onehot.3} parent=35 // pred_check_branch
        %1856 = sbr.rel (%p1854) target = $region44
      $region43: #{language_model_onehot.3} parent=35 // pred_region
        %1857 = vst [vmem:[%s342] sm:$0xff] %v1832
        %1858 = vst [vmem:[%s346] sm:$0xff] %v1830
      $region44: #{language_model_onehot.3} parent=35 // pred_fallthru
        _
      %s1859 = smul.u32 8, %s23
      %p1860 = scmp.lt.s32.totalorder %s1859, 15
      %s1861 = scalar_select %p1860, %s1859, 15
      %p1862 = scmp.lt.s32.totalorder %s22, 0
      %s1863 = scalar_select %p1862, %s22, 0
      %s1864 = sadd.s32 %s1863, %s1861
      %s1865 = smul.addr %s1864, 8
      %s1866 = scalar_lea.vmem %s4, %s1865
      %p1867 = scmp.lt.s32.totalorder %s22, 0
      %s1868 = scalar_select %p1867, %s22, 0
      %s1869 = smul.addr %s1868, 8
      %s1870 = scalar_lea.vmem %s5, %s1869
      %p1871 = scmp.lt.s32.totalorder %s22, 0
      %s1872 = scalar_select %p1871, %s22, 0
      %s1873 = smul.addr %s1872, 8
      %s1874 = scalar_lea.vmem %s6, %s1873
      // Predicated region
      $region45: #{language_model_onehot.3} parent=35 // pred_check
        %p1875 = pneg %p151
      $region46: #{language_model_onehot.3} parent=35 // pred_check_branch
        %1877 = sbr.rel (%p1875) target = $region48
      $region47: #{language_model_onehot.3} parent=35 // pred_region
        %s1878 = smul.u32 8, %s23
      $region48: #{language_model_onehot.3} parent=35 // pred_fallthru
        _
      // Predicated region
      $region49: #{language_model_onehot.3} parent=35 // pred_check
        %p1879 = pneg %p177
      $region50: #{language_model_onehot.3} parent=35 // pred_check_branch
        %1881 = sbr.rel (%p1879) target = $region52
      $region51: #{language_model_onehot.3} parent=35 // pred_region
        _
      $region52: #{language_model_onehot.3} parent=35 // pred_fallthru
        _
      // Predicated region
      $region53: #{language_model_onehot.3} parent=35 // pred_check
        %p1882 = pneg %p203
      $region54: #{language_model_onehot.3} parent=35 // pred_check_branch
        %1884 = sbr.rel (%p1882) target = $region56
      $region55: #{language_model_onehot.3} parent=35 // pred_region
        _
      $region56: #{language_model_onehot.3} parent=35 // pred_fallthru
        _
      // Predicated region
      $region57: #{language_model_onehot.3} parent=35 // pred_check
        %p1885 = pneg %p177
      $region58: #{language_model_onehot.3} parent=35 // pred_check_branch
        %1887 = sbr.rel (%p1885) target = $region60
      $region59: #{language_model_onehot.3} parent=35 // pred_region
        %p1888 = scmp.lt.s32.totalorder %s22, 0
        %s1889 = scalar_select %p1888, %s22, 0
        %s1890 = smul.addr %s1889, 8
        %s1891 = scalar_lea.vmem %s5, %s1890
      $region60: #{language_model_onehot.3} parent=35 // pred_fallthru
        _
      // Predicated region
      $region61: #{language_model_onehot.3} parent=35 // pred_check
        %p1892 = pneg %p203
      $region62: #{language_model_onehot.3} parent=35 // pred_check_branch
        %1894 = sbr.rel (%p1892) target = $region64
      $region63: #{language_model_onehot.3} parent=35 // pred_region
        %p1895 = scmp.lt.s32.totalorder %s22, 0
        %s1896 = scalar_select %p1895, %s22, 0
        %s1897 = smul.addr %s1896, 8
        %s1898 = scalar_lea.vmem %s6, %s1897
      $region64: #{language_model_onehot.3} parent=35 // pred_fallthru
        _
    $region36: #{language_model_onehot.3} parent=5 // pred_fallthru
      _
    %p1899 = scmp.le.s32.totalorder 2, %s13
    // Predicated region
    $region65: #{language_model_onehot.3} parent=5 // pred_check
      %p1900 = pneg %p1899
    $region66: #{language_model_onehot.3} parent=5 // pred_check_branch
      %1902 = sbr.rel (%p1900) target = $region68
    $region67: #{language_model_onehot.3} parent=5 // pred_region
      %s1903 = ssub.s32 %s13, 2
      // Predicated region
      $region69: #{language_model_onehot.3} parent=67 // pred_check
        %p1904 = pneg %p157
      $region70: #{language_model_onehot.3} parent=67 // pred_check_branch
        %1906 = sbr.rel (%p1904) target = $region72
      $region71: #{language_model_onehot.3} parent=67 // pred_region
        %s1907 = smul.u32 8, %s25
        %p1908 = scmp.lt.s32.totalorder %s1907, 15
        %s1909 = scalar_select %p1908, %s1907, 15
        %p1910 = scmp.lt.s32.totalorder %s24, 0
        %s1911 = scalar_select %p1910, %s24, 0
        %s1912 = sadd.s32 %s1911, %s1909
        %s1913 = smul.addr %s1912, 8
        %s1914 = scalar_lea.vmem %s4, %s1913
      $region72: #{language_model_onehot.3} parent=67 // pred_fallthru
        _
    $region68: #{language_model_onehot.3} parent=5 // pred_fallthru
      _
  $region6: #{language_model_onehot.3} parent=0 // loop_footer
    %s17 = sadd.s32 1, %s13
  $region7: #{language_model_onehot.3} parent=0 // loop_footer_branch
    %12 = sbr.rel target = $region3
  $region8: #{language_model_onehot.3} parent=0 // loop_exit
    _

// kernel: language_model_onehot.4
$region0: #{language_model_onehot.4}
  #allocation0 [shape = 'u32[]', space=smem, size = 0x4, offset = 0x4, fixed_abs, tag = 'smem constant byte address 0x4 - core index']
  #allocation1 [shape = 'u32[144,128]{1,0:T(1,128)}', space=vmem, size = 0x12000, scoped, tag = 'internal scratch']
  #allocation2 [shape = 'f32[8,128]{1,0:T(8,128)}', space=vmem, size = 0x1000, scoped, tag = 'scratch operand']
  #allocation3 [shape = 'f32[8,128]{1,0:T(8,128)}', space=vmem, size = 0x1000, scoped, tag = 'scratch operand']
  #allocation4 [shape = 'f32[8,8,128]{2,1,0:T(8,128)}', space=vmem, size = 0x8000, scoped, tag = 'scratch operand']
  #allocation5 [shape = 'f32[8,8,512]{2,1,0:T(8,128)}', space=vmem, size = 0x20000, scoped, tag = 'scratch operand']
  %s0 = inlined_call_operand.vmem [shape: f32[16,8,128], index: 0, kind: input, shape index: {}]
  %s1 = inlined_call_operand.vmem [shape: f32[128,512], index: 1, kind: input, shape index: {}]
  %s2 = inlined_call_operand.vmem [shape: f32[1,512], index: 2, kind: input, shape index: {}]
  %s3 = inlined_call_operand.vmem [shape: f32[128,512], index: 3, kind: input, shape index: {}]
  %s4 = inlined_call_operand.vmem [shape: f32[8,128], index: 4, kind: input, shape index: {}]
  %s5 = inlined_call_operand.vmem [shape: f32[8,128], index: 5, kind: input, shape index: {}]
  %s6 = inlined_call_operand.vmem [shape: f32[8,16,128], index: 6, kind: output, shape index: {0}]
  %s7 = inlined_call_operand.vmem [shape: f32[8,128], index: 7, kind: output, shape index: {1}]
  %s8 = inlined_call_operand.vmem [shape: f32[8,128], index: 8, kind: output, shape index: {2}]
  %9 = xla_tuple %s6, %s7, %s8
  %s10 = sld [smem:[#allocation0]]
  $region115: #{language_model_onehot.4} parent=0
    _
  %s12 = ssub.s32 1, %s10
  %s13 = scalar_select 0, %s12, %s10
  $region1: #{language_model_onehot.4} parent=0
    #allocation6 [shape = 'u8[65536]{0}', space=vmem, size = 0x10000, scoped, tag = 'output window, operand 0']
    loop: start=0, step=1, limit=4
    $region2: #{language_model_onehot.4} parent=1 // loop_pre_header
      _
    $region3: #{language_model_onehot.4} parent=1 // loop_header
      %s15 = sphi 0, %s19
      %p16 = scmp.ge.s32.totalorder %s15, 4
      %s22 = sphi 0, %s34
      %s23 = sphi 0, %s30
      %s24 = sphi 0, %s22
      %s25 = sphi 0, %s23
      %s26 = sphi 0, %s24
      %s27 = sphi 0, %s25
      %s39 = sphi 0, %s41
      %s42 = sphi 0, %s39
      %s43 = sphi 0, %s42
      %s59 = sphi 0, %s43
      %s63 = sphi 0, %s63
      %s65 = sphi 0, %s63
      %s66 = sphi 0, %s65
      %s80 = sphi 0, %s66
      %s84 = sphi 0, %s84
      %s86 = sphi 0, %s84
      %s87 = sphi 0, %s86
      %s101 = sphi 0, %s87
      %s105 = sphi 0, %s105
      %s107 = sphi 0, %s105
      %s108 = sphi 0, %s107
      %s122 = sphi 0, %s108
      %s128 = sphi 0, %s130
      %s131 = sphi 0, %s128
      %s132 = sphi 0, %s131
      %s148 = sphi 0, %s132
      %s154 = sphi 0, %s156
      %s157 = sphi 0, %s154
      %s158 = sphi 0, %s157
      %s174 = sphi 0, %s158
      %s182 = sphi 0, %s184
      %s185 = sphi 0, %s182
      %s186 = sphi 0, %s185
      %s202 = sphi 0, %s186
      %s208 = sphi 0, %s210
      %s211 = sphi 0, %s208
      %s212 = sphi 0, %s211
      %s228 = sphi 0, %s212
      %s234 = sphi 0, %s236
      %s237 = sphi 0, %s234
      %s238 = sphi 0, %s237
      %s254 = sphi 0, %s238
    $region4: #{language_model_onehot.4} parent=1 // loop_header_branch
      %18 = sbr.rel (%p16) target = $region8
    $region5: #{language_model_onehot.4} parent=1 // loop_body
      %s20 = ssub.s32 %s15, 1
      %s21 = ssub.s32 %s15, 2
      %s28 = sadd.s32 1, %s23
      %p29 = scmp.ge.s32.totalorder %s28, 2
      %s30 = scalar_select %p29, 0, %s28
      %s31 = sadd.s32 1, %s22
      %s32 = scalar_select %p29, %s31, %s22
      %p33 = scmp.ge.s32.totalorder %s32, 1
      %s34 = scalar_select %p33, 0, %s32
      %s35 = ssub.s32 %s23, %s30
      %s36 = ssub.s32 %s22, %s34
      %s37 = sor.u32 %s35, %s36
      %p38 = scmp.eq.s32.totalorder %s37, 0
      %s40 = sadd.s32 %s39, 1
      %s41 = scalar_select %p38, %s39, %s40
      %p44 = pneg %p38
      %p45 = scmp.eq.s32.totalorder %s15, 1
      %p46 = por %p44, %p45
      %p47 = scmp.ne.s32.totalorder %s39, %s42
      %p48 = scmp.eq.s32.totalorder %s15, 0
      %p49 = por %p47, %p48
      %p50 = scmp.ne.s32.totalorder %s39, %s42
      %p51 = scmp.eq.s32.totalorder %s20, 1
      %p52 = por %p50, %p51
      %p53 = scmp.ne.s32.totalorder %s42, %s43
      %p54 = scmp.eq.s32.totalorder %s20, 0
      %p55 = por %p53, %p54
      %p56 = scmp.ne.s32.totalorder %s42, %s43
      %p57 = scmp.eq.s32.totalorder %s21, 1
      %p58 = por %p56, %p57
      %p60 = scmp.ne.s32.totalorder %s43, %s59
      %p61 = scmp.eq.s32.totalorder %s21, 0
      %p62 = por %p60, %p61
      %s64 = sadd.s32 %s63, 1
      %p67 = scmp.eq.s32.totalorder %s15, 1
      %p68 = scmp.ne.s32.totalorder %s63, %s65
      %p69 = scmp.eq.s32.totalorder %s15, 0
      %p70 = por %p68, %p69
      %p71 = scmp.ne.s32.totalorder %s63, %s65
      %p72 = scmp.eq.s32.totalorder %s20, 1
      %p73 = por %p71, %p72
      %p74 = scmp.ne.s32.totalorder %s65, %s66
      %p75 = scmp.eq.s32.totalorder %s20, 0
      %p76 = por %p74, %p75
      %p77 = scmp.ne.s32.totalorder %s65, %s66
      %p78 = scmp.eq.s32.totalorder %s21, 1
      %p79 = por %p77, %p78
      %p81 = scmp.ne.s32.totalorder %s66, %s80
      %p82 = scmp.eq.s32.totalorder %s21, 0
      %p83 = por %p81, %p82
      %s85 = sadd.s32 %s84, 1
      %p88 = scmp.eq.s32.totalorder %s15, 1
      %p89 = scmp.ne.s32.totalorder %s84, %s86
      %p90 = scmp.eq.s32.totalorder %s15, 0
      %p91 = por %p89, %p90
      %p92 = scmp.ne.s32.totalorder %s84, %s86
      %p93 = scmp.eq.s32.totalorder %s20, 1
      %p94 = por %p92, %p93
      %p95 = scmp.ne.s32.totalorder %s86, %s87
      %p96 = scmp.eq.s32.totalorder %s20, 0
      %p97 = por %p95, %p96
      %p98 = scmp.ne.s32.totalorder %s86, %s87
      %p99 = scmp.eq.s32.totalorder %s21, 1
      %p100 = por %p98, %p99
      %p102 = scmp.ne.s32.totalorder %s87, %s101
      %p103 = scmp.eq.s32.totalorder %s21, 0
      %p104 = por %p102, %p103
      %s106 = sadd.s32 %s105, 1
      %p109 = scmp.eq.s32.totalorder %s15, 1
      %p110 = scmp.ne.s32.totalorder %s105, %s107
      %p111 = scmp.eq.s32.totalorder %s15, 0
      %p112 = por %p110, %p111
      %p113 = scmp.ne.s32.totalorder %s105, %s107
      %p114 = scmp.eq.s32.totalorder %s20, 1
      %p115 = por %p113, %p114
      %p116 = scmp.ne.s32.totalorder %s107, %s108
      %p117 = scmp.eq.s32.totalorder %s20, 0
      %p118 = por %p116, %p117
      %p119 = scmp.ne.s32.totalorder %s107, %s108
      %p120 = scmp.eq.s32.totalorder %s21, 1
      %p121 = por %p119, %p120
      %p123 = scmp.ne.s32.totalorder %s108, %s122
      %p124 = scmp.eq.s32.totalorder %s21, 0
      %p125 = por %p123, %p124
      %s126 = ssub.s32 %s22, %s34
      %p127 = scmp.eq.s32.totalorder %s126, 0
      %s129 = sadd.s32 %s128, 1
      %s130 = scalar_select %p127, %s128, %s129
      %p133 = pneg %p127
      %p134 = scmp.eq.s32.totalorder %s15, 1
      %p135 = por %p133, %p134
      %p136 = scmp.ne.s32.totalorder %s128, %s131
      %p137 = scmp.eq.s32.totalorder %s15, 0
      %p138 = por %p136, %p137
      %p139 = scmp.ne.s32.totalorder %s128, %s131
      %p140 = scmp.eq.s32.totalorder %s20, 1
      %p141 = por %p139, %p140
      %p142 = scmp.ne.s32.totalorder %s131, %s132
      %p143 = scmp.eq.s32.totalorder %s20, 0
      %p144 = por %p142, %p143
      %p145 = scmp.ne.s32.totalorder %s131, %s132
      %p146 = scmp.eq.s32.totalorder %s21, 1
      %p147 = por %p145, %p146
      %p149 = scmp.ne.s32.totalorder %s132, %s148
      %p150 = scmp.eq.s32.totalorder %s21, 0
      %p151 = por %p149, %p150
      %s152 = ssub.s32 %s22, %s34
      %p153 = scmp.eq.s32.totalorder %s152, 0
      %s155 = sadd.s32 %s154, 1
      %s156 = scalar_select %p153, %s154, %s155
      %p159 = pneg %p153
      %p160 = scmp.eq.s32.totalorder %s15, 1
      %p161 = por %p159, %p160
      %p162 = scmp.ne.s32.totalorder %s154, %s157
      %p163 = scmp.eq.s32.totalorder %s15, 0
      %p164 = por %p162, %p163
      %p165 = scmp.ne.s32.totalorder %s154, %s157
      %p166 = scmp.eq.s32.totalorder %s20, 1
      %p167 = por %p165, %p166
      %p168 = scmp.ne.s32.totalorder %s157, %s158
      %p169 = scmp.eq.s32.totalorder %s20, 0
      %p170 = por %p168, %p169
      %p171 = scmp.ne.s32.totalorder %s157, %s158
      %p172 = scmp.eq.s32.totalorder %s21, 1
      %p173 = por %p171, %p172
      %p175 = scmp.ne.s32.totalorder %s158, %s174
      %p176 = scmp.eq.s32.totalorder %s21, 0
      %p177 = por %p175, %p176
      %s178 = ssub.s32 %s22, %s34
      %s179 = ssub.s32 %s23, %s30
      %s180 = sor.u32 %s178, %s179
      %p181 = scmp.eq.s32.totalorder %s180, 0
      %s183 = sadd.s32 %s182, 1
      %s184 = scalar_select %p181, %s182, %s183
      %p187 = pneg %p181
      %p188 = scmp.eq.s32.totalorder %s15, 1
      %p189 = por %p187, %p188
      %p190 = scmp.ne.s32.totalorder %s182, %s185
      %p191 = scmp.eq.s32.totalorder %s15, 0
      %p192 = por %p190, %p191
      %p193 = scmp.ne.s32.totalorder %s182, %s185
      %p194 = scmp.eq.s32.totalorder %s20, 1
      %p195 = por %p193, %p194
      %p196 = scmp.ne.s32.totalorder %s185, %s186
      %p197 = scmp.eq.s32.totalorder %s20, 0
      %p198 = por %p196, %p197
      %p199 = scmp.ne.s32.totalorder %s185, %s186
      %p200 = scmp.eq.s32.totalorder %s21, 1
      %p201 = por %p199, %p200
      %p203 = scmp.ne.s32.totalorder %s186, %s202
      %p204 = scmp.eq.s32.totalorder %s21, 0
      %p205 = por %p203, %p204
      %s206 = ssub.s32 %s22, %s34
      %p207 = scmp.eq.s32.totalorder %s206, 0
      %s209 = sadd.s32 %s208, 1
      %s210 = scalar_select %p207, %s208, %s209
      %p213 = pneg %p207
      %p214 = scmp.eq.s32.totalorder %s15, 1
      %p215 = por %p213, %p214
      %p216 = scmp.ne.s32.totalorder %s208, %s211
      %p217 = scmp.eq.s32.totalorder %s15, 0
      %p218 = por %p216, %p217
      %p219 = scmp.ne.s32.totalorder %s208, %s211
      %p220 = scmp.eq.s32.totalorder %s20, 1
      %p221 = por %p219, %p220
      %p222 = scmp.ne.s32.totalorder %s211, %s212
      %p223 = scmp.eq.s32.totalorder %s20, 0
      %p224 = por %p222, %p223
      %p225 = scmp.ne.s32.totalorder %s211, %s212
      %p226 = scmp.eq.s32.totalorder %s21, 1
      %p227 = por %p225, %p226
      %p229 = scmp.ne.s32.totalorder %s212, %s228
      %p230 = scmp.eq.s32.totalorder %s21, 0
      %p231 = por %p229, %p230
      %s232 = ssub.s32 %s22, %s34
      %p233 = scmp.eq.s32.totalorder %s232, 0
      %s235 = sadd.s32 %s234, 1
      %s236 = scalar_select %p233, %s234, %s235
      %p239 = pneg %p233
      %p240 = scmp.eq.s32.totalorder %s15, 1
      %p241 = por %p239, %p240
      %p242 = scmp.ne.s32.totalorder %s234, %s237
      %p243 = scmp.eq.s32.totalorder %s15, 0
      %p244 = por %p242, %p243
      %p245 = scmp.ne.s32.totalorder %s234, %s237
      %p246 = scmp.eq.s32.totalorder %s20, 1
      %p247 = por %p245, %p246
      %p248 = scmp.ne.s32.totalorder %s237, %s238
      %p249 = scmp.eq.s32.totalorder %s20, 0
      %p250 = por %p248, %p249
      %p251 = scmp.ne.s32.totalorder %s237, %s238
      %p252 = scmp.eq.s32.totalorder %s21, 1
      %p253 = por %p251, %p252
      %p255 = scmp.ne.s32.totalorder %s238, %s254
      %p256 = scmp.eq.s32.totalorder %s21, 0
      %p257 = por %p255, %p256
      %p258 = scmp.le.s32.totalorder 1, %s15
      %p259 = scmp.lt.s32.totalorder %s15, 3
      %p260 = pnand %p258, %p259
      %p261 = pneg %p260
      // Predicated region
      $region9: #{language_model_onehot.4} parent=5 // pred_check
        _
      $region10: #{language_model_onehot.4} parent=5 // pred_check_branch
        %263 = sbr.rel (%p260) target = $region12
      $region11: #{language_model_onehot.4} parent=5 // pred_region
        %s264 = ssub.s32 %s15, 1
        // Predicated region
        $region13: #{language_model_onehot.4} parent=11 // pred_check
          %p265 = pneg %p76
        $region14: #{language_model_onehot.4} parent=11 // pred_check_branch
          %267 = sbr.rel (%p265) target = $region16
        $region15: #{language_model_onehot.4} parent=11 // pred_region
          _
        $region16: #{language_model_onehot.4} parent=11 // pred_fallthru
          _
        // Predicated region
        $region17: #{language_model_onehot.4} parent=11 // pred_check
          %p268 = pneg %p97
        $region18: #{language_model_onehot.4} parent=11 // pred_check_branch
          %270 = sbr.rel (%p268) target = $region20
        $region19: #{language_model_onehot.4} parent=11 // pred_region
          _
        $region20: #{language_model_onehot.4} parent=11 // pred_fallthru
          _
        // Predicated region
        $region21: #{language_model_onehot.4} parent=11 // pred_check
          %p271 = pneg %p118
        $region22: #{language_model_onehot.4} parent=11 // pred_check_branch
          %273 = sbr.rel (%p271) target = $region24
        $region23: #{language_model_onehot.4} parent=11 // pred_region
          _
        $region24: #{language_model_onehot.4} parent=11 // pred_fallthru
          _
        // Predicated region
        $region25: #{language_model_onehot.4} parent=11 // pred_check
          %p274 = pneg %p144
        $region26: #{language_model_onehot.4} parent=11 // pred_check_branch
          %276 = sbr.rel (%p274) target = $region28
        $region27: #{language_model_onehot.4} parent=11 // pred_region
          %p277 = scmp.lt.s32.totalorder %s24, 0
          %s278 = scalar_select %p277, %s24, 0
          %s279 = smul.addr %s278, 8
          %s280 = scalar_lea.vmem %s4, %s279
        $region28: #{language_model_onehot.4} parent=11 // pred_fallthru
          _
        // Predicated region
        $region29: #{language_model_onehot.4} parent=11 // pred_check
          %p281 = pneg %p170
        $region30: #{language_model_onehot.4} parent=11 // pred_check_branch
          %283 = sbr.rel (%p281) target = $region32
        $region31: #{language_model_onehot.4} parent=11 // pred_region
          %p284 = scmp.lt.s32.totalorder %s24, 0
          %s285 = scalar_select %p284, %s24, 0
          %s286 = smul.addr %s285, 8
          %s287 = scalar_lea.vmem %s5, %s286
        $region32: #{language_model_onehot.4} parent=11 // pred_fallthru
          _
      $region12: #{language_model_onehot.4} parent=5 // pred_fallthru
        _
      %p288 = scmp.lt.s32.totalorder %s15, 2
      // Predicated region
      $region33: #{language_model_onehot.4} parent=5 // pred_check
        %p289 = pneg %p288
      $region34: #{language_model_onehot.4} parent=5 // pred_check_branch
        %291 = sbr.rel (%p289) target = $region36
      $region35: #{language_model_onehot.4} parent=5 // pred_region
        // Predicated region
        $region37: #{language_model_onehot.4} parent=35 // pred_check
          %p292 = pneg %p49
        $region38: #{language_model_onehot.4} parent=35 // pred_check_branch
          %294 = sbr.rel (%p292) target = $region40
        $region39: #{language_model_onehot.4} parent=35 // pred_region
          %s295 = smul.u32 8, %s23
          %p296 = scmp.lt.s32.totalorder %s295, 15
          %s297 = scalar_select %p296, %s295, 15
          %p298 = scmp.lt.s32.totalorder %s22, 0
          %s299 = scalar_select %p298, %s22, 0
          %s300 = sadd.s32 %s299, %s297
          %s301 = smul.addr %s300, 8
          %s302 = scalar_lea.vmem %s0, %s301
          %s303 = smul.u32 8, %s23
        $region40: #{language_model_onehot.4} parent=35 // pred_fallthru
          _
      $region36: #{language_model_onehot.4} parent=5 // pred_fallthru
        _
      %p304 = scmp.le.s32.totalorder 1, %s15
      %p305 = scmp.lt.s32.totalorder %s15, 3
      %p306 = pnand %p304, %p305
      %p307 = pneg %p306
      // Predicated region
      $region41: #{language_model_onehot.4} parent=5 // pred_check
        _
      $region42: #{language_model_onehot.4} parent=5 // pred_check_branch
        %309 = sbr.rel (%p306) target = $region44
      $region43: #{language_model_onehot.4} parent=5 // pred_region
        %s310 = ssub.s32 %s15, 1
        %s311 = smul.u32 8, %s25
        %p312 = scmp.lt.s32.totalorder %s311, 15
        %s313 = scalar_select %p312, %s311, 15
        %p314 = scmp.lt.s32.totalorder %s24, 0
        %s315 = scalar_select %p314, %s24, 0
        %s316 = sadd.s32 %s315, %s313
        %s317 = smul.addr %s316, 8
        %s318 = scalar_lea.vmem %s0, %s317
        %p319 = pneg %p55
        %p320 = pneg %p52
        %p321 = pneg %p76
        %p322 = pneg %p73
        %p323 = pneg %p97
        %p324 = pneg %p94
        %p325 = pneg %p118
        %p326 = pneg %p115
        %p327 = scmp.lt.s32.totalorder %s24, 0
        %s328 = scalar_select %p327, %s24, 0
        %s329 = smul.addr %s328, 8
        %s330 = scalar_lea.vmem %s4, %s329
        %p331 = pneg %p144
        %p332 = pneg %p141
        %p333 = scmp.lt.s32.totalorder %s24, 0
        %s334 = scalar_select %p333, %s24, 0
        %s335 = smul.addr %s334, 8
        %s336 = scalar_lea.vmem %s5, %s335
        %p337 = pneg %p170
        %p338 = pneg %p167
        %p339 = pneg %p198
        %p340 = pneg %p195
        %s341 = sand.u32 %s185, 1
        %s342 = sand.u32 %s185, 1
        %s343 = smul.addr %s342, 64
        %s344 = scalar_lea.vmem [#allocation6], %s343
        %p345 = pneg %p224
        %p346 = pneg %p221
        %p347 = scmp.lt.s32.totalorder %s24, 0
        %s348 = scalar_select %p347, %s24, 0
        %s349 = smul.addr %s348, 8
        %s350 = scalar_lea.vmem %s7, %s349
        %p351 = pneg %p250
        %p352 = pneg %p247
        %p353 = scmp.lt.s32.totalorder %s24, 0
        %s354 = scalar_select %p353, %s24, 0
        %s355 = smul.addr %s354, 8
        %s356 = scalar_lea.vmem %s8, %s355
        %s357 = smul.u32 8, %s25
        %p358 = scmp.lt.s32.totalorder %s357, 15
        %s359 = scalar_select %p358, %s357, 15
        %p360 = scmp.lt.s32.totalorder %s24, 0
        %s361 = scalar_select %p360, %s24, 0
        %s362 = sadd.s32 %s361, %s359
        %s363 = smul.addr %s362, 8
        %s364 = scalar_lea.vmem %s0, %s363
        %s365 = smul.u32 8, %s25
        %p366 = scmp.lt.s32.totalorder %s24, 0
        %s367 = scalar_select %p366, %s24, 0
        %s368 = smul.addr %s367, 8
        %s369 = scalar_lea.vmem %s4, %s368
        %p370 = scmp.lt.s32.totalorder %s24, 0
        %s371 = scalar_select %p370, %s24, 0
        %s372 = smul.addr %s371, 8
        %s373 = scalar_lea.vmem %s5, %s372
        %s374 = smul.u32 8, %s24
        %p375 = scmp.lt.s32.totalorder %s24, 0
        %s376 = scalar_select %p375, %s24, 0
        %s377 = smul.addr %s376, 8
        %s378 = scalar_lea.vmem %s7, %s377
        %p379 = scmp.lt.s32.totalorder %s24, 0
        %s380 = scalar_select %p379, %s24, 0
        %s381 = smul.addr %s380, 8
        %s382 = scalar_lea.vmem %s8, %s381
        %p383 = scmp.eq.s32.totalorder %s25, 0
        // Predicated region
        $region45: #{language_model_onehot.4} parent=43 // pred_check
          %p384 = pneg %p383
        $region46: #{language_model_onehot.4} parent=43 // pred_check_branch
          %386 = sbr.rel (%p384) target = $region48
        $region47: #{language_model_onehot.4} parent=43 // pred_region
          %v387 = vld [vmem:[%s369] sm:$0xff]
          %388 = vst [vmem:[#allocation2] sm:$0xff] %v387
          %v389 = vld [vmem:[%s373] sm:$0xff]
          %390 = vst [vmem:[#allocation3] sm:$0xff] %v389
        $region48: #{language_model_onehot.4} parent=43 // pred_fallthru
          _
        %v391 = vld [vmem:[%s1] sm:$0xff]
        %v392 = vld [vmem:[%s1 + $0x8] sm:$0xff]
        %v393 = vld [vmem:[%s1 + $0x10] sm:$0xff]
        %v394 = vld [vmem:[%s1 + $0x18] sm:$0xff]
        %v395 = vld [vmem:[%s1 + $0x20] sm:$0xff]
        %v396 = vld [vmem:[%s1 + $0x28] sm:$0xff]
        %v397 = vld [vmem:[%s1 + $0x30] sm:$0xff]
        %v398 = vld [vmem:[%s1 + $0x38] sm:$0xff]
        %v399 = vld [vmem:[%s1 + $0x40] sm:$0xff]
        %v400 = vld [vmem:[%s1 + $0x48] sm:$0xff]
        %v401 = vld [vmem:[%s1 + $0x50] sm:$0xff]
        %v402 = vld [vmem:[%s1 + $0x58] sm:$0xff]
        %v403 = vld [vmem:[%s1 + $0x60] sm:$0xff]
        %v404 = vld [vmem:[%s1 + $0x68] sm:$0xff]
        %v405 = vld [vmem:[%s1 + $0x70] sm:$0xff]
        %v406 = vld [vmem:[%s1 + $0x78] sm:$0xff]
        %v407 = vld [vmem:[%s1 + $0x80] sm:$0xff]
        %v408 = vld [vmem:[%s1 + $0x88] sm:$0xff]
        %v409 = vld [vmem:[%s1 + $0x90] sm:$0xff]
        %v410 = vld [vmem:[%s1 + $0x98] sm:$0xff]
        %v411 = vld [vmem:[%s1 + $0xa0] sm:$0xff]
        %v412 = vld [vmem:[%s1 + $0xa8] sm:$0xff]
        %v413 = vld [vmem:[%s1 + $0xb0] sm:$0xff]
        %v414 = vld [vmem:[%s1 + $0xb8] sm:$0xff]
        %v415 = vld [vmem:[%s1 + $0xc0] sm:$0xff]
        %v416 = vld [vmem:[%s1 + $0xc8] sm:$0xff]
        %v417 = vld [vmem:[%s1 + $0xd0] sm:$0xff]
        %v418 = vld [vmem:[%s1 + $0xd8] sm:$0xff]
        %v419 = vld [vmem:[%s1 + $0xe0] sm:$0xff]
        %v420 = vld [vmem:[%s1 + $0xe8] sm:$0xff]
        %v421 = vld [vmem:[%s1 + $0xf0] sm:$0xff]
        %v422 = vld [vmem:[%s1 + $0xf8] sm:$0xff]
        %v423 = vld [vmem:[%s1 + $0x100] sm:$0xff]
        %v424 = vld [vmem:[%s1 + $0x108] sm:$0xff]
        %v425 = vld [vmem:[%s1 + $0x110] sm:$0xff]
        %v426 = vld [vmem:[%s1 + $0x118] sm:$0xff]
        %v427 = vld [vmem:[%s1 + $0x120] sm:$0xff]
        %v428 = vld [vmem:[%s1 + $0x128] sm:$0xff]
        %v429 = vld [vmem:[%s1 + $0x130] sm:$0xff]
        %v430 = vld [vmem:[%s1 + $0x138] sm:$0xff]
        %v431 = vld [vmem:[%s1 + $0x140] sm:$0xff]
        %v432 = vld [vmem:[%s1 + $0x148] sm:$0xff]
        %v433 = vld [vmem:[%s1 + $0x150] sm:$0xff]
        %v434 = vld [vmem:[%s1 + $0x158] sm:$0xff]
        %v435 = vld [vmem:[%s1 + $0x160] sm:$0xff]
        %v436 = vld [vmem:[%s1 + $0x168] sm:$0xff]
        %v437 = vld [vmem:[%s1 + $0x170] sm:$0xff]
        %v438 = vld [vmem:[%s1 + $0x178] sm:$0xff]
        %v439 = vld [vmem:[%s1 + $0x180] sm:$0xff]
        %v440 = vld [vmem:[%s1 + $0x188] sm:$0xff]
        %v441 = vld [vmem:[%s1 + $0x190] sm:$0xff]
        %v442 = vld [vmem:[%s1 + $0x198] sm:$0xff]
        %v443 = vld [vmem:[%s1 + $0x1a0] sm:$0xff]
        %v444 = vld [vmem:[%s1 + $0x1a8] sm:$0xff]
        %v445 = vld [vmem:[%s1 + $0x1b0] sm:$0xff]
        %v446 = vld [vmem:[%s1 + $0x1b8] sm:$0xff]
        %v447 = vld [vmem:[%s1 + $0x1c0] sm:$0xff]
        %v448 = vld [vmem:[%s1 + $0x1c8] sm:$0xff]
        %v449 = vld [vmem:[%s1 + $0x1d0] sm:$0xff]
        %v450 = vld [vmem:[%s1 + $0x1d8] sm:$0xff]
        %v451 = vld [vmem:[%s1 + $0x1e0] sm:$0xff]
        %v452 = vld [vmem:[%s1 + $0x1e8] sm:$0xff]
        %v453 = vld [vmem:[%s1 + $0x1f0] sm:$0xff]
        %v454 = vld [vmem:[%s1 + $0x1f8] sm:$0xff]
        %v455 = vld [vmem:[%s364] sm:$0xff]
        %v456 = vld [vmem:[%s364 + $0x8] sm:$0xff]
        %v457 = vld [vmem:[%s364 + $0x10] sm:$0xff]
        %v458 = vld [vmem:[%s364 + $0x18] sm:$0xff]
        %v459 = vld [vmem:[%s364 + $0x20] sm:$0xff]
        %v460 = vld [vmem:[%s364 + $0x28] sm:$0xff]
        %v461 = vld [vmem:[%s364 + $0x30] sm:$0xff]
        %v462 = vld [vmem:[%s364 + $0x38] sm:$0xff]
        %v463 = vld [vmem:[%s2] sm:$0xf]
        %v465 = vlaneseq
        %v466 = vshrl.u32 %v465, 7
        %v467 = vsub.s32 0, %v466
        %v468 = vrot.slane %v463, %v467
        %v469 = vlaneseq
        %v470 = vshrl.u32 %v469, 7
        %v471 = vsub.s32 1, %v470
        %v472 = vrot.slane %v463, %v471
        %v473 = vlaneseq
        %v474 = vshrl.u32 %v473, 7
        %v475 = vsub.s32 2, %v474
        %v476 = vrot.slane %v463, %v475
        %v477 = vlaneseq
        %v478 = vshrl.u32 %v477, 7
        %v479 = vsub.s32 3, %v478
        %v480 = vrot.slane %v463, %v479
        %485 = vmatprep.subr.mxu0 %v392
        %486 = vmatpush1.msra.mxu0 %v391
        %487 = vmatprep.subr.mxu0 %v396
        %488 = vmatpush1.msra.mxu0 %v395
        %489 = vmatprep.subr.mxu0 %v400
        %490 = vmatpush1.msra.mxu0 %v399
        %491 = vmatprep.subr.mxu0 %v404
        %492 = vmatpush1.msra.mxu0 %v403
        %493 = vmatprep.subr.mxu0 %v408
        %494 = vmatpush1.msra.mxu0 %v407
        %495 = vmatprep.subr.mxu0 %v412
        %496 = vmatpush1.msra.mxu0 %v411
        %497 = vmatprep.subr.mxu0 %v416
        %498 = vmatpush1.msra.mxu0 %v415
        %499 = vmatprep.subr.mxu0 %v420
        %500 = vmatpush1.msra.mxu0 %v419
        %501 = vmatprep.subr.mxu0 %v424
        %502 = vmatpush1.msra.mxu0 %v423
        %503 = vmatprep.subr.mxu0 %v428
        %504 = vmatpush1.msra.mxu0 %v427
        %505 = vmatprep.subr.mxu0 %v432
        %506 = vmatpush1.msra.mxu0 %v431
        %507 = vmatprep.subr.mxu0 %v436
        %508 = vmatpush1.msra.mxu0 %v435
        %509 = vmatprep.subr.mxu0 %v440
        %510 = vmatpush1.msra.mxu0 %v439
        %511 = vmatprep.subr.mxu0 %v444
        %512 = vmatpush1.msra.mxu0 %v443
        %513 = vmatprep.subr.mxu0 %v448
        %514 = vmatpush1.msra.mxu0 %v447
        %515 = vmatprep.subr.mxu0 %v452
        %516 = vmatpush1.msra.mxu0 %v451
        %517 = vmatprep.subr.mxu0 0.0
        %518 = vmatpush1.msra.mxu0 0.0
        %519 = vmatprep.subr.mxu0 0.0
        %520 = vmatpush1.msra.mxu0 0.0
        %521 = vmatprep.subr.mxu0 0.0
        %522 = vmatpush1.msra.mxu0 0.0
        %523 = vmatprep.subr.mxu0 0.0
        %524 = vmatpush1.msra.mxu0 0.0
        %525 = vmatprep.subr.mxu0 0.0
        %526 = vmatpush1.msra.mxu0 0.0
        %527 = vmatprep.subr.mxu0 0.0
        %528 = vmatpush1.msra.mxu0 0.0
        %529 = vmatprep.subr.mxu0 0.0
        %530 = vmatpush1.msra.mxu0 0.0
        %531 = vmatprep.subr.mxu0 0.0
        %532 = vmatpush1.msra.mxu0 0.0
        %533 = vmatprep.subr.mxu0 0.0
        %534 = vmatpush1.msra.mxu0 0.0
        %535 = vmatprep.subr.mxu0 0.0
        %536 = vmatpush1.msra.mxu0 0.0
        %537 = vmatprep.subr.mxu0 0.0
        %538 = vmatpush1.msra.mxu0 0.0
        %539 = vmatprep.subr.mxu0 0.0
        %540 = vmatpush1.msra.mxu0 0.0
        %541 = vmatprep.subr.mxu0 0.0
        %542 = vmatpush1.msra.mxu0 0.0
        %543 = vmatprep.subr.mxu0 0.0
        %544 = vmatpush1.msra.mxu0 0.0
        %545 = vmatprep.subr.mxu0 0.0
        %546 = vmatpush1.msra.mxu0 0.0
        %547 = vmatprep.subr.mxu0 0.0
        %548 = vmatpush1.msra.mxu0 0.0
        %549 = vmatprep.mubr.f32.mxu0 0.0
        %550 = vmatmul.mubr.f32.gmra.mrb[0].mxu0 %v455
        %v551 = vpop.f32.mrb[0].mxu0
        %v552 = vadd.f32 %v468, %v551
        %v553 = vpop.f32.mrb[0].mxu0
        %v554 = vadd.f32 %v472, %v553
        %555 = vmatprep.mubr.f32.mxu0 0.0
        %556 = vmatmul.mubr.f32.gmra.mrb[0].mxu0 %v456
        %v557 = vpop.f32.mrb[0].mxu0
        %v558 = vadd.f32 %v468, %v557
        %v559 = vpop.f32.mrb[0].mxu0
        %v560 = vadd.f32 %v472, %v559
        %561 = vmatprep.mubr.f32.mxu0 0.0
        %562 = vmatmul.mubr.f32.gmra.mrb[0].mxu0 %v457
        %v563 = vpop.f32.mrb[0].mxu0
        %v564 = vadd.f32 %v468, %v563
        %v565 = vpop.f32.mrb[0].mxu0
        %v566 = vadd.f32 %v472, %v565
        %567 = vmatprep.mubr.f32.mxu0 0.0
        %568 = vmatmul.mubr.f32.gmra.mrb[0].mxu0 %v458
        %v569 = vpop.f32.mrb[0].mxu0
        %v570 = vadd.f32 %v468, %v569
        %v571 = vpop.f32.mrb[0].mxu0
        %v572 = vadd.f32 %v472, %v571
        %573 = vmatprep.mubr.f32.mxu0 0.0
        %574 = vmatmul.mubr.f32.gmra.mrb[0].mxu0 %v459
        %v575 = vpop.f32.mrb[0].mxu0
        %v576 = vadd.f32 %v468, %v575
        %v577 = vpop.f32.mrb[0].mxu0
        %v578 = vadd.f32 %v472, %v577
        %579 = vmatprep.mubr.f32.mxu0 0.0
        %580 = vmatmul.mubr.f32.gmra.mrb[0].mxu0 %v460
        %v581 = vpop.f32.mrb[0].mxu0
        %v582 = vadd.f32 %v468, %v581
        %v583 = vpop.f32.mrb[0].mxu0
        %v584 = vadd.f32 %v472, %v583
        %585 = vmatprep.mubr.f32.mxu0 0.0
        %586 = vmatmul.mubr.f32.gmra.mrb[0].mxu0 %v461
        %v587 = vpop.f32.mrb[0].mxu0
        %v588 = vadd.f32 %v468, %v587
        %v589 = vpop.f32.mrb[0].mxu0
        %v590 = vadd.f32 %v472, %v589
        %591 = vmatprep.mubr.f32.mxu0 0.0
        %592 = vmatmul.mubr.f32.gmra.mrb[0].mxu0 %v462
        %v593 = vpop.f32.mrb[0].mxu0
        %v594 = vadd.f32 %v468, %v593
        %v595 = vpop.f32.mrb[0].mxu0
        %v596 = vadd.f32 %v472, %v595
        %597 = vdwg.mxu0
        %598 = vmatprep.subr.mxu0 %v394
        %599 = vmatpush1.msra.mxu0 %v393
        %600 = vmatprep.subr.mxu0 %v398
        %601 = vmatpush1.msra.mxu0 %v397
        %602 = vmatprep.subr.mxu0 %v402
        %603 = vmatpush1.msra.mxu0 %v401
        %604 = vmatprep.subr.mxu0 %v406
        %605 = vmatpush1.msra.mxu0 %v405
        %606 = vmatprep.subr.mxu0 %v410
        %607 = vmatpush1.msra.mxu0 %v409
        %608 = vmatprep.subr.mxu0 %v414
        %609 = vmatpush1.msra.mxu0 %v413
        %610 = vmatprep.subr.mxu0 %v418
        %611 = vmatpush1.msra.mxu0 %v417
        %612 = vmatprep.subr.mxu0 %v422
        %613 = vmatpush1.msra.mxu0 %v421
        %614 = vmatprep.subr.mxu0 %v426
        %615 = vmatpush1.msra.mxu0 %v425
        %616 = vmatprep.subr.mxu0 %v430
        %617 = vmatpush1.msra.mxu0 %v429
        %618 = vmatprep.subr.mxu0 %v434
        %619 = vmatpush1.msra.mxu0 %v433
        %620 = vmatprep.subr.mxu0 %v438
        %621 = vmatpush1.msra.mxu0 %v437
        %622 = vmatprep.subr.mxu0 %v442
        %623 = vmatpush1.msra.mxu0 %v441
        %624 = vmatprep.subr.mxu0 %v446
        %625 = vmatpush1.msra.mxu0 %v445
        %626 = vmatprep.subr.mxu0 %v450
        %627 = vmatpush1.msra.mxu0 %v449
        %628 = vmatprep.subr.mxu0 %v454
        %629 = vmatpush1.msra.mxu0 %v453
        %630 = vmatprep.subr.mxu0 0.0
        %631 = vmatpush1.msra.mxu0 0.0
        %632 = vmatprep.subr.mxu0 0.0
        %633 = vmatpush1.msra.mxu0 0.0
        %634 = vmatprep.subr.mxu0 0.0
        %635 = vmatpush1.msra.mxu0 0.0
        %636 = vmatprep.subr.mxu0 0.0
        %637 = vmatpush1.msra.mxu0 0.0
        %638 = vmatprep.subr.mxu0 0.0
        %639 = vmatpush1.msra.mxu0 0.0
        %640 = vmatprep.subr.mxu0 0.0
        %641 = vmatpush1.msra.mxu0 0.0
        %642 = vmatprep.subr.mxu0 0.0
        %643 = vmatpush1.msra.mxu0 0.0
        %644 = vmatprep.subr.mxu0 0.0
        %645 = vmatpush1.msra.mxu0 0.0
        %646 = vmatprep.subr.mxu0 0.0
        %647 = vmatpush1.msra.mxu0 0.0
        %648 = vmatprep.subr.mxu0 0.0
        %649 = vmatpush1.msra.mxu0 0.0
        %650 = vmatprep.subr.mxu0 0.0
        %651 = vmatpush1.msra.mxu0 0.0
        %652 = vmatprep.subr.mxu0 0.0
        %653 = vmatpush1.msra.mxu0 0.0
        %654 = vmatprep.subr.mxu0 0.0
        %655 = vmatpush1.msra.mxu0 0.0
        %656 = vmatprep.subr.mxu0 0.0
        %657 = vmatpush1.msra.mxu0 0.0
        %658 = vmatprep.subr.mxu0 0.0
        %659 = vmatpush1.msra.mxu0 0.0
        %660 = vmatprep.subr.mxu0 0.0
        %661 = vmatpush1.msra.mxu0 0.0
        %662 = vmatprep.mubr.f32.mxu0 0.0
        %663 = vmatmul.mubr.f32.gmra.mrb[0].mxu0 %v455
        %v664 = vpop.f32.mrb[0].mxu0
        %v665 = vadd.f32 %v476, %v664
        %v666 = vpop.f32.mrb[0].mxu0
        %v667 = vadd.f32 %v480, %v666
        %668 = vmatprep.mubr.f32.mxu0 0.0
        %669 = vmatmul.mubr.f32.gmra.mrb[0].mxu0 %v456
        %v670 = vpop.f32.mrb[0].mxu0
        %v671 = vadd.f32 %v476, %v670
        %v672 = vpop.f32.mrb[0].mxu0
        %v673 = vadd.f32 %v480, %v672
        %674 = vmatprep.mubr.f32.mxu0 0.0
        %675 = vmatmul.mubr.f32.gmra.mrb[0].mxu0 %v457
        %v676 = vpop.f32.mrb[0].mxu0
        %v677 = vadd.f32 %v476, %v676
        %v678 = vpop.f32.mrb[0].mxu0
        %v679 = vadd.f32 %v480, %v678
        %680 = vmatprep.mubr.f32.mxu0 0.0
        %681 = vmatmul.mubr.f32.gmra.mrb[0].mxu0 %v458
        %v682 = vpop.f32.mrb[0].mxu0
        %v683 = vadd.f32 %v476, %v682
        %v684 = vpop.f32.mrb[0].mxu0
        %v685 = vadd.f32 %v480, %v684
        %686 = vmatprep.mubr.f32.mxu0 0.0
        %687 = vmatmul.mubr.f32.gmra.mrb[0].mxu0 %v459
        %v688 = vpop.f32.mrb[0].mxu0
        %v689 = vadd.f32 %v476, %v688
        %v690 = vpop.f32.mrb[0].mxu0
        %v691 = vadd.f32 %v480, %v690
        %692 = vmatprep.mubr.f32.mxu0 0.0
        %693 = vmatmul.mubr.f32.gmra.mrb[0].mxu0 %v460
        %v694 = vpop.f32.mrb[0].mxu0
        %v695 = vadd.f32 %v476, %v694
        %v696 = vpop.f32.mrb[0].mxu0
        %v697 = vadd.f32 %v480, %v696
        %698 = vmatprep.mubr.f32.mxu0 0.0
        %699 = vmatmul.mubr.f32.gmra.mrb[0].mxu0 %v461
        %v700 = vpop.f32.mrb[0].mxu0
        %v701 = vadd.f32 %v476, %v700
        %v702 = vpop.f32.mrb[0].mxu0
        %v703 = vadd.f32 %v480, %v702
        %704 = vmatprep.mubr.f32.mxu0 0.0
        %705 = vmatmul.mubr.f32.gmra.mrb[0].mxu0 %v462
        %v706 = vpop.f32.mrb[0].mxu0
        %v707 = vadd.f32 %v476, %v706
        %v708 = vpop.f32.mrb[0].mxu0
        %v709 = vadd.f32 %v480, %v708
        %710 = vdwg.mxu0
        %711 = vst [vmem:[#allocation5] sm:$0xff] %v552
        %712 = vst [vmem:[#allocation5 + $0x8] sm:$0xff] %v554
        %713 = vst [vmem:[#allocation5 + $0x10] sm:$0xff] %v665
        %714 = vst [vmem:[#allocation5 + $0x18] sm:$0xff] %v667
        %715 = vst [vmem:[#allocation5 + $0x20] sm:$0xff] %v558
        %716 = vst [vmem:[#allocation5 + $0x28] sm:$0xff] %v560
        %717 = vst [vmem:[#allocation5 + $0x30] sm:$0xff] %v671
        %718 = vst [vmem:[#allocation5 + $0x38] sm:$0xff] %v673
        %719 = vst [vmem:[#allocation5 + $0x40] sm:$0xff] %v564
        %720 = vst [vmem:[#allocation5 + $0x48] sm:$0xff] %v566
        %721 = vst [vmem:[#allocation5 + $0x50] sm:$0xff] %v677
        %722 = vst [vmem:[#allocation5 + $0x58] sm:$0xff] %v679
        %723 = vst [vmem:[#allocation5 + $0x60] sm:$0xff] %v570
        %724 = vst [vmem:[#allocation5 + $0x68] sm:$0xff] %v572
        %725 = vst [vmem:[#allocation5 + $0x70] sm:$0xff] %v683
        %726 = vst [vmem:[#allocation5 + $0x78] sm:$0xff] %v685
        %727 = vst [vmem:[#allocation5 + $0x80] sm:$0xff] %v576
        %728 = vst [vmem:[#allocation5 + $0x88] sm:$0xff] %v578
        %729 = vst [vmem:[#allocation5 + $0x90] sm:$0xff] %v689
        %730 = vst [vmem:[#allocation5 + $0x98] sm:$0xff] %v691
        %731 = vst [vmem:[#allocation5 + $0xa0] sm:$0xff] %v582
        %732 = vst [vmem:[#allocation5 + $0xa8] sm:$0xff] %v584
        %733 = vst [vmem:[#allocation5 + $0xb0] sm:$0xff] %v695
        %734 = vst [vmem:[#allocation5 + $0xb8] sm:$0xff] %v697
        %735 = vst [vmem:[#allocation5 + $0xc0] sm:$0xff] %v588
        %736 = vst [vmem:[#allocation5 + $0xc8] sm:$0xff] %v590
        %737 = vst [vmem:[#allocation5 + $0xd0] sm:$0xff] %v701
        %738 = vst [vmem:[#allocation5 + $0xd8] sm:$0xff] %v703
        %739 = vst [vmem:[#allocation5 + $0xe0] sm:$0xff] %v594
        %740 = vst [vmem:[#allocation5 + $0xe8] sm:$0xff] %v596
        %741 = vst [vmem:[#allocation5 + $0xf0] sm:$0xff] %v707
        %742 = vst [vmem:[#allocation5 + $0xf8] sm:$0xff] %v709
        %v743 = vld [vmem:[%s3] sm:$0xff]
        %v744 = vld [vmem:[%s3 + $0x8] sm:$0xff]
        %v745 = vld [vmem:[%s3 + $0x10] sm:$0xff]
        %v746 = vld [vmem:[%s3 + $0x18] sm:$0xff]
        %v747 = vld [vmem:[%s3 + $0x20] sm:$0xff]
        %v748 = vld [vmem:[%s3 + $0x28] sm:$0xff]
        %v749 = vld [vmem:[%s3 + $0x30] sm:$0xff]
        %v750 = vld [vmem:[%s3 + $0x38] sm:$0xff]
        %v751 = vld [vmem:[%s3 + $0x40] sm:$0xff]
        %v752 = vld [vmem:[%s3 + $0x48] sm:$0xff]
        %v753 = vld [vmem:[%s3 + $0x50] sm:$0xff]
        %v754 = vld [vmem:[%s3 + $0x58] sm:$0xff]
        %v755 = vld [vmem:[%s3 + $0x60] sm:$0xff]
        %v756 = vld [vmem:[%s3 + $0x68] sm:$0xff]
        %v757 = vld [vmem:[%s3 + $0x70] sm:$0xff]
        %v758 = vld [vmem:[%s3 + $0x78] sm:$0xff]
        %v759 = vld [vmem:[%s3 + $0x80] sm:$0xff]
        %v760 = vld [vmem:[%s3 + $0x88] sm:$0xff]
        %v761 = vld [vmem:[%s3 + $0x90] sm:$0xff]
        %v762 = vld [vmem:[%s3 + $0x98] sm:$0xff]
        %v763 = vld [vmem:[%s3 + $0xa0] sm:$0xff]
        %v764 = vld [vmem:[%s3 + $0xa8] sm:$0xff]
        %v765 = vld [vmem:[%s3 + $0xb0] sm:$0xff]
        %v766 = vld [vmem:[%s3 + $0xb8] sm:$0xff]
        %v767 = vld [vmem:[%s3 + $0xc0] sm:$0xff]
        %v768 = vld [vmem:[%s3 + $0xc8] sm:$0xff]
        %v769 = vld [vmem:[%s3 + $0xd0] sm:$0xff]
        %v770 = vld [vmem:[%s3 + $0xd8] sm:$0xff]
        %v771 = vld [vmem:[%s3 + $0xe0] sm:$0xff]
        %v772 = vld [vmem:[%s3 + $0xe8] sm:$0xff]
        %v773 = vld [vmem:[%s3 + $0xf0] sm:$0xff]
        %v774 = vld [vmem:[%s3 + $0xf8] sm:$0xff]
        %v775 = vld [vmem:[%s3 + $0x100] sm:$0xff]
        %v776 = vld [vmem:[%s3 + $0x108] sm:$0xff]
        %v777 = vld [vmem:[%s3 + $0x110] sm:$0xff]
        %v778 = vld [vmem:[%s3 + $0x118] sm:$0xff]
        %v779 = vld [vmem:[%s3 + $0x120] sm:$0xff]
        %v780 = vld [vmem:[%s3 + $0x128] sm:$0xff]
        %v781 = vld [vmem:[%s3 + $0x130] sm:$0xff]
        %v782 = vld [vmem:[%s3 + $0x138] sm:$0xff]
        %v783 = vld [vmem:[%s3 + $0x140] sm:$0xff]
        %v784 = vld [vmem:[%s3 + $0x148] sm:$0xff]
        %v785 = vld [vmem:[%s3 + $0x150] sm:$0xff]
        %v786 = vld [vmem:[%s3 + $0x158] sm:$0xff]
        %v787 = vld [vmem:[%s3 + $0x160] sm:$0xff]
        %v788 = vld [vmem:[%s3 + $0x168] sm:$0xff]
        %v789 = vld [vmem:[%s3 + $0x170] sm:$0xff]
        %v790 = vld [vmem:[%s3 + $0x178] sm:$0xff]
        %v791 = vld [vmem:[%s3 + $0x180] sm:$0xff]
        %v792 = vld [vmem:[%s3 + $0x188] sm:$0xff]
        %v793 = vld [vmem:[%s3 + $0x190] sm:$0xff]
        %v794 = vld [vmem:[%s3 + $0x198] sm:$0xff]
        %v795 = vld [vmem:[%s3 + $0x1a0] sm:$0xff]
        %v796 = vld [vmem:[%s3 + $0x1a8] sm:$0xff]
        %v797 = vld [vmem:[%s3 + $0x1b0] sm:$0xff]
        %v798 = vld [vmem:[%s3 + $0x1b8] sm:$0xff]
        %v799 = vld [vmem:[%s3 + $0x1c0] sm:$0xff]
        %v800 = vld [vmem:[%s3 + $0x1c8] sm:$0xff]
        %v801 = vld [vmem:[%s3 + $0x1d0] sm:$0xff]
        %v802 = vld [vmem:[%s3 + $0x1d8] sm:$0xff]
        %v803 = vld [vmem:[%s3 + $0x1e0] sm:$0xff]
        %v804 = vld [vmem:[%s3 + $0x1e8] sm:$0xff]
        %v805 = vld [vmem:[%s3 + $0x1f0] sm:$0xff]
        %v806 = vld [vmem:[%s3 + $0x1f8] sm:$0xff]
        %v807 = vld [vmem:[#allocation2] sm:$0xff]
        %v808 = vld [vmem:[#allocation3] sm:$0xff]
        %v809 = vld [vmem:[#allocation5] sm:$0xff]
        %v810 = vld [vmem:[#allocation5 + $0x8] sm:$0xff]
        %v811 = vld [vmem:[#allocation5 + $0x10] sm:$0xff]
        %v812 = vld [vmem:[#allocation5 + $0x18] sm:$0xff]
        %813 = vmatprep.subr.mxu0 %v744
        %814 = vmatpush1.msra.mxu0 %v743
        %815 = vmatprep.subr.mxu0 %v748
        %816 = vmatpush1.msra.mxu0 %v747
        %817 = vmatprep.subr.mxu0 %v752
        %818 = vmatpush1.msra.mxu0 %v751
        %819 = vmatprep.subr.mxu0 %v756
        %820 = vmatpush1.msra.mxu0 %v755
        %821 = vmatprep.subr.mxu0 %v760
        %822 = vmatpush1.msra.mxu0 %v759
        %823 = vmatprep.subr.mxu0 %v764
        %824 = vmatpush1.msra.mxu0 %v763
        %825 = vmatprep.subr.mxu0 %v768
        %826 = vmatpush1.msra.mxu0 %v767
        %827 = vmatprep.subr.mxu0 %v772
        %828 = vmatpush1.msra.mxu0 %v771
        %829 = vmatprep.subr.mxu0 %v776
        %830 = vmatpush1.msra.mxu0 %v775
        %831 = vmatprep.subr.mxu0 %v780
        %832 = vmatpush1.msra.mxu0 %v779
        %833 = vmatprep.subr.mxu0 %v784
        %834 = vmatpush1.msra.mxu0 %v783
        %835 = vmatprep.subr.mxu0 %v788
        %836 = vmatpush1.msra.mxu0 %v787
        %837 = vmatprep.subr.mxu0 %v792
        %838 = vmatpush1.msra.mxu0 %v791
        %839 = vmatprep.subr.mxu0 %v796
        %840 = vmatpush1.msra.mxu0 %v795
        %841 = vmatprep.subr.mxu0 %v800
        %842 = vmatpush1.msra.mxu0 %v799
        %843 = vmatprep.subr.mxu0 %v804
        %844 = vmatpush1.msra.mxu0 %v803
        %845 = vmatprep.subr.mxu0 0.0
        %846 = vmatpush1.msra.mxu0 0.0
        %847 = vmatprep.subr.mxu0 0.0
        %848 = vmatpush1.msra.mxu0 0.0
        %849 = vmatprep.subr.mxu0 0.0
        %850 = vmatpush1.msra.mxu0 0.0
        %851 = vmatprep.subr.mxu0 0.0
        %852 = vmatpush1.msra.mxu0 0.0
        %853 = vmatprep.subr.mxu0 0.0
        %854 = vmatpush1.msra.mxu0 0.0
        %855 = vmatprep.subr.mxu0 0.0
        %856 = vmatpush1.msra.mxu0 0.0
        %857 = vmatprep.subr.mxu0 0.0
        %858 = vmatpush1.msra.mxu0 0.0
        %859 = vmatprep.subr.mxu0 0.0
        %860 = vmatpush1.msra.mxu0 0.0
        %861 = vmatprep.subr.mxu0 0.0
        %862 = vmatpush1.msra.mxu0 0.0
        %863 = vmatprep.subr.mxu0 0.0
        %864 = vmatpush1.msra.mxu0 0.0
        %865 = vmatprep.subr.mxu0 0.0
        %866 = vmatpush1.msra.mxu0 0.0
        %867 = vmatprep.subr.mxu0 0.0
        %868 = vmatpush1.msra.mxu0 0.0
        %869 = vmatprep.subr.mxu0 0.0
        %870 = vmatpush1.msra.mxu0 0.0
        %871 = vmatprep.subr.mxu0 0.0
        %872 = vmatpush1.msra.mxu0 0.0
        %873 = vmatprep.subr.mxu0 0.0
        %874 = vmatpush1.msra.mxu0 0.0
        %875 = vmatprep.subr.mxu0 0.0
        %876 = vmatpush1.msra.mxu0 0.0
        %877 = vmatprep.mubr.f32.mxu0 0.0
        %878 = vmatmul.mubr.f32.gmra.mrb[0].mxu0 %v807
        %v879 = vpop.f32.mrb[0].mxu0
        %v880 = vadd.f32 0.0, %v879
        %v881 = vpop.f32.mrb[0].mxu0
        %v882 = vadd.f32 0.0, %v881
        %883 = vdwg.mxu0
        %884 = vmatprep.subr.mxu0 %v746
        %885 = vmatpush1.msra.mxu0 %v745
        %886 = vmatprep.subr.mxu0 %v750
        %887 = vmatpush1.msra.mxu0 %v749
        %888 = vmatprep.subr.mxu0 %v754
        %889 = vmatpush1.msra.mxu0 %v753
        %890 = vmatprep.subr.mxu0 %v758
        %891 = vmatpush1.msra.mxu0 %v757
        %892 = vmatprep.subr.mxu0 %v762
        %893 = vmatpush1.msra.mxu0 %v761
        %894 = vmatprep.subr.mxu0 %v766
        %895 = vmatpush1.msra.mxu0 %v765
        %896 = vmatprep.subr.mxu0 %v770
        %897 = vmatpush1.msra.mxu0 %v769
        %898 = vmatprep.subr.mxu0 %v774
        %899 = vmatpush1.msra.mxu0 %v773
        %900 = vmatprep.subr.mxu0 %v778
        %901 = vmatpush1.msra.mxu0 %v777
        %902 = vmatprep.subr.mxu0 %v782
        %903 = vmatpush1.msra.mxu0 %v781
        %904 = vmatprep.subr.mxu0 %v786
        %905 = vmatpush1.msra.mxu0 %v785
        %906 = vmatprep.subr.mxu0 %v790
        %907 = vmatpush1.msra.mxu0 %v789
        %908 = vmatprep.subr.mxu0 %v794
        %909 = vmatpush1.msra.mxu0 %v793
        %910 = vmatprep.subr.mxu0 %v798
        %911 = vmatpush1.msra.mxu0 %v797
        %912 = vmatprep.subr.mxu0 %v802
        %913 = vmatpush1.msra.mxu0 %v801
        %914 = vmatprep.subr.mxu0 %v806
        %915 = vmatpush1.msra.mxu0 %v805
        %916 = vmatprep.subr.mxu0 0.0
        %917 = vmatpush1.msra.mxu0 0.0
        %918 = vmatprep.subr.mxu0 0.0
        %919 = vmatpush1.msra.mxu0 0.0
        %920 = vmatprep.subr.mxu0 0.0
        %921 = vmatpush1.msra.mxu0 0.0
        %922 = vmatprep.subr.mxu0 0.0
        %923 = vmatpush1.msra.mxu0 0.0
        %924 = vmatprep.subr.mxu0 0.0
        %925 = vmatpush1.msra.mxu0 0.0
        %926 = vmatprep.subr.mxu0 0.0
        %927 = vmatpush1.msra.mxu0 0.0
        %928 = vmatprep.subr.mxu0 0.0
        %929 = vmatpush1.msra.mxu0 0.0
        %930 = vmatprep.subr.mxu0 0.0
        %931 = vmatpush1.msra.mxu0 0.0
        %932 = vmatprep.subr.mxu0 0.0
        %933 = vmatpush1.msra.mxu0 0.0
        %934 = vmatprep.subr.mxu0 0.0
        %935 = vmatpush1.msra.mxu0 0.0
        %936 = vmatprep.subr.mxu0 0.0
        %937 = vmatpush1.msra.mxu0 0.0
        %938 = vmatprep.subr.mxu0 0.0
        %939 = vmatpush1.msra.mxu0 0.0
        %940 = vmatprep.subr.mxu0 0.0
        %941 = vmatpush1.msra.mxu0 0.0
        %942 = vmatprep.subr.mxu0 0.0
        %943 = vmatpush1.msra.mxu0 0.0
        %944 = vmatprep.subr.mxu0 0.0
        %945 = vmatpush1.msra.mxu0 0.0
        %946 = vmatprep.subr.mxu0 0.0
        %947 = vmatpush1.msra.mxu0 0.0
        %948 = vmatprep.mubr.f32.mxu0 0.0
        %949 = vmatmul.mubr.f32.gmra.mrb[0].mxu0 %v807
        %v950 = vpop.f32.mrb[0].mxu0
        %v951 = vadd.f32 0.0, %v950
        %v952 = vpop.f32.mrb[0].mxu0
        %v953 = vadd.f32 0.0, %v952
        %954 = vdwg.mxu0
        %v955 = vadd.f32 %v809, %v880
        %v956 = vadd.f32 %v810, %v882
        %v957 = vadd.f32 %v811, %v951
        %v958 = vadd.f32 %v812, %v953
        %v959 = vxor.u32 %v955, 2147483648
        %v960 = vmul.f32 %v959, 1.442695
        %v961 = vpow.pop %v960
        %v962 = vadd.f32 %v961, 1.0
        %v963 = vrcp.pop %v962
        %v964 = vmul.f32 1.0, %v963
        %v965 = vxor.u32 %v956, 2147483648
        %v966 = vmul.f32 %v965, 1.442695
        %v967 = vpow.pop %v966
        %v968 = vadd.f32 %v967, 1.0
        %v969 = vrcp.pop %v968
        %v970 = vmul.f32 1.0, %v969
        %v971 = vtanh.pop %v957
        %v972 = vxor.u32 %v958, 2147483648
        %v973 = vmul.f32 %v972, 1.442695
        %v974 = vpow.pop %v973
        %v975 = vadd.f32 %v974, 1.0
        %v976 = vrcp.pop %v975
        %v977 = vmul.f32 1.0, %v976
        %v978 = vmul.f32 %v970, %v808
        %v979 = vmul.f32 %v964, %v971
        %v980 = vadd.f32 %v978, %v979
        %v981 = vtanh.pop %v980
        %v982 = vmul.f32 %v977, %v981
        %983 = vst [vmem:[#allocation4] sm:$0xff] %v982
        %s984 = scalar_lea.vmem [#allocation5], 32
        %v985 = vld [vmem:[%s984] sm:$0xff]
        %v986 = vld [vmem:[%s984 + $0x8] sm:$0xff]
        %v987 = vld [vmem:[%s984 + $0x10] sm:$0xff]
        %v988 = vld [vmem:[%s984 + $0x18] sm:$0xff]
        %989 = vmatprep.subr.mxu0 %v744
        %990 = vmatpush1.msra.mxu0 %v743
        %991 = vmatprep.subr.mxu0 %v748
        %992 = vmatpush1.msra.mxu0 %v747
        %993 = vmatprep.subr.mxu0 %v752
        %994 = vmatpush1.msra.mxu0 %v751
        %995 = vmatprep.subr.mxu0 %v756
        %996 = vmatpush1.msra.mxu0 %v755
        %997 = vmatprep.subr.mxu0 %v760
        %998 = vmatpush1.msra.mxu0 %v759
        %999 = vmatprep.subr.mxu0 %v764
        %1000 = vmatpush1.msra.mxu0 %v763
        %1001 = vmatprep.subr.mxu0 %v768
        %1002 = vmatpush1.msra.mxu0 %v767
        %1003 = vmatprep.subr.mxu0 %v772
        %1004 = vmatpush1.msra.mxu0 %v771
        %1005 = vmatprep.subr.mxu0 %v776
        %1006 = vmatpush1.msra.mxu0 %v775
        %1007 = vmatprep.subr.mxu0 %v780
        %1008 = vmatpush1.msra.mxu0 %v779
        %1009 = vmatprep.subr.mxu0 %v784
        %1010 = vmatpush1.msra.mxu0 %v783
        %1011 = vmatprep.subr.mxu0 %v788
        %1012 = vmatpush1.msra.mxu0 %v787
        %1013 = vmatprep.subr.mxu0 %v792
        %1014 = vmatpush1.msra.mxu0 %v791
        %1015 = vmatprep.subr.mxu0 %v796
        %1016 = vmatpush1.msra.mxu0 %v795
        %1017 = vmatprep.subr.mxu0 %v800
        %1018 = vmatpush1.msra.mxu0 %v799
        %1019 = vmatprep.subr.mxu0 %v804
        %1020 = vmatpush1.msra.mxu0 %v803
        %1021 = vmatprep.subr.mxu0 0.0
        %1022 = vmatpush1.msra.mxu0 0.0
        %1023 = vmatprep.subr.mxu0 0.0
        %1024 = vmatpush1.msra.mxu0 0.0
        %1025 = vmatprep.subr.mxu0 0.0
        %1026 = vmatpush1.msra.mxu0 0.0
        %1027 = vmatprep.subr.mxu0 0.0
        %1028 = vmatpush1.msra.mxu0 0.0
        %1029 = vmatprep.subr.mxu0 0.0
        %1030 = vmatpush1.msra.mxu0 0.0
        %1031 = vmatprep.subr.mxu0 0.0
        %1032 = vmatpush1.msra.mxu0 0.0
        %1033 = vmatprep.subr.mxu0 0.0
        %1034 = vmatpush1.msra.mxu0 0.0
        %1035 = vmatprep.subr.mxu0 0.0
        %1036 = vmatpush1.msra.mxu0 0.0
        %1037 = vmatprep.subr.mxu0 0.0
        %1038 = vmatpush1.msra.mxu0 0.0
        %1039 = vmatprep.subr.mxu0 0.0
        %1040 = vmatpush1.msra.mxu0 0.0
        %1041 = vmatprep.subr.mxu0 0.0
        %1042 = vmatpush1.msra.mxu0 0.0
        %1043 = vmatprep.subr.mxu0 0.0
        %1044 = vmatpush1.msra.mxu0 0.0
        %1045 = vmatprep.subr.mxu0 0.0
        %1046 = vmatpush1.msra.mxu0 0.0
        %1047 = vmatprep.subr.mxu0 0.0
        %1048 = vmatpush1.msra.mxu0 0.0
        %1049 = vmatprep.subr.mxu0 0.0
        %1050 = vmatpush1.msra.mxu0 0.0
        %1051 = vmatprep.subr.mxu0 0.0
        %1052 = vmatpush1.msra.mxu0 0.0
        %1053 = vmatprep.mubr.f32.mxu0 0.0
        %1054 = vmatmul.mubr.f32.gmra.mrb[0].mxu0 %v982
        %v1055 = vpop.f32.mrb[0].mxu0
        %v1056 = vadd.f32 0.0, %v1055
        %v1057 = vpop.f32.mrb[0].mxu0
        %v1058 = vadd.f32 0.0, %v1057
        %1059 = vdwg.mxu0
        %1060 = vmatprep.subr.mxu0 %v746
        %1061 = vmatpush1.msra.mxu0 %v745
        %1062 = vmatprep.subr.mxu0 %v750
        %1063 = vmatpush1.msra.mxu0 %v749
        %1064 = vmatprep.subr.mxu0 %v754
        %1065 = vmatpush1.msra.mxu0 %v753
        %1066 = vmatprep.subr.mxu0 %v758
        %1067 = vmatpush1.msra.mxu0 %v757
        %1068 = vmatprep.subr.mxu0 %v762
        %1069 = vmatpush1.msra.mxu0 %v761
        %1070 = vmatprep.subr.mxu0 %v766
        %1071 = vmatpush1.msra.mxu0 %v765
        %1072 = vmatprep.subr.mxu0 %v770
        %1073 = vmatpush1.msra.mxu0 %v769
        %1074 = vmatprep.subr.mxu0 %v774
        %1075 = vmatpush1.msra.mxu0 %v773
        %1076 = vmatprep.subr.mxu0 %v778
        %1077 = vmatpush1.msra.mxu0 %v777
        %1078 = vmatprep.subr.mxu0 %v782
        %1079 = vmatpush1.msra.mxu0 %v781
        %1080 = vmatprep.subr.mxu0 %v786
        %1081 = vmatpush1.msra.mxu0 %v785
        %1082 = vmatprep.subr.mxu0 %v790
        %1083 = vmatpush1.msra.mxu0 %v789
        %1084 = vmatprep.subr.mxu0 %v794
        %1085 = vmatpush1.msra.mxu0 %v793
        %1086 = vmatprep.subr.mxu0 %v798
        %1087 = vmatpush1.msra.mxu0 %v797
        %1088 = vmatprep.subr.mxu0 %v802
        %1089 = vmatpush1.msra.mxu0 %v801
        %1090 = vmatprep.subr.mxu0 %v806
        %1091 = vmatpush1.msra.mxu0 %v805
        %1092 = vmatprep.subr.mxu0 0.0
        %1093 = vmatpush1.msra.mxu0 0.0
        %1094 = vmatprep.subr.mxu0 0.0
        %1095 = vmatpush1.msra.mxu0 0.0
        %1096 = vmatprep.subr.mxu0 0.0
        %1097 = vmatpush1.msra.mxu0 0.0
        %1098 = vmatprep.subr.mxu0 0.0
        %1099 = vmatpush1.msra.mxu0 0.0
        %1100 = vmatprep.subr.mxu0 0.0
        %1101 = vmatpush1.msra.mxu0 0.0
        %1102 = vmatprep.subr.mxu0 0.0
        %1103 = vmatpush1.msra.mxu0 0.0
        %1104 = vmatprep.subr.mxu0 0.0
        %1105 = vmatpush1.msra.mxu0 0.0
        %1106 = vmatprep.subr.mxu0 0.0
        %1107 = vmatpush1.msra.mxu0 0.0
        %1108 = vmatprep.subr.mxu0 0.0
        %1109 = vmatpush1.msra.mxu0 0.0
        %1110 = vmatprep.subr.mxu0 0.0
        %1111 = vmatpush1.msra.mxu0 0.0
        %1112 = vmatprep.subr.mxu0 0.0
        %1113 = vmatpush1.msra.mxu0 0.0
        %1114 = vmatprep.subr.mxu0 0.0
        %1115 = vmatpush1.msra.mxu0 0.0
        %1116 = vmatprep.subr.mxu0 0.0
        %1117 = vmatpush1.msra.mxu0 0.0
        %1118 = vmatprep.subr.mxu0 0.0
        %1119 = vmatpush1.msra.mxu0 0.0
        %1120 = vmatprep.subr.mxu0 0.0
        %1121 = vmatpush1.msra.mxu0 0.0
        %1122 = vmatprep.subr.mxu0 0.0
        %1123 = vmatpush1.msra.mxu0 0.0
        %1124 = vmatprep.mubr.f32.mxu0 0.0
        %1125 = vmatmul.mubr.f32.gmra.mrb[0].mxu0 %v982
        %v1126 = vpop.f32.mrb[0].mxu0
        %v1127 = vadd.f32 0.0, %v1126
        %v1128 = vpop.f32.mrb[0].mxu0
        %v1129 = vadd.f32 0.0, %v1128
        %1130 = vdwg.mxu0
        %v1131 = vadd.f32 %v985, %v1056
        %v1132 = vadd.f32 %v986, %v1058
        %v1133 = vadd.f32 %v987, %v1127
        %v1134 = vadd.f32 %v988, %v1129
        %v1135 = vxor.u32 %v1131, 2147483648
        %v1136 = vmul.f32 %v1135, 1.442695
        %v1137 = vpow.pop %v1136
        %v1138 = vadd.f32 %v1137, 1.0
        %v1139 = vrcp.pop %v1138
        %v1140 = vmul.f32 1.0, %v1139
        %v1141 = vxor.u32 %v1132, 2147483648
        %v1142 = vmul.f32 %v1141, 1.442695
        %v1143 = vpow.pop %v1142
        %v1144 = vadd.f32 %v1143, 1.0
        %v1145 = vrcp.pop %v1144
        %v1146 = vmul.f32 1.0, %v1145
        %v1147 = vtanh.pop %v1133
        %v1148 = vxor.u32 %v1134, 2147483648
        %v1149 = vmul.f32 %v1148, 1.442695
        %v1150 = vpow.pop %v1149
        %v1151 = vadd.f32 %v1150, 1.0
        %v1152 = vrcp.pop %v1151
        %v1153 = vmul.f32 1.0, %v1152
        %v1154 = vmul.f32 %v1146, %v980
        %v1155 = vmul.f32 %v1140, %v1147
        %v1156 = vadd.f32 %v1154, %v1155
        %v1157 = vtanh.pop %v1156
        %v1158 = vmul.f32 %v1153, %v1157
        %s1159 = scalar_lea.vmem [#allocation4], 8
        %1160 = vst [vmem:[%s1159] sm:$0xff] %v1158
        %s1161 = scalar_lea.vmem [#allocation5], 64
        %v1162 = vld [vmem:[%s1161] sm:$0xff]
        %v1163 = vld [vmem:[%s1161 + $0x8] sm:$0xff]
        %v1164 = vld [vmem:[%s1161 + $0x10] sm:$0xff]
        %v1165 = vld [vmem:[%s1161 + $0x18] sm:$0xff]
        %1166 = vmatprep.subr.mxu0 %v744
        %1167 = vmatpush1.msra.mxu0 %v743
        %1168 = vmatprep.subr.mxu0 %v748
        %1169 = vmatpush1.msra.mxu0 %v747
        %1170 = vmatprep.subr.mxu0 %v752
        %1171 = vmatpush1.msra.mxu0 %v751
        %1172 = vmatprep.subr.mxu0 %v756
        %1173 = vmatpush1.msra.mxu0 %v755
        %1174 = vmatprep.subr.mxu0 %v760
        %1175 = vmatpush1.msra.mxu0 %v759
        %1176 = vmatprep.subr.mxu0 %v764
        %1177 = vmatpush1.msra.mxu0 %v763
        %1178 = vmatprep.subr.mxu0 %v768
        %1179 = vmatpush1.msra.mxu0 %v767
        %1180 = vmatprep.subr.mxu0 %v772
        %1181 = vmatpush1.msra.mxu0 %v771
        %1182 = vmatprep.subr.mxu0 %v776
        %1183 = vmatpush1.msra.mxu0 %v775
        %1184 = vmatprep.subr.mxu0 %v780
        %1185 = vmatpush1.msra.mxu0 %v779
        %1186 = vmatprep.subr.mxu0 %v784
        %1187 = vmatpush1.msra.mxu0 %v783
        %1188 = vmatprep.subr.mxu0 %v788
        %1189 = vmatpush1.msra.mxu0 %v787
        %1190 = vmatprep.subr.mxu0 %v792
        %1191 = vmatpush1.msra.mxu0 %v791
        %1192 = vmatprep.subr.mxu0 %v796
        %1193 = vmatpush1.msra.mxu0 %v795
        %1194 = vmatprep.subr.mxu0 %v800
        %1195 = vmatpush1.msra.mxu0 %v799
        %1196 = vmatprep.subr.mxu0 %v804
        %1197 = vmatpush1.msra.mxu0 %v803
        %1198 = vmatprep.subr.mxu0 0.0
        %1199 = vmatpush1.msra.mxu0 0.0
        %1200 = vmatprep.subr.mxu0 0.0
        %1201 = vmatpush1.msra.mxu0 0.0
        %1202 = vmatprep.subr.mxu0 0.0
        %1203 = vmatpush1.msra.mxu0 0.0
        %1204 = vmatprep.subr.mxu0 0.0
        %1205 = vmatpush1.msra.mxu0 0.0
        %1206 = vmatprep.subr.mxu0 0.0
        %1207 = vmatpush1.msra.mxu0 0.0
        %1208 = vmatprep.subr.mxu0 0.0
        %1209 = vmatpush1.msra.mxu0 0.0
        %1210 = vmatprep.subr.mxu0 0.0
        %1211 = vmatpush1.msra.mxu0 0.0
        %1212 = vmatprep.subr.mxu0 0.0
        %1213 = vmatpush1.msra.mxu0 0.0
        %1214 = vmatprep.subr.mxu0 0.0
        %1215 = vmatpush1.msra.mxu0 0.0
        %1216 = vmatprep.subr.mxu0 0.0
        %1217 = vmatpush1.msra.mxu0 0.0
        %1218 = vmatprep.subr.mxu0 0.0
        %1219 = vmatpush1.msra.mxu0 0.0
        %1220 = vmatprep.subr.mxu0 0.0
        %1221 = vmatpush1.msra.mxu0 0.0
        %1222 = vmatprep.subr.mxu0 0.0
        %1223 = vmatpush1.msra.mxu0 0.0
        %1224 = vmatprep.subr.mxu0 0.0
        %1225 = vmatpush1.msra.mxu0 0.0
        %1226 = vmatprep.subr.mxu0 0.0
        %1227 = vmatpush1.msra.mxu0 0.0
        %1228 = vmatprep.subr.mxu0 0.0
        %1229 = vmatpush1.msra.mxu0 0.0
        %1230 = vmatprep.mubr.f32.mxu0 0.0
        %1231 = vmatmul.mubr.f32.gmra.mrb[0].mxu0 %v1158
        %v1232 = vpop.f32.mrb[0].mxu0
        %v1233 = vadd.f32 0.0, %v1232
        %v1234 = vpop.f32.mrb[0].mxu0
        %v1235 = vadd.f32 0.0, %v1234
        %1236 = vdwg.mxu0
        %1237 = vmatprep.subr.mxu0 %v746
        %1238 = vmatpush1.msra.mxu0 %v745
        %1239 = vmatprep.subr.mxu0 %v750
        %1240 = vmatpush1.msra.mxu0 %v749
        %1241 = vmatprep.subr.mxu0 %v754
        %1242 = vmatpush1.msra.mxu0 %v753
        %1243 = vmatprep.subr.mxu0 %v758
        %1244 = vmatpush1.msra.mxu0 %v757
        %1245 = vmatprep.subr.mxu0 %v762
        %1246 = vmatpush1.msra.mxu0 %v761
        %1247 = vmatprep.subr.mxu0 %v766
        %1248 = vmatpush1.msra.mxu0 %v765
        %1249 = vmatprep.subr.mxu0 %v770
        %1250 = vmatpush1.msra.mxu0 %v769
        %1251 = vmatprep.subr.mxu0 %v774
        %1252 = vmatpush1.msra.mxu0 %v773
        %1253 = vmatprep.subr.mxu0 %v778
        %1254 = vmatpush1.msra.mxu0 %v777
        %1255 = vmatprep.subr.mxu0 %v782
        %1256 = vmatpush1.msra.mxu0 %v781
        %1257 = vmatprep.subr.mxu0 %v786
        %1258 = vmatpush1.msra.mxu0 %v785
        %1259 = vmatprep.subr.mxu0 %v790
        %1260 = vmatpush1.msra.mxu0 %v789
        %1261 = vmatprep.subr.mxu0 %v794
        %1262 = vmatpush1.msra.mxu0 %v793
        %1263 = vmatprep.subr.mxu0 %v798
        %1264 = vmatpush1.msra.mxu0 %v797
        %1265 = vmatprep.subr.mxu0 %v802
        %1266 = vmatpush1.msra.mxu0 %v801
        %1267 = vmatprep.subr.mxu0 %v806
        %1268 = vmatpush1.msra.mxu0 %v805
        %1269 = vmatprep.subr.mxu0 0.0
        %1270 = vmatpush1.msra.mxu0 0.0
        %1271 = vmatprep.subr.mxu0 0.0
        %1272 = vmatpush1.msra.mxu0 0.0
        %1273 = vmatprep.subr.mxu0 0.0
        %1274 = vmatpush1.msra.mxu0 0.0
        %1275 = vmatprep.subr.mxu0 0.0
        %1276 = vmatpush1.msra.mxu0 0.0
        %1277 = vmatprep.subr.mxu0 0.0
        %1278 = vmatpush1.msra.mxu0 0.0
        %1279 = vmatprep.subr.mxu0 0.0
        %1280 = vmatpush1.msra.mxu0 0.0
        %1281 = vmatprep.subr.mxu0 0.0
        %1282 = vmatpush1.msra.mxu0 0.0
        %1283 = vmatprep.subr.mxu0 0.0
        %1284 = vmatpush1.msra.mxu0 0.0
        %1285 = vmatprep.subr.mxu0 0.0
        %1286 = vmatpush1.msra.mxu0 0.0
        %1287 = vmatprep.subr.mxu0 0.0
        %1288 = vmatpush1.msra.mxu0 0.0
        %1289 = vmatprep.subr.mxu0 0.0
        %1290 = vmatpush1.msra.mxu0 0.0
        %1291 = vmatprep.subr.mxu0 0.0
        %1292 = vmatpush1.msra.mxu0 0.0
        %1293 = vmatprep.subr.mxu0 0.0
        %1294 = vmatpush1.msra.mxu0 0.0
        %1295 = vmatprep.subr.mxu0 0.0
        %1296 = vmatpush1.msra.mxu0 0.0
        %1297 = vmatprep.subr.mxu0 0.0
        %1298 = vmatpush1.msra.mxu0 0.0
        %1299 = vmatprep.subr.mxu0 0.0
        %1300 = vmatpush1.msra.mxu0 0.0
        %1301 = vmatprep.mubr.f32.mxu0 0.0
        %1302 = vmatmul.mubr.f32.gmra.mrb[0].mxu0 %v1158
        %v1303 = vpop.f32.mrb[0].mxu0
        %v1304 = vadd.f32 0.0, %v1303
        %v1305 = vpop.f32.mrb[0].mxu0
        %v1306 = vadd.f32 0.0, %v1305
        %1307 = vdwg.mxu0
        %v1308 = vadd.f32 %v1162, %v1233
        %v1309 = vadd.f32 %v1163, %v1235
        %v1310 = vadd.f32 %v1164, %v1304
        %v1311 = vadd.f32 %v1165, %v1306
        %v1312 = vxor.u32 %v1308, 2147483648
        %v1313 = vmul.f32 %v1312, 1.442695
        %v1314 = vpow.pop %v1313
        %v1315 = vadd.f32 %v1314, 1.0
        %v1316 = vrcp.pop %v1315
        %v1317 = vmul.f32 1.0, %v1316
        %v1318 = vxor.u32 %v1309, 2147483648
        %v1319 = vmul.f32 %v1318, 1.442695
        %v1320 = vpow.pop %v1319
        %v1321 = vadd.f32 %v1320, 1.0
        %v1322 = vrcp.pop %v1321
        %v1323 = vmul.f32 1.0, %v1322
        %v1324 = vtanh.pop %v1310
        %v1325 = vxor.u32 %v1311, 2147483648
        %v1326 = vmul.f32 %v1325, 1.442695
        %v1327 = vpow.pop %v1326
        %v1328 = vadd.f32 %v1327, 1.0
        %v1329 = vrcp.pop %v1328
        %v1330 = vmul.f32 1.0, %v1329
        %v1331 = vmul.f32 %v1323, %v1156
        %v1332 = vmul.f32 %v1317, %v1324
        %v1333 = vadd.f32 %v1331, %v1332
        %v1334 = vtanh.pop %v1333
        %v1335 = vmul.f32 %v1330, %v1334
        %s1336 = scalar_lea.vmem [#allocation4], 16
        %1337 = vst [vmem:[%s1336] sm:$0xff] %v1335
        %s1338 = scalar_lea.vmem [#allocation5], 96
        %v1339 = vld [vmem:[%s1338] sm:$0xff]
        %v1340 = vld [vmem:[%s1338 + $0x8] sm:$0xff]
        %v1341 = vld [vmem:[%s1338 + $0x10] sm:$0xff]
        %v1342 = vld [vmem:[%s1338 + $0x18] sm:$0xff]
        %1343 = vmatprep.subr.mxu0 %v744
        %1344 = vmatpush1.msra.mxu0 %v743
        %1345 = vmatprep.subr.mxu0 %v748
        %1346 = vmatpush1.msra.mxu0 %v747
        %1347 = vmatprep.subr.mxu0 %v752
        %1348 = vmatpush1.msra.mxu0 %v751
        %1349 = vmatprep.subr.mxu0 %v756
        %1350 = vmatpush1.msra.mxu0 %v755
        %1351 = vmatprep.subr.mxu0 %v760
        %1352 = vmatpush1.msra.mxu0 %v759
        %1353 = vmatprep.subr.mxu0 %v764
        %1354 = vmatpush1.msra.mxu0 %v763
        %1355 = vmatprep.subr.mxu0 %v768
        %1356 = vmatpush1.msra.mxu0 %v767
        %1357 = vmatprep.subr.mxu0 %v772
        %1358 = vmatpush1.msra.mxu0 %v771
        %1359 = vmatprep.subr.mxu0 %v776
        %1360 = vmatpush1.msra.mxu0 %v775
        %1361 = vmatprep.subr.mxu0 %v780
        %1362 = vmatpush1.msra.mxu0 %v779
        %1363 = vmatprep.subr.mxu0 %v784
        %1364 = vmatpush1.msra.mxu0 %v783
        %1365 = vmatprep.subr.mxu0 %v788
        %1366 = vmatpush1.msra.mxu0 %v787
        %1367 = vmatprep.subr.mxu0 %v792
        %1368 = vmatpush1.msra.mxu0 %v791
        %1369 = vmatprep.subr.mxu0 %v796
        %1370 = vmatpush1.msra.mxu0 %v795
        %1371 = vmatprep.subr.mxu0 %v800
        %1372 = vmatpush1.msra.mxu0 %v799
        %1373 = vmatprep.subr.mxu0 %v804
        %1374 = vmatpush1.msra.mxu0 %v803
        %1375 = vmatprep.subr.mxu0 0.0
        %1376 = vmatpush1.msra.mxu0 0.0
        %1377 = vmatprep.subr.mxu0 0.0
        %1378 = vmatpush1.msra.mxu0 0.0
        %1379 = vmatprep.subr.mxu0 0.0
        %1380 = vmatpush1.msra.mxu0 0.0
        %1381 = vmatprep.subr.mxu0 0.0
        %1382 = vmatpush1.msra.mxu0 0.0
        %1383 = vmatprep.subr.mxu0 0.0
        %1384 = vmatpush1.msra.mxu0 0.0
        %1385 = vmatprep.subr.mxu0 0.0
        %1386 = vmatpush1.msra.mxu0 0.0
        %1387 = vmatprep.subr.mxu0 0.0
        %1388 = vmatpush1.msra.mxu0 0.0
        %1389 = vmatprep.subr.mxu0 0.0
        %1390 = vmatpush1.msra.mxu0 0.0
        %1391 = vmatprep.subr.mxu0 0.0
        %1392 = vmatpush1.msra.mxu0 0.0
        %1393 = vmatprep.subr.mxu0 0.0
        %1394 = vmatpush1.msra.mxu0 0.0
        %1395 = vmatprep.subr.mxu0 0.0
        %1396 = vmatpush1.msra.mxu0 0.0
        %1397 = vmatprep.subr.mxu0 0.0
        %1398 = vmatpush1.msra.mxu0 0.0
        %1399 = vmatprep.subr.mxu0 0.0
        %1400 = vmatpush1.msra.mxu0 0.0
        %1401 = vmatprep.subr.mxu0 0.0
        %1402 = vmatpush1.msra.mxu0 0.0
        %1403 = vmatprep.subr.mxu0 0.0
        %1404 = vmatpush1.msra.mxu0 0.0
        %1405 = vmatprep.subr.mxu0 0.0
        %1406 = vmatpush1.msra.mxu0 0.0
        %1407 = vmatprep.mubr.f32.mxu0 0.0
        %1408 = vmatmul.mubr.f32.gmra.mrb[0].mxu0 %v1335
        %v1409 = vpop.f32.mrb[0].mxu0
        %v1410 = vadd.f32 0.0, %v1409
        %v1411 = vpop.f32.mrb[0].mxu0
        %v1412 = vadd.f32 0.0, %v1411
        %1413 = vdwg.mxu0
        %1414 = vmatprep.subr.mxu0 %v746
        %1415 = vmatpush1.msra.mxu0 %v745
        %1416 = vmatprep.subr.mxu0 %v750
        %1417 = vmatpush1.msra.mxu0 %v749
        %1418 = vmatprep.subr.mxu0 %v754
        %1419 = vmatpush1.msra.mxu0 %v753
        %1420 = vmatprep.subr.mxu0 %v758
        %1421 = vmatpush1.msra.mxu0 %v757
        %1422 = vmatprep.subr.mxu0 %v762
        %1423 = vmatpush1.msra.mxu0 %v761
        %1424 = vmatprep.subr.mxu0 %v766
        %1425 = vmatpush1.msra.mxu0 %v765
        %1426 = vmatprep.subr.mxu0 %v770
        %1427 = vmatpush1.msra.mxu0 %v769
        %1428 = vmatprep.subr.mxu0 %v774
        %1429 = vmatpush1.msra.mxu0 %v773
        %1430 = vmatprep.subr.mxu0 %v778
        %1431 = vmatpush1.msra.mxu0 %v777
        %1432 = vmatprep.subr.mxu0 %v782
        %1433 = vmatpush1.msra.mxu0 %v781
        %1434 = vmatprep.subr.mxu0 %v786
        %1435 = vmatpush1.msra.mxu0 %v785
        %1436 = vmatprep.subr.mxu0 %v790
        %1437 = vmatpush1.msra.mxu0 %v789
        %1438 = vmatprep.subr.mxu0 %v794
        %1439 = vmatpush1.msra.mxu0 %v793
        %1440 = vmatprep.subr.mxu0 %v798
        %1441 = vmatpush1.msra.mxu0 %v797
        %1442 = vmatprep.subr.mxu0 %v802
        %1443 = vmatpush1.msra.mxu0 %v801
        %1444 = vmatprep.subr.mxu0 %v806
        %1445 = vmatpush1.msra.mxu0 %v805
        %1446 = vmatprep.subr.mxu0 0.0
        %1447 = vmatpush1.msra.mxu0 0.0
        %1448 = vmatprep.subr.mxu0 0.0
        %1449 = vmatpush1.msra.mxu0 0.0
        %1450 = vmatprep.subr.mxu0 0.0
        %1451 = vmatpush1.msra.mxu0 0.0
        %1452 = vmatprep.subr.mxu0 0.0
        %1453 = vmatpush1.msra.mxu0 0.0
        %1454 = vmatprep.subr.mxu0 0.0
        %1455 = vmatpush1.msra.mxu0 0.0
        %1456 = vmatprep.subr.mxu0 0.0
        %1457 = vmatpush1.msra.mxu0 0.0
        %1458 = vmatprep.subr.mxu0 0.0
        %1459 = vmatpush1.msra.mxu0 0.0
        %1460 = vmatprep.subr.mxu0 0.0
        %1461 = vmatpush1.msra.mxu0 0.0
        %1462 = vmatprep.subr.mxu0 0.0
        %1463 = vmatpush1.msra.mxu0 0.0
        %1464 = vmatprep.subr.mxu0 0.0
        %1465 = vmatpush1.msra.mxu0 0.0
        %1466 = vmatprep.subr.mxu0 0.0
        %1467 = vmatpush1.msra.mxu0 0.0
        %1468 = vmatprep.subr.mxu0 0.0
        %1469 = vmatpush1.msra.mxu0 0.0
        %1470 = vmatprep.subr.mxu0 0.0
        %1471 = vmatpush1.msra.mxu0 0.0
        %1472 = vmatprep.subr.mxu0 0.0
        %1473 = vmatpush1.msra.mxu0 0.0
        %1474 = vmatprep.subr.mxu0 0.0
        %1475 = vmatpush1.msra.mxu0 0.0
        %1476 = vmatprep.subr.mxu0 0.0
        %1477 = vmatpush1.msra.mxu0 0.0
        %1478 = vmatprep.mubr.f32.mxu0 0.0
        %1479 = vmatmul.mubr.f32.gmra.mrb[0].mxu0 %v1335
        %v1480 = vpop.f32.mrb[0].mxu0
        %v1481 = vadd.f32 0.0, %v1480
        %v1482 = vpop.f32.mrb[0].mxu0
        %v1483 = vadd.f32 0.0, %v1482
        %1484 = vdwg.mxu0
        %v1485 = vadd.f32 %v1339, %v1410
        %v1486 = vadd.f32 %v1340, %v1412
        %v1487 = vadd.f32 %v1341, %v1481
        %v1488 = vadd.f32 %v1342, %v1483
        %v1489 = vxor.u32 %v1485, 2147483648
        %v1490 = vmul.f32 %v1489, 1.442695
        %v1491 = vpow.pop %v1490
        %v1492 = vadd.f32 %v1491, 1.0
        %v1493 = vrcp.pop %v1492
        %v1494 = vmul.f32 1.0, %v1493
        %v1495 = vxor.u32 %v1486, 2147483648
        %v1496 = vmul.f32 %v1495, 1.442695
        %v1497 = vpow.pop %v1496
        %v1498 = vadd.f32 %v1497, 1.0
        %v1499 = vrcp.pop %v1498
        %v1500 = vmul.f32 1.0, %v1499
        %v1501 = vtanh.pop %v1487
        %v1502 = vxor.u32 %v1488, 2147483648
        %v1503 = vmul.f32 %v1502, 1.442695
        %v1504 = vpow.pop %v1503
        %v1505 = vadd.f32 %v1504, 1.0
        %v1506 = vrcp.pop %v1505
        %v1507 = vmul.f32 1.0, %v1506
        %v1508 = vmul.f32 %v1500, %v1333
        %v1509 = vmul.f32 %v1494, %v1501
        %v1510 = vadd.f32 %v1508, %v1509
        %v1511 = vtanh.pop %v1510
        %v1512 = vmul.f32 %v1507, %v1511
        %s1513 = scalar_lea.vmem [#allocation4], 24
        %1514 = vst [vmem:[%s1513] sm:$0xff] %v1512
        %s1515 = scalar_lea.vmem [#allocation5], 128
        %v1516 = vld [vmem:[%s1515] sm:$0xff]
        %v1517 = vld [vmem:[%s1515 + $0x8] sm:$0xff]
        %v1518 = vld [vmem:[%s1515 + $0x10] sm:$0xff]
        %v1519 = vld [vmem:[%s1515 + $0x18] sm:$0xff]
        %1520 = vmatprep.subr.mxu0 %v744
        %1521 = vmatpush1.msra.mxu0 %v743
        %1522 = vmatprep.subr.mxu0 %v748
        %1523 = vmatpush1.msra.mxu0 %v747
        %1524 = vmatprep.subr.mxu0 %v752
        %1525 = vmatpush1.msra.mxu0 %v751
        %1526 = vmatprep.subr.mxu0 %v756
        %1527 = vmatpush1.msra.mxu0 %v755
        %1528 = vmatprep.subr.mxu0 %v760
        %1529 = vmatpush1.msra.mxu0 %v759
        %1530 = vmatprep.subr.mxu0 %v764
        %1531 = vmatpush1.msra.mxu0 %v763
        %1532 = vmatprep.subr.mxu0 %v768
        %1533 = vmatpush1.msra.mxu0 %v767
        %1534 = vmatprep.subr.mxu0 %v772
        %1535 = vmatpush1.msra.mxu0 %v771
        %1536 = vmatprep.subr.mxu0 %v776
        %1537 = vmatpush1.msra.mxu0 %v775
        %1538 = vmatprep.subr.mxu0 %v780
        %1539 = vmatpush1.msra.mxu0 %v779
        %1540 = vmatprep.subr.mxu0 %v784
        %1541 = vmatpush1.msra.mxu0 %v783
        %1542 = vmatprep.subr.mxu0 %v788
        %1543 = vmatpush1.msra.mxu0 %v787
        %1544 = vmatprep.subr.mxu0 %v792
        %1545 = vmatpush1.msra.mxu0 %v791
        %1546 = vmatprep.subr.mxu0 %v796
        %1547 = vmatpush1.msra.mxu0 %v795
        %1548 = vmatprep.subr.mxu0 %v800
        %1549 = vmatpush1.msra.mxu0 %v799
        %1550 = vmatprep.subr.mxu0 %v804
        %1551 = vmatpush1.msra.mxu0 %v803
        %1552 = vmatprep.subr.mxu0 0.0
        %1553 = vmatpush1.msra.mxu0 0.0
        %1554 = vmatprep.subr.mxu0 0.0
        %1555 = vmatpush1.msra.mxu0 0.0
        %1556 = vmatprep.subr.mxu0 0.0
        %1557 = vmatpush1.msra.mxu0 0.0
        %1558 = vmatprep.subr.mxu0 0.0
        %1559 = vmatpush1.msra.mxu0 0.0
        %1560 = vmatprep.subr.mxu0 0.0
        %1561 = vmatpush1.msra.mxu0 0.0
        %1562 = vmatprep.subr.mxu0 0.0
        %1563 = vmatpush1.msra.mxu0 0.0
        %1564 = vmatprep.subr.mxu0 0.0
        %1565 = vmatpush1.msra.mxu0 0.0
        %1566 = vmatprep.subr.mxu0 0.0
        %1567 = vmatpush1.msra.mxu0 0.0
        %1568 = vmatprep.subr.mxu0 0.0
        %1569 = vmatpush1.msra.mxu0 0.0
        %1570 = vmatprep.subr.mxu0 0.0
        %1571 = vmatpush1.msra.mxu0 0.0
        %1572 = vmatprep.subr.mxu0 0.0
        %1573 = vmatpush1.msra.mxu0 0.0
        %1574 = vmatprep.subr.mxu0 0.0
        %1575 = vmatpush1.msra.mxu0 0.0
        %1576 = vmatprep.subr.mxu0 0.0
        %1577 = vmatpush1.msra.mxu0 0.0
        %1578 = vmatprep.subr.mxu0 0.0
        %1579 = vmatpush1.msra.mxu0 0.0
        %1580 = vmatprep.subr.mxu0 0.0
        %1581 = vmatpush1.msra.mxu0 0.0
        %1582 = vmatprep.subr.mxu0 0.0
        %1583 = vmatpush1.msra.mxu0 0.0
        %1584 = vmatprep.mubr.f32.mxu0 0.0
        %1585 = vmatmul.mubr.f32.gmra.mrb[0].mxu0 %v1512
        %v1586 = vpop.f32.mrb[0].mxu0
        %v1587 = vadd.f32 0.0, %v1586
        %v1588 = vpop.f32.mrb[0].mxu0
        %v1589 = vadd.f32 0.0, %v1588
        %1590 = vdwg.mxu0
        %1591 = vmatprep.subr.mxu0 %v746
        %1592 = vmatpush1.msra.mxu0 %v745
        %1593 = vmatprep.subr.mxu0 %v750
        %1594 = vmatpush1.msra.mxu0 %v749
        %1595 = vmatprep.subr.mxu0 %v754
        %1596 = vmatpush1.msra.mxu0 %v753
        %1597 = vmatprep.subr.mxu0 %v758
        %1598 = vmatpush1.msra.mxu0 %v757
        %1599 = vmatprep.subr.mxu0 %v762
        %1600 = vmatpush1.msra.mxu0 %v761
        %1601 = vmatprep.subr.mxu0 %v766
        %1602 = vmatpush1.msra.mxu0 %v765
        %1603 = vmatprep.subr.mxu0 %v770
        %1604 = vmatpush1.msra.mxu0 %v769
        %1605 = vmatprep.subr.mxu0 %v774
        %1606 = vmatpush1.msra.mxu0 %v773
        %1607 = vmatprep.subr.mxu0 %v778
        %1608 = vmatpush1.msra.mxu0 %v777
        %1609 = vmatprep.subr.mxu0 %v782
        %1610 = vmatpush1.msra.mxu0 %v781
        %1611 = vmatprep.subr.mxu0 %v786
        %1612 = vmatpush1.msra.mxu0 %v785
        %1613 = vmatprep.subr.mxu0 %v790
        %1614 = vmatpush1.msra.mxu0 %v789
        %1615 = vmatprep.subr.mxu0 %v794
        %1616 = vmatpush1.msra.mxu0 %v793
        %1617 = vmatprep.subr.mxu0 %v798
        %1618 = vmatpush1.msra.mxu0 %v797
        %1619 = vmatprep.subr.mxu0 %v802
        %1620 = vmatpush1.msra.mxu0 %v801
        %1621 = vmatprep.subr.mxu0 %v806
        %1622 = vmatpush1.msra.mxu0 %v805
        %1623 = vmatprep.subr.mxu0 0.0
        %1624 = vmatpush1.msra.mxu0 0.0
        %1625 = vmatprep.subr.mxu0 0.0
        %1626 = vmatpush1.msra.mxu0 0.0
        %1627 = vmatprep.subr.mxu0 0.0
        %1628 = vmatpush1.msra.mxu0 0.0
        %1629 = vmatprep.subr.mxu0 0.0
        %1630 = vmatpush1.msra.mxu0 0.0
        %1631 = vmatprep.subr.mxu0 0.0
        %1632 = vmatpush1.msra.mxu0 0.0
        %1633 = vmatprep.subr.mxu0 0.0
        %1634 = vmatpush1.msra.mxu0 0.0
        %1635 = vmatprep.subr.mxu0 0.0
        %1636 = vmatpush1.msra.mxu0 0.0
        %1637 = vmatprep.subr.mxu0 0.0
        %1638 = vmatpush1.msra.mxu0 0.0
        %1639 = vmatprep.subr.mxu0 0.0
        %1640 = vmatpush1.msra.mxu0 0.0
        %1641 = vmatprep.subr.mxu0 0.0
        %1642 = vmatpush1.msra.mxu0 0.0
        %1643 = vmatprep.subr.mxu0 0.0
        %1644 = vmatpush1.msra.mxu0 0.0
        %1645 = vmatprep.subr.mxu0 0.0
        %1646 = vmatpush1.msra.mxu0 0.0
        %1647 = vmatprep.subr.mxu0 0.0
        %1648 = vmatpush1.msra.mxu0 0.0
        %1649 = vmatprep.subr.mxu0 0.0
        %1650 = vmatpush1.msra.mxu0 0.0
        %1651 = vmatprep.subr.mxu0 0.0
        %1652 = vmatpush1.msra.mxu0 0.0
        %1653 = vmatprep.subr.mxu0 0.0
        %1654 = vmatpush1.msra.mxu0 0.0
        %1655 = vmatprep.mubr.f32.mxu0 0.0
        %1656 = vmatmul.mubr.f32.gmra.mrb[0].mxu0 %v1512
        %v1657 = vpop.f32.mrb[0].mxu0
        %v1658 = vadd.f32 0.0, %v1657
        %v1659 = vpop.f32.mrb[0].mxu0
        %v1660 = vadd.f32 0.0, %v1659
        %1661 = vdwg.mxu0
        %v1662 = vadd.f32 %v1516, %v1587
        %v1663 = vadd.f32 %v1517, %v1589
        %v1664 = vadd.f32 %v1518, %v1658
        %v1665 = vadd.f32 %v1519, %v1660
        %v1666 = vxor.u32 %v1662, 2147483648
        %v1667 = vmul.f32 %v1666, 1.442695
        %v1668 = vpow.pop %v1667
        %v1669 = vadd.f32 %v1668, 1.0
        %v1670 = vrcp.pop %v1669
        %v1671 = vmul.f32 1.0, %v1670
        %v1672 = vxor.u32 %v1663, 2147483648
        %v1673 = vmul.f32 %v1672, 1.442695
        %v1674 = vpow.pop %v1673
        %v1675 = vadd.f32 %v1674, 1.0
        %v1676 = vrcp.pop %v1675
        %v1677 = vmul.f32 1.0, %v1676
        %v1678 = vtanh.pop %v1664
        %v1679 = vxor.u32 %v1665, 2147483648
        %v1680 = vmul.f32 %v1679, 1.442695
        %v1681 = vpow.pop %v1680
        %v1682 = vadd.f32 %v1681, 1.0
        %v1683 = vrcp.pop %v1682
        %v1684 = vmul.f32 1.0, %v1683
        %v1685 = vmul.f32 %v1677, %v1510
        %v1686 = vmul.f32 %v1671, %v1678
        %v1687 = vadd.f32 %v1685, %v1686
        %v1688 = vtanh.pop %v1687
        %v1689 = vmul.f32 %v1684, %v1688
        %s1690 = scalar_lea.vmem [#allocation4], 32
        %1691 = vst [vmem:[%s1690] sm:$0xff] %v1689
        %s1692 = scalar_lea.vmem [#allocation5], 160
        %v1693 = vld [vmem:[%s1692] sm:$0xff]
        %v1694 = vld [vmem:[%s1692 + $0x8] sm:$0xff]
        %v1695 = vld [vmem:[%s1692 + $0x10] sm:$0xff]
        %v1696 = vld [vmem:[%s1692 + $0x18] sm:$0xff]
        %1697 = vmatprep.subr.mxu0 %v744
        %1698 = vmatpush1.msra.mxu0 %v743
        %1699 = vmatprep.subr.mxu0 %v748
        %1700 = vmatpush1.msra.mxu0 %v747
        %1701 = vmatprep.subr.mxu0 %v752
        %1702 = vmatpush1.msra.mxu0 %v751
        %1703 = vmatprep.subr.mxu0 %v756
        %1704 = vmatpush1.msra.mxu0 %v755
        %1705 = vmatprep.subr.mxu0 %v760
        %1706 = vmatpush1.msra.mxu0 %v759
        %1707 = vmatprep.subr.mxu0 %v764
        %1708 = vmatpush1.msra.mxu0 %v763
        %1709 = vmatprep.subr.mxu0 %v768
        %1710 = vmatpush1.msra.mxu0 %v767
        %1711 = vmatprep.subr.mxu0 %v772
        %1712 = vmatpush1.msra.mxu0 %v771
        %1713 = vmatprep.subr.mxu0 %v776
        %1714 = vmatpush1.msra.mxu0 %v775
        %1715 = vmatprep.subr.mxu0 %v780
        %1716 = vmatpush1.msra.mxu0 %v779
        %1717 = vmatprep.subr.mxu0 %v784
        %1718 = vmatpush1.msra.mxu0 %v783
        %1719 = vmatprep.subr.mxu0 %v788
        %1720 = vmatpush1.msra.mxu0 %v787
        %1721 = vmatprep.subr.mxu0 %v792
        %1722 = vmatpush1.msra.mxu0 %v791
        %1723 = vmatprep.subr.mxu0 %v796
        %1724 = vmatpush1.msra.mxu0 %v795
        %1725 = vmatprep.subr.mxu0 %v800
        %1726 = vmatpush1.msra.mxu0 %v799
        %1727 = vmatprep.subr.mxu0 %v804
        %1728 = vmatpush1.msra.mxu0 %v803
        %1729 = vmatprep.subr.mxu0 0.0
        %1730 = vmatpush1.msra.mxu0 0.0
        %1731 = vmatprep.subr.mxu0 0.0
        %1732 = vmatpush1.msra.mxu0 0.0
        %1733 = vmatprep.subr.mxu0 0.0
        %1734 = vmatpush1.msra.mxu0 0.0
        %1735 = vmatprep.subr.mxu0 0.0
        %1736 = vmatpush1.msra.mxu0 0.0
        %1737 = vmatprep.subr.mxu0 0.0
        %1738 = vmatpush1.msra.mxu0 0.0
        %1739 = vmatprep.subr.mxu0 0.0
        %1740 = vmatpush1.msra.mxu0 0.0
        %1741 = vmatprep.subr.mxu0 0.0
        %1742 = vmatpush1.msra.mxu0 0.0
        %1743 = vmatprep.subr.mxu0 0.0
        %1744 = vmatpush1.msra.mxu0 0.0
        %1745 = vmatprep.subr.mxu0 0.0
        %1746 = vmatpush1.msra.mxu0 0.0
        %1747 = vmatprep.subr.mxu0 0.0
        %1748 = vmatpush1.msra.mxu0 0.0
        %1749 = vmatprep.subr.mxu0 0.0
        %1750 = vmatpush1.msra.mxu0 0.0
        %1751 = vmatprep.subr.mxu0 0.0
        %1752 = vmatpush1.msra.mxu0 0.0
        %1753 = vmatprep.subr.mxu0 0.0
        %1754 = vmatpush1.msra.mxu0 0.0
        %1755 = vmatprep.subr.mxu0 0.0
        %1756 = vmatpush1.msra.mxu0 0.0
        %1757 = vmatprep.subr.mxu0 0.0
        %1758 = vmatpush1.msra.mxu0 0.0
        %1759 = vmatprep.subr.mxu0 0.0
        %1760 = vmatpush1.msra.mxu0 0.0
        %1761 = vmatprep.mubr.f32.mxu0 0.0
        %1762 = vmatmul.mubr.f32.gmra.mrb[0].mxu0 %v1689
        %v1763 = vpop.f32.mrb[0].mxu0
        %v1764 = vadd.f32 0.0, %v1763
        %v1765 = vpop.f32.mrb[0].mxu0
        %v1766 = vadd.f32 0.0, %v1765
        %1767 = vdwg.mxu0
        %1768 = vmatprep.subr.mxu0 %v746
        %1769 = vmatpush1.msra.mxu0 %v745
        %1770 = vmatprep.subr.mxu0 %v750
        %1771 = vmatpush1.msra.mxu0 %v749
        %1772 = vmatprep.subr.mxu0 %v754
        %1773 = vmatpush1.msra.mxu0 %v753
        %1774 = vmatprep.subr.mxu0 %v758
        %1775 = vmatpush1.msra.mxu0 %v757
        %1776 = vmatprep.subr.mxu0 %v762
        %1777 = vmatpush1.msra.mxu0 %v761
        %1778 = vmatprep.subr.mxu0 %v766
        %1779 = vmatpush1.msra.mxu0 %v765
        %1780 = vmatprep.subr.mxu0 %v770
        %1781 = vmatpush1.msra.mxu0 %v769
        %1782 = vmatprep.subr.mxu0 %v774
        %1783 = vmatpush1.msra.mxu0 %v773
        %1784 = vmatprep.subr.mxu0 %v778
        %1785 = vmatpush1.msra.mxu0 %v777
        %1786 = vmatprep.subr.mxu0 %v782
        %1787 = vmatpush1.msra.mxu0 %v781
        %1788 = vmatprep.subr.mxu0 %v786
        %1789 = vmatpush1.msra.mxu0 %v785
        %1790 = vmatprep.subr.mxu0 %v790
        %1791 = vmatpush1.msra.mxu0 %v789
        %1792 = vmatprep.subr.mxu0 %v794
        %1793 = vmatpush1.msra.mxu0 %v793
        %1794 = vmatprep.subr.mxu0 %v798
        %1795 = vmatpush1.msra.mxu0 %v797
        %1796 = vmatprep.subr.mxu0 %v802
        %1797 = vmatpush1.msra.mxu0 %v801
        %1798 = vmatprep.subr.mxu0 %v806
        %1799 = vmatpush1.msra.mxu0 %v805
        %1800 = vmatprep.subr.mxu0 0.0
        %1801 = vmatpush1.msra.mxu0 0.0
        %1802 = vmatprep.subr.mxu0 0.0
        %1803 = vmatpush1.msra.mxu0 0.0
        %1804 = vmatprep.subr.mxu0 0.0
        %1805 = vmatpush1.msra.mxu0 0.0
        %1806 = vmatprep.subr.mxu0 0.0
        %1807 = vmatpush1.msra.mxu0 0.0
        %1808 = vmatprep.subr.mxu0 0.0
        %1809 = vmatpush1.msra.mxu0 0.0
        %1810 = vmatprep.subr.mxu0 0.0
        %1811 = vmatpush1.msra.mxu0 0.0
        %1812 = vmatprep.subr.mxu0 0.0
        %1813 = vmatpush1.msra.mxu0 0.0
        %1814 = vmatprep.subr.mxu0 0.0
        %1815 = vmatpush1.msra.mxu0 0.0
        %1816 = vmatprep.subr.mxu0 0.0
        %1817 = vmatpush1.msra.mxu0 0.0
        %1818 = vmatprep.subr.mxu0 0.0
        %1819 = vmatpush1.msra.mxu0 0.0
        %1820 = vmatprep.subr.mxu0 0.0
        %1821 = vmatpush1.msra.mxu0 0.0
        %1822 = vmatprep.subr.mxu0 0.0
        %1823 = vmatpush1.msra.mxu0 0.0
        %1824 = vmatprep.subr.mxu0 0.0
        %1825 = vmatpush1.msra.mxu0 0.0
        %1826 = vmatprep.subr.mxu0 0.0
        %1827 = vmatpush1.msra.mxu0 0.0
        %1828 = vmatprep.subr.mxu0 0.0
        %1829 = vmatpush1.msra.mxu0 0.0
        %1830 = vmatprep.subr.mxu0 0.0
        %1831 = vmatpush1.msra.mxu0 0.0
        %1832 = vmatprep.mubr.f32.mxu0 0.0
        %1833 = vmatmul.mubr.f32.gmra.mrb[0].mxu0 %v1689
        %v1834 = vpop.f32.mrb[0].mxu0
        %v1835 = vadd.f32 0.0, %v1834
        %v1836 = vpop.f32.mrb[0].mxu0
        %v1837 = vadd.f32 0.0, %v1836
        %1838 = vdwg.mxu0
        %v1839 = vadd.f32 %v1693, %v1764
        %v1840 = vadd.f32 %v1694, %v1766
        %v1841 = vadd.f32 %v1695, %v1835
        %v1842 = vadd.f32 %v1696, %v1837
        %v1843 = vxor.u32 %v1839, 2147483648
        %v1844 = vmul.f32 %v1843, 1.442695
        %v1845 = vpow.pop %v1844
        %v1846 = vadd.f32 %v1845, 1.0
        %v1847 = vrcp.pop %v1846
        %v1848 = vmul.f32 1.0, %v1847
        %v1849 = vxor.u32 %v1840, 2147483648
        %v1850 = vmul.f32 %v1849, 1.442695
        %v1851 = vpow.pop %v1850
        %v1852 = vadd.f32 %v1851, 1.0
        %v1853 = vrcp.pop %v1852
        %v1854 = vmul.f32 1.0, %v1853
        %v1855 = vtanh.pop %v1841
        %v1856 = vxor.u32 %v1842, 2147483648
        %v1857 = vmul.f32 %v1856, 1.442695
        %v1858 = vpow.pop %v1857
        %v1859 = vadd.f32 %v1858, 1.0
        %v1860 = vrcp.pop %v1859
        %v1861 = vmul.f32 1.0, %v1860
        %v1862 = vmul.f32 %v1854, %v1687
        %v1863 = vmul.f32 %v1848, %v1855
        %v1864 = vadd.f32 %v1862, %v1863
        %v1865 = vtanh.pop %v1864
        %v1866 = vmul.f32 %v1861, %v1865
        %s1867 = scalar_lea.vmem [#allocation4], 40
        %1868 = vst [vmem:[%s1867] sm:$0xff] %v1866
        %s1869 = scalar_lea.vmem [#allocation5], 192
        %v1870 = vld [vmem:[%s1869] sm:$0xff]
        %v1871 = vld [vmem:[%s1869 + $0x8] sm:$0xff]
        %v1872 = vld [vmem:[%s1869 + $0x10] sm:$0xff]
        %v1873 = vld [vmem:[%s1869 + $0x18] sm:$0xff]
        %1874 = vmatprep.subr.mxu0 %v744
        %1875 = vmatpush1.msra.mxu0 %v743
        %1876 = vmatprep.subr.mxu0 %v748
        %1877 = vmatpush1.msra.mxu0 %v747
        %1878 = vmatprep.subr.mxu0 %v752
        %1879 = vmatpush1.msra.mxu0 %v751
        %1880 = vmatprep.subr.mxu0 %v756
        %1881 = vmatpush1.msra.mxu0 %v755
        %1882 = vmatprep.subr.mxu0 %v760
        %1883 = vmatpush1.msra.mxu0 %v759
        %1884 = vmatprep.subr.mxu0 %v764
        %1885 = vmatpush1.msra.mxu0 %v763
        %1886 = vmatprep.subr.mxu0 %v768
        %1887 = vmatpush1.msra.mxu0 %v767
        %1888 = vmatprep.subr.mxu0 %v772
        %1889 = vmatpush1.msra.mxu0 %v771
        %1890 = vmatprep.subr.mxu0 %v776
        %1891 = vmatpush1.msra.mxu0 %v775
        %1892 = vmatprep.subr.mxu0 %v780
        %1893 = vmatpush1.msra.mxu0 %v779
        %1894 = vmatprep.subr.mxu0 %v784
        %1895 = vmatpush1.msra.mxu0 %v783
        %1896 = vmatprep.subr.mxu0 %v788
        %1897 = vmatpush1.msra.mxu0 %v787
        %1898 = vmatprep.subr.mxu0 %v792
        %1899 = vmatpush1.msra.mxu0 %v791
        %1900 = vmatprep.subr.mxu0 %v796
        %1901 = vmatpush1.msra.mxu0 %v795
        %1902 = vmatprep.subr.mxu0 %v800
        %1903 = vmatpush1.msra.mxu0 %v799
        %1904 = vmatprep.subr.mxu0 %v804
        %1905 = vmatpush1.msra.mxu0 %v803
        %1906 = vmatprep.subr.mxu0 0.0
        %1907 = vmatpush1.msra.mxu0 0.0
        %1908 = vmatprep.subr.mxu0 0.0
        %1909 = vmatpush1.msra.mxu0 0.0
        %1910 = vmatprep.subr.mxu0 0.0
        %1911 = vmatpush1.msra.mxu0 0.0
        %1912 = vmatprep.subr.mxu0 0.0
        %1913 = vmatpush1.msra.mxu0 0.0
        %1914 = vmatprep.subr.mxu0 0.0
        %1915 = vmatpush1.msra.mxu0 0.0
        %1916 = vmatprep.subr.mxu0 0.0
        %1917 = vmatpush1.msra.mxu0 0.0
        %1918 = vmatprep.subr.mxu0 0.0
        %1919 = vmatpush1.msra.mxu0 0.0
        %1920 = vmatprep.subr.mxu0 0.0
        %1921 = vmatpush1.msra.mxu0 0.0
        %1922 = vmatprep.subr.mxu0 0.0
        %1923 = vmatpush1.msra.mxu0 0.0
        %1924 = vmatprep.subr.mxu0 0.0
        %1925 = vmatpush1.msra.mxu0 0.0
        %1926 = vmatprep.subr.mxu0 0.0
        %1927 = vmatpush1.msra.mxu0 0.0
        %1928 = vmatprep.subr.mxu0 0.0
        %1929 = vmatpush1.msra.mxu0 0.0
        %1930 = vmatprep.subr.mxu0 0.0
        %1931 = vmatpush1.msra.mxu0 0.0
        %1932 = vmatprep.subr.mxu0 0.0
        %1933 = vmatpush1.msra.mxu0 0.0
        %1934 = vmatprep.subr.mxu0 0.0
        %1935 = vmatpush1.msra.mxu0 0.0
        %1936 = vmatprep.subr.mxu0 0.0
        %1937 = vmatpush1.msra.mxu0 0.0
        %1938 = vmatprep.mubr.f32.mxu0 0.0
        %1939 = vmatmul.mubr.f32.gmra.mrb[0].mxu0 %v1866
        %v1940 = vpop.f32.mrb[0].mxu0
        %v1941 = vadd.f32 0.0, %v1940
        %v1942 = vpop.f32.mrb[0].mxu0
        %v1943 = vadd.f32 0.0, %v1942
        %1944 = vdwg.mxu0
        %1945 = vmatprep.subr.mxu0 %v746
        %1946 = vmatpush1.msra.mxu0 %v745
        %1947 = vmatprep.subr.mxu0 %v750
        %1948 = vmatpush1.msra.mxu0 %v749
        %1949 = vmatprep.subr.mxu0 %v754
        %1950 = vmatpush1.msra.mxu0 %v753
        %1951 = vmatprep.subr.mxu0 %v758
        %1952 = vmatpush1.msra.mxu0 %v757
        %1953 = vmatprep.subr.mxu0 %v762
        %1954 = vmatpush1.msra.mxu0 %v761
        %1955 = vmatprep.subr.mxu0 %v766
        %1956 = vmatpush1.msra.mxu0 %v765
        %1957 = vmatprep.subr.mxu0 %v770
        %1958 = vmatpush1.msra.mxu0 %v769
        %1959 = vmatprep.subr.mxu0 %v774
        %1960 = vmatpush1.msra.mxu0 %v773
        %1961 = vmatprep.subr.mxu0 %v778
        %1962 = vmatpush1.msra.mxu0 %v777
        %1963 = vmatprep.subr.mxu0 %v782
        %1964 = vmatpush1.msra.mxu0 %v781
        %1965 = vmatprep.subr.mxu0 %v786
        %1966 = vmatpush1.msra.mxu0 %v785
        %1967 = vmatprep.subr.mxu0 %v790
        %1968 = vmatpush1.msra.mxu0 %v789
        %1969 = vmatprep.subr.mxu0 %v794
        %1970 = vmatpush1.msra.mxu0 %v793
        %1971 = vmatprep.subr.mxu0 %v798
        %1972 = vmatpush1.msra.mxu0 %v797
        %1973 = vmatprep.subr.mxu0 %v802
        %1974 = vmatpush1.msra.mxu0 %v801
        %1975 = vmatprep.subr.mxu0 %v806
        %1976 = vmatpush1.msra.mxu0 %v805
        %1977 = vmatprep.subr.mxu0 0.0
        %1978 = vmatpush1.msra.mxu0 0.0
        %1979 = vmatprep.subr.mxu0 0.0
        %1980 = vmatpush1.msra.mxu0 0.0
        %1981 = vmatprep.subr.mxu0 0.0
        %1982 = vmatpush1.msra.mxu0 0.0
        %1983 = vmatprep.subr.mxu0 0.0
        %1984 = vmatpush1.msra.mxu0 0.0
        %1985 = vmatprep.subr.mxu0 0.0
        %1986 = vmatpush1.msra.mxu0 0.0
        %1987 = vmatprep.subr.mxu0 0.0
        %1988 = vmatpush1.msra.mxu0 0.0
        %1989 = vmatprep.subr.mxu0 0.0
        %1990 = vmatpush1.msra.mxu0 0.0
        %1991 = vmatprep.subr.mxu0 0.0
        %1992 = vmatpush1.msra.mxu0 0.0
        %1993 = vmatprep.subr.mxu0 0.0
        %1994 = vmatpush1.msra.mxu0 0.0
        %1995 = vmatprep.subr.mxu0 0.0
        %1996 = vmatpush1.msra.mxu0 0.0
        %1997 = vmatprep.subr.mxu0 0.0
        %1998 = vmatpush1.msra.mxu0 0.0
        %1999 = vmatprep.subr.mxu0 0.0
        %2000 = vmatpush1.msra.mxu0 0.0
        %2001 = vmatprep.subr.mxu0 0.0
        %2002 = vmatpush1.msra.mxu0 0.0
        %2003 = vmatprep.subr.mxu0 0.0
        %2004 = vmatpush1.msra.mxu0 0.0
        %2005 = vmatprep.subr.mxu0 0.0
        %2006 = vmatpush1.msra.mxu0 0.0
        %2007 = vmatprep.subr.mxu0 0.0
        %2008 = vmatpush1.msra.mxu0 0.0
        %2009 = vmatprep.mubr.f32.mxu0 0.0
        %2010 = vmatmul.mubr.f32.gmra.mrb[0].mxu0 %v1866
        %v2011 = vpop.f32.mrb[0].mxu0
        %v2012 = vadd.f32 0.0, %v2011
        %v2013 = vpop.f32.mrb[0].mxu0
        %v2014 = vadd.f32 0.0, %v2013
        %2015 = vdwg.mxu0
        %v2016 = vadd.f32 %v1870, %v1941
        %v2017 = vadd.f32 %v1871, %v1943
        %v2018 = vadd.f32 %v1872, %v2012
        %v2019 = vadd.f32 %v1873, %v2014
        %v2020 = vxor.u32 %v2016, 2147483648
        %v2021 = vmul.f32 %v2020, 1.442695
        %v2022 = vpow.pop %v2021
        %v2023 = vadd.f32 %v2022, 1.0
        %v2024 = vrcp.pop %v2023
        %v2025 = vmul.f32 1.0, %v2024
        %v2026 = vxor.u32 %v2017, 2147483648
        %v2027 = vmul.f32 %v2026, 1.442695
        %v2028 = vpow.pop %v2027
        %v2029 = vadd.f32 %v2028, 1.0
        %v2030 = vrcp.pop %v2029
        %v2031 = vmul.f32 1.0, %v2030
        %v2032 = vtanh.pop %v2018
        %v2033 = vxor.u32 %v2019, 2147483648
        %v2034 = vmul.f32 %v2033, 1.442695
        %v2035 = vpow.pop %v2034
        %v2036 = vadd.f32 %v2035, 1.0
        %v2037 = vrcp.pop %v2036
        %v2038 = vmul.f32 1.0, %v2037
        %v2039 = vmul.f32 %v2031, %v1864
        %v2040 = vmul.f32 %v2025, %v2032
        %v2041 = vadd.f32 %v2039, %v2040
        %v2042 = vtanh.pop %v2041
        %v2043 = vmul.f32 %v2038, %v2042
        %s2044 = scalar_lea.vmem [#allocation4], 48
        %2045 = vst [vmem:[%s2044] sm:$0xff] %v2043
        %s2046 = scalar_lea.vmem [#allocation5], 224
        %v2047 = vld [vmem:[%s2046] sm:$0xff]
        %v2048 = vld [vmem:[%s2046 + $0x8] sm:$0xff]
        %v2049 = vld [vmem:[%s2046 + $0x10] sm:$0xff]
        %v2050 = vld [vmem:[%s2046 + $0x18] sm:$0xff]
        %2051 = vmatprep.subr.mxu0 %v744
        %2052 = vmatpush1.msra.mxu0 %v743
        %2053 = vmatprep.subr.mxu0 %v748
        %2054 = vmatpush1.msra.mxu0 %v747
        %2055 = vmatprep.subr.mxu0 %v752
        %2056 = vmatpush1.msra.mxu0 %v751
        %2057 = vmatprep.subr.mxu0 %v756
        %2058 = vmatpush1.msra.mxu0 %v755
        %2059 = vmatprep.subr.mxu0 %v760
        %2060 = vmatpush1.msra.mxu0 %v759
        %2061 = vmatprep.subr.mxu0 %v764
        %2062 = vmatpush1.msra.mxu0 %v763
        %2063 = vmatprep.subr.mxu0 %v768
        %2064 = vmatpush1.msra.mxu0 %v767
        %2065 = vmatprep.subr.mxu0 %v772
        %2066 = vmatpush1.msra.mxu0 %v771
        %2067 = vmatprep.subr.mxu0 %v776
        %2068 = vmatpush1.msra.mxu0 %v775
        %2069 = vmatprep.subr.mxu0 %v780
        %2070 = vmatpush1.msra.mxu0 %v779
        %2071 = vmatprep.subr.mxu0 %v784
        %2072 = vmatpush1.msra.mxu0 %v783
        %2073 = vmatprep.subr.mxu0 %v788
        %2074 = vmatpush1.msra.mxu0 %v787
        %2075 = vmatprep.subr.mxu0 %v792
        %2076 = vmatpush1.msra.mxu0 %v791
        %2077 = vmatprep.subr.mxu0 %v796
        %2078 = vmatpush1.msra.mxu0 %v795
        %2079 = vmatprep.subr.mxu0 %v800
        %2080 = vmatpush1.msra.mxu0 %v799
        %2081 = vmatprep.subr.mxu0 %v804
        %2082 = vmatpush1.msra.mxu0 %v803
        %2083 = vmatprep.subr.mxu0 0.0
        %2084 = vmatpush1.msra.mxu0 0.0
        %2085 = vmatprep.subr.mxu0 0.0
        %2086 = vmatpush1.msra.mxu0 0.0
        %2087 = vmatprep.subr.mxu0 0.0
        %2088 = vmatpush1.msra.mxu0 0.0
        %2089 = vmatprep.subr.mxu0 0.0
        %2090 = vmatpush1.msra.mxu0 0.0
        %2091 = vmatprep.subr.mxu0 0.0
        %2092 = vmatpush1.msra.mxu0 0.0
        %2093 = vmatprep.subr.mxu0 0.0
        %2094 = vmatpush1.msra.mxu0 0.0
        %2095 = vmatprep.subr.mxu0 0.0
        %2096 = vmatpush1.msra.mxu0 0.0
        %2097 = vmatprep.subr.mxu0 0.0
        %2098 = vmatpush1.msra.mxu0 0.0
        %2099 = vmatprep.subr.mxu0 0.0
        %2100 = vmatpush1.msra.mxu0 0.0
        %2101 = vmatprep.subr.mxu0 0.0
        %2102 = vmatpush1.msra.mxu0 0.0
        %2103 = vmatprep.subr.mxu0 0.0
        %2104 = vmatpush1.msra.mxu0 0.0
        %2105 = vmatprep.subr.mxu0 0.0
        %2106 = vmatpush1.msra.mxu0 0.0
        %2107 = vmatprep.subr.mxu0 0.0
        %2108 = vmatpush1.msra.mxu0 0.0
        %2109 = vmatprep.subr.mxu0 0.0
        %2110 = vmatpush1.msra.mxu0 0.0
        %2111 = vmatprep.subr.mxu0 0.0
        %2112 = vmatpush1.msra.mxu0 0.0
        %2113 = vmatprep.subr.mxu0 0.0
        %2114 = vmatpush1.msra.mxu0 0.0
        %2115 = vmatprep.mubr.f32.mxu0 0.0
        %2116 = vmatmul.mubr.f32.gmra.mrb[0].mxu0 %v2043
        %v2117 = vpop.f32.mrb[0].mxu0
        %v2118 = vadd.f32 0.0, %v2117
        %v2119 = vpop.f32.mrb[0].mxu0
        %v2120 = vadd.f32 0.0, %v2119
        %2121 = vdwg.mxu0
        %2122 = vmatprep.subr.mxu0 %v746
        %2123 = vmatpush1.msra.mxu0 %v745
        %2124 = vmatprep.subr.mxu0 %v750
        %2125 = vmatpush1.msra.mxu0 %v749
        %2126 = vmatprep.subr.mxu0 %v754
        %2127 = vmatpush1.msra.mxu0 %v753
        %2128 = vmatprep.subr.mxu0 %v758
        %2129 = vmatpush1.msra.mxu0 %v757
        %2130 = vmatprep.subr.mxu0 %v762
        %2131 = vmatpush1.msra.mxu0 %v761
        %2132 = vmatprep.subr.mxu0 %v766
        %2133 = vmatpush1.msra.mxu0 %v765
        %2134 = vmatprep.subr.mxu0 %v770
        %2135 = vmatpush1.msra.mxu0 %v769
        %2136 = vmatprep.subr.mxu0 %v774
        %2137 = vmatpush1.msra.mxu0 %v773
        %2138 = vmatprep.subr.mxu0 %v778
        %2139 = vmatpush1.msra.mxu0 %v777
        %2140 = vmatprep.subr.mxu0 %v782
        %2141 = vmatpush1.msra.mxu0 %v781
        %2142 = vmatprep.subr.mxu0 %v786
        %2143 = vmatpush1.msra.mxu0 %v785
        %2144 = vmatprep.subr.mxu0 %v790
        %2145 = vmatpush1.msra.mxu0 %v789
        %2146 = vmatprep.subr.mxu0 %v794
        %2147 = vmatpush1.msra.mxu0 %v793
        %2148 = vmatprep.subr.mxu0 %v798
        %2149 = vmatpush1.msra.mxu0 %v797
        %2150 = vmatprep.subr.mxu0 %v802
        %2151 = vmatpush1.msra.mxu0 %v801
        %2152 = vmatprep.subr.mxu0 %v806
        %2153 = vmatpush1.msra.mxu0 %v805
        %2154 = vmatprep.subr.mxu0 0.0
        %2155 = vmatpush1.msra.mxu0 0.0
        %2156 = vmatprep.subr.mxu0 0.0
        %2157 = vmatpush1.msra.mxu0 0.0
        %2158 = vmatprep.subr.mxu0 0.0
        %2159 = vmatpush1.msra.mxu0 0.0
        %2160 = vmatprep.subr.mxu0 0.0
        %2161 = vmatpush1.msra.mxu0 0.0
        %2162 = vmatprep.subr.mxu0 0.0
        %2163 = vmatpush1.msra.mxu0 0.0
        %2164 = vmatprep.subr.mxu0 0.0
        %2165 = vmatpush1.msra.mxu0 0.0
        %2166 = vmatprep.subr.mxu0 0.0
        %2167 = vmatpush1.msra.mxu0 0.0
        %2168 = vmatprep.subr.mxu0 0.0
        %2169 = vmatpush1.msra.mxu0 0.0
        %2170 = vmatprep.subr.mxu0 0.0
        %2171 = vmatpush1.msra.mxu0 0.0
        %2172 = vmatprep.subr.mxu0 0.0
        %2173 = vmatpush1.msra.mxu0 0.0
        %2174 = vmatprep.subr.mxu0 0.0
        %2175 = vmatpush1.msra.mxu0 0.0
        %2176 = vmatprep.subr.mxu0 0.0
        %2177 = vmatpush1.msra.mxu0 0.0
        %2178 = vmatprep.subr.mxu0 0.0
        %2179 = vmatpush1.msra.mxu0 0.0
        %2180 = vmatprep.subr.mxu0 0.0
        %2181 = vmatpush1.msra.mxu0 0.0
        %2182 = vmatprep.subr.mxu0 0.0
        %2183 = vmatpush1.msra.mxu0 0.0
        %2184 = vmatprep.subr.mxu0 0.0
        %2185 = vmatpush1.msra.mxu0 0.0
        %2186 = vmatprep.mubr.f32.mxu0 0.0
        %2187 = vmatmul.mubr.f32.gmra.mrb[0].mxu0 %v2043
        %v2188 = vpop.f32.mrb[0].mxu0
        %v2189 = vadd.f32 0.0, %v2188
        %v2190 = vpop.f32.mrb[0].mxu0
        %v2191 = vadd.f32 0.0, %v2190
        %2192 = vdwg.mxu0
        %v2193 = vadd.f32 %v2047, %v2118
        %v2194 = vadd.f32 %v2048, %v2120
        %v2195 = vadd.f32 %v2049, %v2189
        %v2196 = vadd.f32 %v2050, %v2191
        %v2197 = vxor.u32 %v2193, 2147483648
        %v2198 = vmul.f32 %v2197, 1.442695
        %v2199 = vpow.pop %v2198
        %v2200 = vadd.f32 %v2199, 1.0
        %v2201 = vrcp.pop %v2200
        %v2202 = vmul.f32 1.0, %v2201
        %v2203 = vxor.u32 %v2194, 2147483648
        %v2204 = vmul.f32 %v2203, 1.442695
        %v2205 = vpow.pop %v2204
        %v2206 = vadd.f32 %v2205, 1.0
        %v2207 = vrcp.pop %v2206
        %v2208 = vmul.f32 1.0, %v2207
        %v2209 = vtanh.pop %v2195
        %v2210 = vxor.u32 %v2196, 2147483648
        %v2211 = vmul.f32 %v2210, 1.442695
        %v2212 = vpow.pop %v2211
        %v2213 = vadd.f32 %v2212, 1.0
        %v2214 = vrcp.pop %v2213
        %v2215 = vmul.f32 1.0, %v2214
        %v2216 = vmul.f32 %v2208, %v2041
        %v2217 = vmul.f32 %v2202, %v2209
        %v2218 = vadd.f32 %v2216, %v2217
        %v2219 = vtanh.pop %v2218
        %v2220 = vmul.f32 %v2215, %v2219
        %s2221 = scalar_lea.vmem [#allocation4], 56
        %2222 = vst [vmem:[%s2221] sm:$0xff] %v2220
        %2223 = vst [vmem:[#allocation2] sm:$0xff] %v2220
        %2224 = vst [vmem:[#allocation3] sm:$0xff] %v2218
        %v2225 = vld [vmem:[#allocation4] sm:$0xff]
        %v2226 = vld [vmem:[#allocation4 + $0x8] sm:$0xff]
        %v2227 = vld [vmem:[#allocation4 + $0x10] sm:$0xff]
        %v2228 = vld [vmem:[#allocation4 + $0x18] sm:$0xff]
        %v2229 = vld [vmem:[#allocation4 + $0x20] sm:$0xff]
        %v2230 = vld [vmem:[#allocation4 + $0x28] sm:$0xff]
        %v2231 = vld [vmem:[#allocation4 + $0x30] sm:$0xff]
        %v2232 = vld [vmem:[#allocation4 + $0x38] sm:$0xff]
        %v2233 = vcombine.low %v2225, %v2227
        %v2234 = vcombine.high %v2225, %v2227
        %v2236 = vunpack.c.l.s4 1983009808
        %v2237 = vunpack.c.0.s8 %v2236
        %v2238 = vlaneseq
        %v2239 = vshrl.u32 %v2238, 7
        %v2240 = vsub.s32 %v2237, %v2239
        %v2241 = vrot.slane %v2233, %v2240
        %v2243 = vunpack.c.l.s4 1983009808
        %v2244 = vunpack.c.0.s8 %v2243
        %v2245 = vlaneseq
        %v2246 = vshrl.u32 %v2245, 7
        %v2247 = vsub.s32 %v2244, %v2246
        %v2248 = vrot.slane %v2234, %v2247
        %v2249 = vcombine.low %v2226, %v2228
        %v2250 = vcombine.high %v2226, %v2228
        %v2252 = vunpack.c.l.s4 1983009808
        %v2253 = vunpack.c.0.s8 %v2252
        %v2254 = vlaneseq
        %v2255 = vshrl.u32 %v2254, 7
        %v2256 = vsub.s32 %v2253, %v2255
        %v2257 = vrot.slane %v2249, %v2256
        %v2259 = vunpack.c.l.s4 1983009808
        %v2260 = vunpack.c.0.s8 %v2259
        %v2261 = vlaneseq
        %v2262 = vshrl.u32 %v2261, 7
        %v2263 = vsub.s32 %v2260, %v2262
        %v2264 = vrot.slane %v2250, %v2263
        %v2265 = vcombine.low %v2229, %v2231
        %v2266 = vcombine.high %v2229, %v2231
        %v2268 = vunpack.c.l.s4 1983009808
        %v2269 = vunpack.c.0.s8 %v2268
        %v2270 = vlaneseq
        %v2271 = vshrl.u32 %v2270, 7
        %v2272 = vsub.s32 %v2269, %v2271
        %v2273 = vrot.slane %v2265, %v2272
        %v2275 = vunpack.c.l.s4 1983009808
        %v2276 = vunpack.c.0.s8 %v2275
        %v2277 = vlaneseq
        %v2278 = vshrl.u32 %v2277, 7
        %v2279 = vsub.s32 %v2276, %v2278
        %v2280 = vrot.slane %v2266, %v2279
        %v2281 = vcombine.low %v2230, %v2232
        %v2282 = vcombine.high %v2230, %v2232
        %v2284 = vunpack.c.l.s4 1983009808
        %v2285 = vunpack.c.0.s8 %v2284
        %v2286 = vlaneseq
        %v2287 = vshrl.u32 %v2286, 7
        %v2288 = vsub.s32 %v2285, %v2287
        %v2289 = vrot.slane %v2281, %v2288
        %v2291 = vunpack.c.l.s4 1983009808
        %v2292 = vunpack.c.0.s8 %v2291
        %v2293 = vlaneseq
        %v2294 = vshrl.u32 %v2293, 7
        %v2295 = vsub.s32 %v2292, %v2294
        %v2296 = vrot.slane %v2282, %v2295
        %v2297 = vcombine.low %v2241, %v2257
        %v2298 = vcombine.high %v2241, %v2257
        %v2300 = vunpack.c.l.s4 1934713408
        %v2301 = vunpack.c.0.s8 %v2300
        %v2302 = vlaneseq
        %v2303 = vshrl.u32 %v2302, 7
        %v2304 = vsub.s32 %v2301, %v2303
        %v2305 = vrot.slane %v2297, %v2304
        %v2307 = vunpack.c.l.s4 1934713408
        %v2308 = vunpack.c.0.s8 %v2307
        %v2309 = vlaneseq
        %v2310 = vshrl.u32 %v2309, 7
        %v2311 = vsub.s32 %v2308, %v2310
        %v2312 = vrot.slane %v2298, %v2311
        %v2313 = vcombine.low %v2248, %v2264
        %v2314 = vcombine.high %v2248, %v2264
        %v2316 = vunpack.c.l.s4 1934713408
        %v2317 = vunpack.c.0.s8 %v2316
        %v2318 = vlaneseq
        %v2319 = vshrl.u32 %v2318, 7
        %v2320 = vsub.s32 %v2317, %v2319
        %v2321 = vrot.slane %v2313, %v2320
        %v2323 = vunpack.c.l.s4 1934713408
        %v2324 = vunpack.c.0.s8 %v2323
        %v2325 = vlaneseq
        %v2326 = vshrl.u32 %v2325, 7
        %v2327 = vsub.s32 %v2324, %v2326
        %v2328 = vrot.slane %v2314, %v2327
        %v2329 = vcombine.low %v2273, %v2289
        %v2330 = vcombine.high %v2273, %v2289
        %v2332 = vunpack.c.l.s4 1934713408
        %v2333 = vunpack.c.0.s8 %v2332
        %v2334 = vlaneseq
        %v2335 = vshrl.u32 %v2334, 7
        %v2336 = vsub.s32 %v2333, %v2335
        %v2337 = vrot.slane %v2329, %v2336
        %v2339 = vunpack.c.l.s4 1934713408
        %v2340 = vunpack.c.0.s8 %v2339
        %v2341 = vlaneseq
        %v2342 = vshrl.u32 %v2341, 7
        %v2343 = vsub.s32 %v2340, %v2342
        %v2344 = vrot.slane %v2330, %v2343
        %v2345 = vcombine.low %v2280, %v2296
        %v2346 = vcombine.high %v2280, %v2296
        %v2348 = vunpack.c.l.s4 1934713408
        %v2349 = vunpack.c.0.s8 %v2348
        %v2350 = vlaneseq
        %v2351 = vshrl.u32 %v2350, 7
        %v2352 = vsub.s32 %v2349, %v2351
        %v2353 = vrot.slane %v2345, %v2352
        %v2355 = vunpack.c.l.s4 1934713408
        %v2356 = vunpack.c.0.s8 %v2355
        %v2357 = vlaneseq
        %v2358 = vshrl.u32 %v2357, 7
        %v2359 = vsub.s32 %v2356, %v2358
        %v2360 = vrot.slane %v2346, %v2359
        %v2361 = vcombine.low %v2305, %v2337
        %v2362 = vcombine.high %v2305, %v2337
        %v2363 = vcombine.low %v2312, %v2344
        %v2364 = vcombine.high %v2312, %v2344
        %v2365 = vcombine.low %v2321, %v2353
        %v2366 = vcombine.high %v2321, %v2353
        %v2367 = vcombine.low %v2328, %v2360
        %v2368 = vcombine.high %v2328, %v2360
        %2369 = vst [vmem:[%s344] sm:$0xff] %v2361
        %2370 = vst [vmem:[%s344 + $0x8] sm:$0xff] %v2362
        %2371 = vst [vmem:[%s344 + $0x10] sm:$0xff] %v2363
        %2372 = vst [vmem:[%s344 + $0x18] sm:$0xff] %v2364
        %2373 = vst [vmem:[%s344 + $0x20] sm:$0xff] %v2365
        %2374 = vst [vmem:[%s344 + $0x28] sm:$0xff] %v2366
        %2375 = vst [vmem:[%s344 + $0x30] sm:$0xff] %v2367
        %2376 = vst [vmem:[%s344 + $0x38] sm:$0xff] %v2368
        %p2377 = scmp.eq.s32.totalorder %s25, 1
        // Predicated region
        $region49: #{language_model_onehot.4} parent=43 // pred_check
          %p2378 = pneg %p2377
        $region50: #{language_model_onehot.4} parent=43 // pred_check_branch
          %2380 = sbr.rel (%p2378) target = $region52
        $region51: #{language_model_onehot.4} parent=43 // pred_region
          %2381 = vst [vmem:[%s378] sm:$0xff] %v2220
          %2382 = vst [vmem:[%s382] sm:$0xff] %v2218
        $region52: #{language_model_onehot.4} parent=43 // pred_fallthru
          _
        %s2383 = sand.u32 %s185, 1
        %s2384 = sand.u32 %s185, 1
        %s2385 = smul.addr %s2384, 64
        %s2386 = scalar_lea.vmem [#allocation6], %s2385
        %p2387 = scmp.lt.s32.totalorder %s24, 0
        %s2388 = scalar_select %p2387, %s24, 0
        %s2389 = smul.addr %s2388, 8
        %s2390 = scalar_lea.vmem %s7, %s2389
        %p2391 = scmp.lt.s32.totalorder %s24, 0
        %s2392 = scalar_select %p2391, %s24, 0
        %s2393 = smul.addr %s2392, 8
        %s2394 = scalar_lea.vmem %s8, %s2393
        // Predicated region
        $region53: #{language_model_onehot.4} parent=43 // pred_check
          %p2395 = pneg %p195
        $region54: #{language_model_onehot.4} parent=43 // pred_check_branch
          %2397 = sbr.rel (%p2395) target = $region56
        $region55: #{language_model_onehot.4} parent=43 // pred_region
          %s2398 = smul.u32 8, %s24
          %s2399 = smul.addr %s2398, 2
          %s2400 = sadd.s32 %s25, %s2399
          %s2401 = smul.addr %s2400, 8
          %s2402 = scalar_lea.vmem %s6, %s2401
          // Predicated region
          $region57: #{language_model_onehot.4} parent=55 // pred_check
            _
          $region58: #{language_model_onehot.4} parent=55 // pred_check_branch
            %2404 = sbr.rel (0) target = $region60
          $region59: #{language_model_onehot.4} parent=55 // pred_region
            // Predicated region
            $region61: #{language_model_onehot.4} parent=59 // pred_check
              _
            $region62: #{language_model_onehot.4} parent=59 // pred_check_branch
              %2406 = sbr.rel (0) target = $region64
            $region63: #{language_model_onehot.4} parent=59 // pred_region
              // Predicated region
              $region76: #{language_model_onehot.4} parent=63 // pred_check
                _
              $region77: #{language_model_onehot.4} parent=63 // pred_check_branch
                %2435 = sbr.rel (0) target = $region79
              $region78: #{language_model_onehot.4} parent=63 // pred_region
                loop: start=0, step=1, limit=1
                $region80: #{language_model_onehot.4} parent=78 // loop_pre_header
                  _
                $region81: #{language_model_onehot.4} parent=78 // loop_header
                  %s2437 = sphi 0, %s2441
                  %p2438 = scmp.ge.s32.totalorder %s2437, 1
                  %s2442 = sphi %s2386, %s2386
                  %s2443 = sphi %s2402, %s2402
                $region82: #{language_model_onehot.4} parent=78 // loop_header_branch
                  %2440 = sbr.rel (%p2438) target = $region86
                $region83: #{language_model_onehot.4} parent=78 // loop_body
                  %v2444 = vld [vmem:[%s2442] sm:$0xff]
                  %2445 = vst [vmem:[%s2443] sm:$0xff] %v2444
                  %v2446 = vld [vmem:[%s2442 + $0x8] sm:$0xff]
                  %2447 = vst [vmem:[%s2443 + $0x10] sm:$0xff] %v2446
                  %v2448 = vld [vmem:[%s2442 + $0x10] sm:$0xff]
                  %2449 = vst [vmem:[%s2443 + $0x20] sm:$0xff] %v2448
                  %v2450 = vld [vmem:[%s2442 + $0x18] sm:$0xff]
                  %2451 = vst [vmem:[%s2443 + $0x30] sm:$0xff] %v2450
                  %v2452 = vld [vmem:[%s2442 + $0x20] sm:$0xff]
                  %2453 = vst [vmem:[%s2443 + $0x40] sm:$0xff] %v2452
                  %v2454 = vld [vmem:[%s2442 + $0x28] sm:$0xff]
                  %2455 = vst [vmem:[%s2443 + $0x50] sm:$0xff] %v2454
                  %v2456 = vld [vmem:[%s2442 + $0x30] sm:$0xff]
                  %2457 = vst [vmem:[%s2443 + $0x60] sm:$0xff] %v2456
                  %v2458 = vld [vmem:[%s2442 + $0x38] sm:$0xff]
                  %2459 = vst [vmem:[%s2443 + $0x70] sm:$0xff] %v2458
                $region84: #{language_model_onehot.4} parent=78 // loop_footer
                  %s2441 = sadd.s32 1, %s2437
                $region85: #{language_model_onehot.4} parent=78 // loop_footer_branch
                  %2436 = sbr.rel target = $region81
                $region86: #{language_model_onehot.4} parent=78 // loop_exit
                  _
              $region79: #{language_model_onehot.4} parent=63 // pred_fallthru
                _
              // Predicated region
              $region87: #{language_model_onehot.4} parent=63 // pred_check
                _
              $region88: #{language_model_onehot.4} parent=63 // pred_check_branch
                %2461 = sbr.rel target = $region90
              $region89: #{language_model_onehot.4} parent=63 // pred_region
                _
              $region90: #{language_model_onehot.4} parent=63 // pred_fallthru
                _
            $region64: #{language_model_onehot.4} parent=59 // pred_fallthru
              _
            // Predicated region
            $region65: #{language_model_onehot.4} parent=59 // pred_check
              _
            $region66: #{language_model_onehot.4} parent=59 // pred_check_branch
              %2408 = sbr.rel target = $region68
            $region67: #{language_model_onehot.4} parent=59 // pred_region
              loop: start=0, step=1, limit=1
              $region69: #{language_model_onehot.4} parent=67 // loop_pre_header
                _
              $region70: #{language_model_onehot.4} parent=67 // loop_header
                %s2411 = sphi 0, %s2415
                %p2412 = scmp.ge.s32.totalorder %s2411, 1
                %s2416 = sphi %s2386, %s2386
                %s2417 = sphi %s2402, %s2402
              $region71: #{language_model_onehot.4} parent=67 // loop_header_branch
                %2414 = sbr.rel (%p2412) target = $region75
              $region72: #{language_model_onehot.4} parent=67 // loop_body
                %v2418 = vld [vmem:[%s2416] sm:$0xff]
                %2419 = vst [vmem:[%s2417] sm:$0xff] %v2418
                %v2420 = vld [vmem:[%s2416 + $0x8] sm:$0xff]
                %2421 = vst [vmem:[%s2417 + $0x10] sm:$0xff] %v2420
                %v2422 = vld [vmem:[%s2416 + $0x10] sm:$0xff]
                %2423 = vst [vmem:[%s2417 + $0x20] sm:$0xff] %v2422
                %v2424 = vld [vmem:[%s2416 + $0x18] sm:$0xff]
                %2425 = vst [vmem:[%s2417 + $0x30] sm:$0xff] %v2424
                %v2426 = vld [vmem:[%s2416 + $0x20] sm:$0xff]
                %2427 = vst [vmem:[%s2417 + $0x40] sm:$0xff] %v2426
                %v2428 = vld [vmem:[%s2416 + $0x28] sm:$0xff]
                %2429 = vst [vmem:[%s2417 + $0x50] sm:$0xff] %v2428
                %v2430 = vld [vmem:[%s2416 + $0x30] sm:$0xff]
                %2431 = vst [vmem:[%s2417 + $0x60] sm:$0xff] %v2430
                %v2432 = vld [vmem:[%s2416 + $0x38] sm:$0xff]
                %2433 = vst [vmem:[%s2417 + $0x70] sm:$0xff] %v2432
              $region73: #{language_model_onehot.4} parent=67 // loop_footer
                %s2415 = sadd.s32 1, %s2411
              $region74: #{language_model_onehot.4} parent=67 // loop_footer_branch
                %2410 = sbr.rel target = $region70
              $region75: #{language_model_onehot.4} parent=67 // loop_exit
                _
            $region68: #{language_model_onehot.4} parent=59 // pred_fallthru
              _
          $region60: #{language_model_onehot.4} parent=55 // pred_fallthru
            _
          %2462 = vnop
        $region56: #{language_model_onehot.4} parent=43 // pred_fallthru
          _
        // Predicated region
        $region91: #{language_model_onehot.4} parent=43 // pred_check
          %p2463 = pneg %p221
        $region92: #{language_model_onehot.4} parent=43 // pred_check_branch
          %2465 = sbr.rel (%p2463) target = $region94
        $region93: #{language_model_onehot.4} parent=43 // pred_region
          _
        $region94: #{language_model_onehot.4} parent=43 // pred_fallthru
          _
        // Predicated region
        $region95: #{language_model_onehot.4} parent=43 // pred_check
          %p2466 = pneg %p247
        $region96: #{language_model_onehot.4} parent=43 // pred_check_branch
          %2468 = sbr.rel (%p2466) target = $region98
        $region97: #{language_model_onehot.4} parent=43 // pred_region
          _
        $region98: #{language_model_onehot.4} parent=43 // pred_fallthru
          _
        // Predicated region
        $region99: #{language_model_onehot.4} parent=43 // pred_check
          %p2469 = pneg %p221
        $region100: #{language_model_onehot.4} parent=43 // pred_check_branch
          %2471 = sbr.rel (%p2469) target = $region102
        $region101: #{language_model_onehot.4} parent=43 // pred_region
          %p2472 = scmp.lt.s32.totalorder %s24, 0
          %s2473 = scalar_select %p2472, %s24, 0
          %s2474 = smul.addr %s2473, 8
          %s2475 = scalar_lea.vmem %s7, %s2474
        $region102: #{language_model_onehot.4} parent=43 // pred_fallthru
          _
        // Predicated region
        $region103: #{language_model_onehot.4} parent=43 // pred_check
          %p2476 = pneg %p247
        $region104: #{language_model_onehot.4} parent=43 // pred_check_branch
          %2478 = sbr.rel (%p2476) target = $region106
        $region105: #{language_model_onehot.4} parent=43 // pred_region
          %p2479 = scmp.lt.s32.totalorder %s24, 0
          %s2480 = scalar_select %p2479, %s24, 0
          %s2481 = smul.addr %s2480, 8
          %s2482 = scalar_lea.vmem %s8, %s2481
        $region106: #{language_model_onehot.4} parent=43 // pred_fallthru
          _
      $region44: #{language_model_onehot.4} parent=5 // pred_fallthru
        _
      %p2483 = scmp.le.s32.totalorder 2, %s15
      // Predicated region
      $region107: #{language_model_onehot.4} parent=5 // pred_check
        %p2484 = pneg %p2483
      $region108: #{language_model_onehot.4} parent=5 // pred_check_branch
        %2486 = sbr.rel (%p2484) target = $region110
      $region109: #{language_model_onehot.4} parent=5 // pred_region
        %s2487 = ssub.s32 %s15, 2
        // Predicated region
        $region111: #{language_model_onehot.4} parent=109 // pred_check
          %p2488 = pneg %p201
        $region112: #{language_model_onehot.4} parent=109 // pred_check_branch
          %2490 = sbr.rel (%p2488) target = $region114
        $region113: #{language_model_onehot.4} parent=109 // pred_region
          %s2491 = sand.u32 %s186, 1
          %s2492 = sand.u32 %s186, 1
          %s2493 = smul.addr %s2492, 64
          %s2494 = scalar_lea.vmem [#allocation6], %s2493
        $region114: #{language_model_onehot.4} parent=109 // pred_fallthru
          _
      $region110: #{language_model_onehot.4} parent=5 // pred_fallthru
        _
    $region6: #{language_model_onehot.4} parent=1 // loop_footer
      %s19 = sadd.s32 1, %s15
    $region7: #{language_model_onehot.4} parent=1 // loop_footer_branch
      %14 = sbr.rel target = $region3
    $region8: #{language_model_onehot.4} parent=1 // loop_exit
      _

</llo_original>
